<compile_context>
chip_gen: v7x
topology: tpu7x:2x2x1
jax: 0.10.0
libtpu: 0.0.40
codegen_flags: <defaults>
</compile_context>

<pallas_src>
import math
import numpy as np
import jax
import jax.numpy as jnp
from jax.experimental import pallas as pl
from jax.experimental.pallas import tpu as pltpu


L_Z = 7
L_XY = 11
D_OUT = 4 * L_XY + 2 * L_Z  # 58


def _build_table(l_z=L_Z, l_xy=L_XY):
    """(4, D) table: rows 0..2 = selector*freq per pts column (z,x,y), row 3 = phase.

    Column d of the output is  sin(pts[:, c_d] * table[c_d, d] + table[3, d]),
    where exactly one of rows 0..2 is nonzero per column.
    phase = 0 for sin columns, pi/2 for cos columns (cos x == sin(x + pi/2)).
    """
    src_idx, freqs, phases = [], [], []
    # Output ordering matches the PyTorch loops: x (pts[:,1]), y (pts[:,2]), z (pts[:,0]).
    for coord, nl in ((1, l_xy), (2, l_xy), (0, l_z)):
        for l in range(nl):
            f = (2.0 ** l) * math.pi
            src_idx += [coord, coord]          # sin column, cos column
            freqs += [f, f]
            phases += [0.0, math.pi / 2.0]
    d = len(freqs)
    table = np.zeros((4, d), dtype=np.float32)
    table[np.asarray(src_idx), np.arange(d)] = np.asarray(freqs, dtype=np.float32)
    table[3, :] = np.asarray(phases, dtype=np.float32)
    return table


_TABLE = _build_table()


def _pe_kernel(tab_ref, pts_ref, out_ref):
    # tab_ref: (4, D) f32 constant table, pts_ref: (TM, 3) f32, out_ref: (TM, D) f32
    pts = pts_ref[...]
    tab = tab_ref[...]
    # Three VPU broadcast-FMAs select + scale the right coordinate per output lane
    # (exact in f32; only one term per column is nonzero), then add the phase.
    # Single fused expression so Mosaic can reuse one VMEM temporary for the chain.
    arg = (pts[:, 0:1] * tab[0:1, :]      # z columns
           + pts[:, 1:2] * tab[1:2, :]    # x columns
           + pts[:, 2:3] * tab[2:3, :]    # y columns
           + tab[3:4, :])                 # 0 (sin) or pi/2 (cos)
    # One sin pass covers both sin & cos columns (sin lowers to VPU range
    # reduction + polynomial; doing it once over the full 58-wide block keeps
    # the per-point transcendental count at D, not 2*D).
    out_ref[...] = jnp.sin(arg)


def _round_up(x, m):
    return ((x + m - 1) // m) * m


_DEFAULTS_CACHE = None


def _pick_defaults():
    """(default row tile, scoped-VMEM limit override or None), chosen per device."""
    global _DEFAULTS_CACHE
    if _DEFAULTS_CACHE is None:
        # v5e/v6e/v7x path: big tile + 32 MiB scoped VMEM (need ~16 MiB of block
        # buffers + a few MiB of temporaries; 32 MiB <= physical on all three).
        tile, vmem_limit = 8192, 32 * 1024 * 1024
        try:
            phys = pltpu.get_tpu_info().vmem_capacity_bytes
            if phys < 48 * 1024 * 1024:
                # Small-VMEM part: keep the previously-validated conservative config.
                tile, vmem_limit = 2048, None
        except Exception:
            pass  # fall back to the v5e/v6e/v7x defaults
        _DEFAULTS_CACHE = (tile, vmem_limit)
    return _DEFAULTS_CACHE


def positional_encoding(pts, *, tile_m=None):
    """pts: [N, 3] float32 -> [N, 4*l_xy + 2*l_z] float32."""
    n, c = pts.shape
    assert c == 3, "pts must have 3 coordinate columns (z, x, y)"
    pts = pts.astype(jnp.float32)
    tab = jnp.asarray(_TABLE)  # passed as a kernel input (not a captured constant)

    tile_def, vmem_limit = _pick_defaults()
    if tile_m is None:
        tile_m = tile_def

    # Pad rows only to a sublane multiple of 8 (<= 7 phantom rows).  The grid
    # uses cdiv, so the last block may hang over the array end; Pallas pads the
    # read and masks the out-of-bounds part of the write.
    n_pad = _round_up(n, 8)
    if n_pad != n:
        pts = jnp.pad(pts, ((0, n_pad - n), (0, 0)))
    tile = min(_round_up(tile_m, 8), n_pad)
    grid = (pl.cdiv(n_pad, tile),)

    cp = dict(dimension_semantics=("parallel",))
    if vmem_limit is not None:
        cp["vmem_limit_bytes"] = vmem_limit

    out = pl.pallas_call(
        _pe_kernel,
        out_shape=jax.ShapeDtypeStruct((n_pad, D_OUT), jnp.float32),
        grid=grid,
        in_specs=[
            pl.BlockSpec((4, D_OUT), lambda i: (0, 0)),      # constant table (resident)
            pl.BlockSpec((tile, 3), lambda i: (i, 0)),       # row tile of pts
        ],
        out_specs=pl.BlockSpec((tile, D_OUT), lambda i: (i, 0)),
        compiler_params=pltpu.CompilerParams(**cp),
        cost_estimate=pl.CostEstimate(
            flops=n_pad * D_OUT * 7,
            transcendentals=n_pad * D_OUT,
            bytes_accessed=n_pad * (3 + D_OUT) * 4 + 4 * D_OUT * 4),
    )(tab, pts)

    return out[:n] if n_pad != n else out


def _reference(pts):
    """Plain-JAX replica of the PyTorch forward (direct sin/cos, for verification)."""
    cols = []
    for coord, nl in ((1, L_XY), (2, L_XY), (0, L_Z)):
        for l in range(nl):
            f = (2.0 ** l) * math.pi
            cols.append(jnp.sin(f * pts[:, coord][:, None]))
            cols.append(jnp.cos(f * pts[:, coord][:, None]))
    return jnp.concatenate(cols, axis=-1)


if __name__ == "__main__":
    key = jax.random.PRNGKey(0)

    # Case 1: N not a multiple of 8 -> exercises the pad-to-sublane path,
    # single (clamped) block.
    n1 = 300
    pts1 = jax.random.uniform(key, (n1, 3), dtype=jnp.float32, minval=-1.0, maxval=1.0)
    out1 = jax.block_until_ready(positional_encoding(pts1))
    ref1 = _reference(pts1)
    assert out1.shape == (n1, D_OUT), out1.shape
    assert jnp.allclose(out1, ref1, atol=5e-4, rtol=1e-5), "mismatch vs reference (single block)"

    # Case 2: small explicit tile -> exercises the cdiv grid with a partial
    # trailing block (2056 rows, tile 512 -> 5 grid steps, last one masked).
    n2 = 2050
    pts2 = jax.random.uniform(jax.random.PRNGKey(0), (n2, 3), dtype=jnp.float32,
                              minval=-1.0, maxval=1.0)
    out2 = jax.block_until_ready(positional_encoding(pts2, tile_m=512))
    ref2 = _reference(pts2)
    assert out2.shape == (n2, D_OUT), out2.shape
    assert jnp.allclose(out2, ref2, atol=5e-4, rtol=1e-5), "mismatch vs reference (multi block)"

    print("KERNEL_OK")
</pallas_src>

<mosaic_0001>
module attributes {stable_mosaic.version = 11 : i64} {
  func.func @_pe_kernel(%arg0: i32, %arg1: memref<4x58xf32, #tpu.memory_space<vmem>>, %arg2: memref<304x3xf32, #tpu.memory_space<vmem>>, %arg3: memref<304x58xf32, #tpu.memory_space<vmem>>) attributes {dimension_semantics = [#tpu.dimension_semantics<parallel>], iteration_bounds = array<i64: 1>, scalar_prefetch = 0 : i64, scratch_operands = 0 : i64, tpu.core_type = #tpu.core_type<tc>, window_params = [{pipeline_mode = #tpu.pipeline_mode<synchronous>, transform_indices = @transform_0, window_bounds = array<i64: 4, 58>}, {transform_indices = @transform_1, window_bounds = array<i64: 304, 3>}, {transform_indices = @transform_2, window_bounds = array<i64: 304, 58>}]} {
    %c0 = arith.constant 0 : index
    %c0_0 = arith.constant 0 : index
    %0 = vector.load %arg2[%c0, %c0_0] : memref<304x3xf32, #tpu.memory_space<vmem>>, vector<304x3xf32>
    %c0_1 = arith.constant 0 : index
    %c0_2 = arith.constant 0 : index
    %1 = vector.load %arg1[%c0_1, %c0_2] : memref<4x58xf32, #tpu.memory_space<vmem>>, vector<4x58xf32>
    %2 = vector.extract_strided_slice %0 {offsets = [0, 0], sizes = [304, 1], strides = [1, 1]} : vector<304x3xf32> to vector<304x1xf32>
    %3 = vector.extract_strided_slice %1 {offsets = [0, 0], sizes = [1, 58], strides = [1, 1]} : vector<4x58xf32> to vector<1x58xf32>
    %4 = vector.broadcast %2 : vector<304x1xf32> to vector<304x58xf32>
    %5 = vector.broadcast %3 : vector<1x58xf32> to vector<304x58xf32>
    %6 = arith.mulf %4, %5 : vector<304x58xf32>
    %7 = vector.extract_strided_slice %0 {offsets = [0, 1], sizes = [304, 1], strides = [1, 1]} : vector<304x3xf32> to vector<304x1xf32>
    %8 = vector.extract_strided_slice %1 {offsets = [1, 0], sizes = [1, 58], strides = [1, 1]} : vector<4x58xf32> to vector<1x58xf32>
    %9 = vector.broadcast %7 : vector<304x1xf32> to vector<304x58xf32>
    %10 = vector.broadcast %8 : vector<1x58xf32> to vector<304x58xf32>
    %11 = arith.mulf %9, %10 : vector<304x58xf32>
    %12 = arith.addf %6, %11 : vector<304x58xf32>
    %13 = vector.extract_strided_slice %0 {offsets = [0, 2], sizes = [304, 1], strides = [1, 1]} : vector<304x3xf32> to vector<304x1xf32>
    %14 = vector.extract_strided_slice %1 {offsets = [2, 0], sizes = [1, 58], strides = [1, 1]} : vector<4x58xf32> to vector<1x58xf32>
    %15 = vector.broadcast %13 : vector<304x1xf32> to vector<304x58xf32>
    %16 = vector.broadcast %14 : vector<1x58xf32> to vector<304x58xf32>
    %17 = arith.mulf %15, %16 : vector<304x58xf32>
    %18 = arith.addf %12, %17 : vector<304x58xf32>
    %19 = vector.extract_strided_slice %1 {offsets = [3, 0], sizes = [1, 58], strides = [1, 1]} : vector<4x58xf32> to vector<1x58xf32>
    %20 = vector.broadcast %19 : vector<1x58xf32> to vector<304x58xf32>
    %21 = arith.addf %18, %20 : vector<304x58xf32>
    %22 = math.sin %21 : vector<304x58xf32>
    %c0_3 = arith.constant 0 : index
    %c0_4 = arith.constant 0 : index
    %23 = vector.load %arg3[%c0_3, %c0_4] : memref<304x58xf32, #tpu.memory_space<vmem>>, vector<304x58xf32>
    tpu.vector_store %arg3[%c0_3, %c0_4], %22 {strides = array<i32>} : memref<304x58xf32, #tpu.memory_space<vmem>>, vector<304x58xf32>,
    return
  }
  func.func @transform_0(%arg0: i32) -> (i32, i32) {
    %c0_i32 = arith.constant 0 : i32
    %c0_i32_0 = arith.constant 0 : i32
    %c0_i32_1 = arith.constant 0 : i32
    return %c0_i32, %c0_i32_0 : i32, i32
  }
  func.func @transform_1(%arg0: i32) -> (i32, i32) {
    %c0_i32 = arith.constant 0 : i32
    %c0_i32_0 = arith.constant 0 : i32
    return %arg0, %c0_i32 : i32, i32
  }
  func.func @transform_2(%arg0: i32) -> (i32, i32) {
    %c0_i32 = arith.constant 0 : i32
    %c0_i32_0 = arith.constant 0 : i32
    return %arg0, %c0_i32 : i32, i32
  }
}

</mosaic_0001>

<llo_original>
// kernel: tpu_custom_call.1
$region0: #{tpu_custom_call.1}
  #allocation0 [shape = 'u32[]', space=smem, size = 0x4, offset = 0x4, fixed_abs, tag = 'smem constant byte address 0x4 - core index']
  #allocation1 [shape = 'u32[144,128]{1,0:T(1,128)}', space=vmem, size = 0x12000, scoped, tag = 'internal scratch']
  %s0 = inlined_call_operand.vmem [shape: f32[4,58], index: 0, kind: input, shape index: {}]
  %s1 = inlined_call_operand.vmem [shape: f32[304,3], index: 1, kind: input, shape index: {}]
  %s2 = inlined_call_operand.vmem [shape: f32[304,58], index: 2, kind: output, shape index: {}]
  %s3 = sld [smem:[#allocation0]]
  $region18: #{tpu_custom_call.1} parent=0
    _
  %s5 = ssub.s32 1, %s3
  %s6 = scalar_select 0, %s5, %s3
  // Predicated region
  $region2: #{tpu_custom_call.1} parent=0 // pred_check
    _
  $region3: #{tpu_custom_call.1} parent=0 // pred_check_branch
    %8 = sbr.rel (0) target = $region5
  $region4: #{tpu_custom_call.1} parent=0 // pred_region
    _
  $region5: #{tpu_custom_call.1} parent=0 // pred_fallthru
    _
  // Predicated region
  $region6: #{tpu_custom_call.1} parent=0 // pred_check
    _
  $region7: #{tpu_custom_call.1} parent=0 // pred_check_branch
    %10 = sbr.rel (0) target = $region9
  $region8: #{tpu_custom_call.1} parent=0 // pred_region
    _
  $region9: #{tpu_custom_call.1} parent=0 // pred_fallthru
    _
  %v11 = vld [vmem:[%s1] sm:$0xff]
  %v12 = vld [vmem:[%s1 + $0x8] sm:$0xff]
  %v13 = vld [vmem:[%s1 + $0x10] sm:$0xff]
  %v14 = vld [vmem:[%s1 + $0x18] sm:$0xff]
  %v15 = vld [vmem:[%s1 + $0x20] sm:$0xff]
  %v16 = vld [vmem:[%s1 + $0x28] sm:$0xff]
  %v17 = vld [vmem:[%s1 + $0x30] sm:$0xff]
  %v18 = vld [vmem:[%s1 + $0x38] sm:$0xff]
  %v19 = vld [vmem:[%s1 + $0x40] sm:$0xff]
  %v20 = vld [vmem:[%s1 + $0x48] sm:$0xff]
  %v21 = vld [vmem:[%s1 + $0x50] sm:$0xff]
  %v22 = vld [vmem:[%s1 + $0x58] sm:$0xff]
  %v23 = vld [vmem:[%s1 + $0x60] sm:$0xff]
  %v24 = vld [vmem:[%s1 + $0x68] sm:$0xff]
  %v25 = vld [vmem:[%s1 + $0x70] sm:$0xff]
  %v26 = vld [vmem:[%s1 + $0x78] sm:$0xff]
  %v27 = vld [vmem:[%s1 + $0x80] sm:$0xff]
  %v28 = vld [vmem:[%s1 + $0x88] sm:$0xff]
  %v29 = vld [vmem:[%s1 + $0x90] sm:$0xff]
  %v30 = vld [vmem:[%s1 + $0x98] sm:$0xff]
  %v31 = vld [vmem:[%s1 + $0xa0] sm:$0xff]
  %v32 = vld [vmem:[%s1 + $0xa8] sm:$0xff]
  %v33 = vld [vmem:[%s1 + $0xb0] sm:$0xff]
  %v34 = vld [vmem:[%s1 + $0xb8] sm:$0xff]
  %v35 = vld [vmem:[%s1 + $0xc0] sm:$0xff]
  %v36 = vld [vmem:[%s1 + $0xc8] sm:$0xff]
  %v37 = vld [vmem:[%s1 + $0xd0] sm:$0xff]
  %v38 = vld [vmem:[%s1 + $0xd8] sm:$0xff]
  %v39 = vld [vmem:[%s1 + $0xe0] sm:$0xff]
  %v40 = vld [vmem:[%s1 + $0xe8] sm:$0xff]
  %v41 = vld [vmem:[%s1 + $0xf0] sm:$0xff]
  %v42 = vld [vmem:[%s1 + $0xf8] sm:$0xff]
  %v43 = vld [vmem:[%s1 + $0x100] sm:$0xff]
  %v44 = vld [vmem:[%s1 + $0x108] sm:$0xff]
  %v45 = vld [vmem:[%s1 + $0x110] sm:$0xff]
  %v46 = vld [vmem:[%s1 + $0x118] sm:$0xff]
  %v47 = vld [vmem:[%s1 + $0x120] sm:$0xff]
  %v48 = vld [vmem:[%s1 + $0x128] sm:$0xff]
  %v49 = vld [vmem:[%s0] sm:$0xf]
  %51 = vset.pattern.permute.xlu0 0
  %52 = vperm.xlu0 %51, %v11
  %v53 = vpop.permute.xlu0 %52
  %56 = vset.pattern.permute.xlu0 0
  %57 = vperm.xlu0 %56, %v12
  %v58 = vpop.permute.xlu0 %57
  %61 = vset.pattern.permute.xlu0 0
  %62 = vperm.xlu0 %61, %v13
  %v63 = vpop.permute.xlu0 %62
  %66 = vset.pattern.permute.xlu0 0
  %67 = vperm.xlu0 %66, %v14
  %v68 = vpop.permute.xlu0 %67
  %71 = vset.pattern.permute.xlu0 0
  %72 = vperm.xlu0 %71, %v15
  %v73 = vpop.permute.xlu0 %72
  %76 = vset.pattern.permute.xlu0 0
  %77 = vperm.xlu0 %76, %v16
  %v78 = vpop.permute.xlu0 %77
  %81 = vset.pattern.permute.xlu0 0
  %82 = vperm.xlu0 %81, %v17
  %v83 = vpop.permute.xlu0 %82
  %86 = vset.pattern.permute.xlu0 0
  %87 = vperm.xlu0 %86, %v18
  %v88 = vpop.permute.xlu0 %87
  %91 = vset.pattern.permute.xlu0 0
  %92 = vperm.xlu0 %91, %v19
  %v93 = vpop.permute.xlu0 %92
  %96 = vset.pattern.permute.xlu0 0
  %97 = vperm.xlu0 %96, %v20
  %v98 = vpop.permute.xlu0 %97
  %101 = vset.pattern.permute.xlu0 0
  %102 = vperm.xlu0 %101, %v21
  %v103 = vpop.permute.xlu0 %102
  %106 = vset.pattern.permute.xlu0 0
  %107 = vperm.xlu0 %106, %v22
  %v108 = vpop.permute.xlu0 %107
  %111 = vset.pattern.permute.xlu0 0
  %112 = vperm.xlu0 %111, %v23
  %v113 = vpop.permute.xlu0 %112
  %116 = vset.pattern.permute.xlu0 0
  %117 = vperm.xlu0 %116, %v24
  %v118 = vpop.permute.xlu0 %117
  %121 = vset.pattern.permute.xlu0 0
  %122 = vperm.xlu0 %121, %v25
  %v123 = vpop.permute.xlu0 %122
  %126 = vset.pattern.permute.xlu0 0
  %127 = vperm.xlu0 %126, %v26
  %v128 = vpop.permute.xlu0 %127
  %131 = vset.pattern.permute.xlu0 0
  %132 = vperm.xlu0 %131, %v27
  %v133 = vpop.permute.xlu0 %132
  %136 = vset.pattern.permute.xlu0 0
  %137 = vperm.xlu0 %136, %v28
  %v138 = vpop.permute.xlu0 %137
  %141 = vset.pattern.permute.xlu0 0
  %142 = vperm.xlu0 %141, %v29
  %v143 = vpop.permute.xlu0 %142
  %146 = vset.pattern.permute.xlu0 0
  %147 = vperm.xlu0 %146, %v30
  %v148 = vpop.permute.xlu0 %147
  %151 = vset.pattern.permute.xlu0 0
  %152 = vperm.xlu0 %151, %v31
  %v153 = vpop.permute.xlu0 %152
  %156 = vset.pattern.permute.xlu0 0
  %157 = vperm.xlu0 %156, %v32
  %v158 = vpop.permute.xlu0 %157
  %161 = vset.pattern.permute.xlu0 0
  %162 = vperm.xlu0 %161, %v33
  %v163 = vpop.permute.xlu0 %162
  %166 = vset.pattern.permute.xlu0 0
  %167 = vperm.xlu0 %166, %v34
  %v168 = vpop.permute.xlu0 %167
  %171 = vset.pattern.permute.xlu0 0
  %172 = vperm.xlu0 %171, %v35
  %v173 = vpop.permute.xlu0 %172
  %176 = vset.pattern.permute.xlu0 0
  %177 = vperm.xlu0 %176, %v36
  %v178 = vpop.permute.xlu0 %177
  %181 = vset.pattern.permute.xlu0 0
  %182 = vperm.xlu0 %181, %v37
  %v183 = vpop.permute.xlu0 %182
  %186 = vset.pattern.permute.xlu0 0
  %187 = vperm.xlu0 %186, %v38
  %v188 = vpop.permute.xlu0 %187
  %191 = vset.pattern.permute.xlu0 0
  %192 = vperm.xlu0 %191, %v39
  %v193 = vpop.permute.xlu0 %192
  %196 = vset.pattern.permute.xlu0 0
  %197 = vperm.xlu0 %196, %v40
  %v198 = vpop.permute.xlu0 %197
  %201 = vset.pattern.permute.xlu0 0
  %202 = vperm.xlu0 %201, %v41
  %v203 = vpop.permute.xlu0 %202
  %206 = vset.pattern.permute.xlu0 0
  %207 = vperm.xlu0 %206, %v42
  %v208 = vpop.permute.xlu0 %207
  %211 = vset.pattern.permute.xlu0 0
  %212 = vperm.xlu0 %211, %v43
  %v213 = vpop.permute.xlu0 %212
  %216 = vset.pattern.permute.xlu0 0
  %217 = vperm.xlu0 %216, %v44
  %v218 = vpop.permute.xlu0 %217
  %221 = vset.pattern.permute.xlu0 0
  %222 = vperm.xlu0 %221, %v45
  %v223 = vpop.permute.xlu0 %222
  %226 = vset.pattern.permute.xlu0 0
  %227 = vperm.xlu0 %226, %v46
  %v228 = vpop.permute.xlu0 %227
  %231 = vset.pattern.permute.xlu0 0
  %232 = vperm.xlu0 %231, %v47
  %v233 = vpop.permute.xlu0 %232
  %236 = vset.pattern.permute.xlu0 0
  %237 = vperm.xlu0 %236, %v48
  %v238 = vpop.permute.xlu0 %237
  %v240 = vlaneseq
  %v241 = vshrl.u32 %v240, 7
  %v242 = vsub.s32 0, %v241
  %v243 = vrot.slane %v49, %v242
  %v244 = vmul.f32 %v53, %v243
  %v245 = vmul.f32 %v58, %v243
  %v246 = vmul.f32 %v63, %v243
  %v247 = vmul.f32 %v68, %v243
  %v248 = vmul.f32 %v73, %v243
  %v249 = vmul.f32 %v78, %v243
  %v250 = vmul.f32 %v83, %v243
  %v251 = vmul.f32 %v88, %v243
  %v252 = vmul.f32 %v93, %v243
  %v253 = vmul.f32 %v98, %v243
  %v254 = vmul.f32 %v103, %v243
  %v255 = vmul.f32 %v108, %v243
  %v256 = vmul.f32 %v113, %v243
  %v257 = vmul.f32 %v118, %v243
  %v258 = vmul.f32 %v123, %v243
  %v259 = vmul.f32 %v128, %v243
  %v260 = vmul.f32 %v133, %v243
  %v261 = vmul.f32 %v138, %v243
  %v262 = vmul.f32 %v143, %v243
  %v263 = vmul.f32 %v148, %v243
  %v264 = vmul.f32 %v153, %v243
  %v265 = vmul.f32 %v158, %v243
  %v266 = vmul.f32 %v163, %v243
  %v267 = vmul.f32 %v168, %v243
  %v268 = vmul.f32 %v173, %v243
  %v269 = vmul.f32 %v178, %v243
  %v270 = vmul.f32 %v183, %v243
  %v271 = vmul.f32 %v188, %v243
  %v272 = vmul.f32 %v193, %v243
  %v273 = vmul.f32 %v198, %v243
  %v274 = vmul.f32 %v203, %v243
  %v275 = vmul.f32 %v208, %v243
  %v276 = vmul.f32 %v213, %v243
  %v277 = vmul.f32 %v218, %v243
  %v278 = vmul.f32 %v223, %v243
  %v279 = vmul.f32 %v228, %v243
  %v280 = vmul.f32 %v233, %v243
  %v281 = vmul.f32 %v238, %v243
  %282 = vset.pattern.permute.xlu0 1
  %283 = vperm.xlu0 %282, %v11
  %v284 = vpop.permute.xlu0 %283
  %286 = vset.pattern.permute.xlu0 1
  %287 = vperm.xlu0 %286, %v12
  %v288 = vpop.permute.xlu0 %287
  %290 = vset.pattern.permute.xlu0 1
  %291 = vperm.xlu0 %290, %v13
  %v292 = vpop.permute.xlu0 %291
  %294 = vset.pattern.permute.xlu0 1
  %295 = vperm.xlu0 %294, %v14
  %v296 = vpop.permute.xlu0 %295
  %298 = vset.pattern.permute.xlu0 1
  %299 = vperm.xlu0 %298, %v15
  %v300 = vpop.permute.xlu0 %299
  %302 = vset.pattern.permute.xlu0 1
  %303 = vperm.xlu0 %302, %v16
  %v304 = vpop.permute.xlu0 %303
  %306 = vset.pattern.permute.xlu0 1
  %307 = vperm.xlu0 %306, %v17
  %v308 = vpop.permute.xlu0 %307
  %310 = vset.pattern.permute.xlu0 1
  %311 = vperm.xlu0 %310, %v18
  %v312 = vpop.permute.xlu0 %311
  %314 = vset.pattern.permute.xlu0 1
  %315 = vperm.xlu0 %314, %v19
  %v316 = vpop.permute.xlu0 %315
  %318 = vset.pattern.permute.xlu0 1
  %319 = vperm.xlu0 %318, %v20
  %v320 = vpop.permute.xlu0 %319
  %322 = vset.pattern.permute.xlu0 1
  %323 = vperm.xlu0 %322, %v21
  %v324 = vpop.permute.xlu0 %323
  %326 = vset.pattern.permute.xlu0 1
  %327 = vperm.xlu0 %326, %v22
  %v328 = vpop.permute.xlu0 %327
  %330 = vset.pattern.permute.xlu0 1
  %331 = vperm.xlu0 %330, %v23
  %v332 = vpop.permute.xlu0 %331
  %334 = vset.pattern.permute.xlu0 1
  %335 = vperm.xlu0 %334, %v24
  %v336 = vpop.permute.xlu0 %335
  %338 = vset.pattern.permute.xlu0 1
  %339 = vperm.xlu0 %338, %v25
  %v340 = vpop.permute.xlu0 %339
  %342 = vset.pattern.permute.xlu0 1
  %343 = vperm.xlu0 %342, %v26
  %v344 = vpop.permute.xlu0 %343
  %346 = vset.pattern.permute.xlu0 1
  %347 = vperm.xlu0 %346, %v27
  %v348 = vpop.permute.xlu0 %347
  %350 = vset.pattern.permute.xlu0 1
  %351 = vperm.xlu0 %350, %v28
  %v352 = vpop.permute.xlu0 %351
  %354 = vset.pattern.permute.xlu0 1
  %355 = vperm.xlu0 %354, %v29
  %v356 = vpop.permute.xlu0 %355
  %358 = vset.pattern.permute.xlu0 1
  %359 = vperm.xlu0 %358, %v30
  %v360 = vpop.permute.xlu0 %359
  %362 = vset.pattern.permute.xlu0 1
  %363 = vperm.xlu0 %362, %v31
  %v364 = vpop.permute.xlu0 %363
  %366 = vset.pattern.permute.xlu0 1
  %367 = vperm.xlu0 %366, %v32
  %v368 = vpop.permute.xlu0 %367
  %370 = vset.pattern.permute.xlu0 1
  %371 = vperm.xlu0 %370, %v33
  %v372 = vpop.permute.xlu0 %371
  %374 = vset.pattern.permute.xlu0 1
  %375 = vperm.xlu0 %374, %v34
  %v376 = vpop.permute.xlu0 %375
  %378 = vset.pattern.permute.xlu0 1
  %379 = vperm.xlu0 %378, %v35
  %v380 = vpop.permute.xlu0 %379
  %382 = vset.pattern.permute.xlu0 1
  %383 = vperm.xlu0 %382, %v36
  %v384 = vpop.permute.xlu0 %383
  %386 = vset.pattern.permute.xlu0 1
  %387 = vperm.xlu0 %386, %v37
  %v388 = vpop.permute.xlu0 %387
  %390 = vset.pattern.permute.xlu0 1
  %391 = vperm.xlu0 %390, %v38
  %v392 = vpop.permute.xlu0 %391
  %394 = vset.pattern.permute.xlu0 1
  %395 = vperm.xlu0 %394, %v39
  %v396 = vpop.permute.xlu0 %395
  %398 = vset.pattern.permute.xlu0 1
  %399 = vperm.xlu0 %398, %v40
  %v400 = vpop.permute.xlu0 %399
  %402 = vset.pattern.permute.xlu0 1
  %403 = vperm.xlu0 %402, %v41
  %v404 = vpop.permute.xlu0 %403
  %406 = vset.pattern.permute.xlu0 1
  %407 = vperm.xlu0 %406, %v42
  %v408 = vpop.permute.xlu0 %407
  %410 = vset.pattern.permute.xlu0 1
  %411 = vperm.xlu0 %410, %v43
  %v412 = vpop.permute.xlu0 %411
  %414 = vset.pattern.permute.xlu0 1
  %415 = vperm.xlu0 %414, %v44
  %v416 = vpop.permute.xlu0 %415
  %418 = vset.pattern.permute.xlu0 1
  %419 = vperm.xlu0 %418, %v45
  %v420 = vpop.permute.xlu0 %419
  %422 = vset.pattern.permute.xlu0 1
  %423 = vperm.xlu0 %422, %v46
  %v424 = vpop.permute.xlu0 %423
  %426 = vset.pattern.permute.xlu0 1
  %427 = vperm.xlu0 %426, %v47
  %v428 = vpop.permute.xlu0 %427
  %430 = vset.pattern.permute.xlu0 1
  %431 = vperm.xlu0 %430, %v48
  %v432 = vpop.permute.xlu0 %431
  %v434 = vlaneseq
  %v435 = vshrl.u32 %v434, 7
  %v436 = vsub.s32 1, %v435
  %v437 = vrot.slane %v49, %v436
  %v438 = vmul.f32 %v284, %v437
  %v439 = vmul.f32 %v288, %v437
  %v440 = vmul.f32 %v292, %v437
  %v441 = vmul.f32 %v296, %v437
  %v442 = vmul.f32 %v300, %v437
  %v443 = vmul.f32 %v304, %v437
  %v444 = vmul.f32 %v308, %v437
  %v445 = vmul.f32 %v312, %v437
  %v446 = vmul.f32 %v316, %v437
  %v447 = vmul.f32 %v320, %v437
  %v448 = vmul.f32 %v324, %v437
  %v449 = vmul.f32 %v328, %v437
  %v450 = vmul.f32 %v332, %v437
  %v451 = vmul.f32 %v336, %v437
  %v452 = vmul.f32 %v340, %v437
  %v453 = vmul.f32 %v344, %v437
  %v454 = vmul.f32 %v348, %v437
  %v455 = vmul.f32 %v352, %v437
  %v456 = vmul.f32 %v356, %v437
  %v457 = vmul.f32 %v360, %v437
  %v458 = vmul.f32 %v364, %v437
  %v459 = vmul.f32 %v368, %v437
  %v460 = vmul.f32 %v372, %v437
  %v461 = vmul.f32 %v376, %v437
  %v462 = vmul.f32 %v380, %v437
  %v463 = vmul.f32 %v384, %v437
  %v464 = vmul.f32 %v388, %v437
  %v465 = vmul.f32 %v392, %v437
  %v466 = vmul.f32 %v396, %v437
  %v467 = vmul.f32 %v400, %v437
  %v468 = vmul.f32 %v404, %v437
  %v469 = vmul.f32 %v408, %v437
  %v470 = vmul.f32 %v412, %v437
  %v471 = vmul.f32 %v416, %v437
  %v472 = vmul.f32 %v420, %v437
  %v473 = vmul.f32 %v424, %v437
  %v474 = vmul.f32 %v428, %v437
  %v475 = vmul.f32 %v432, %v437
  %v476 = vadd.f32 %v244, %v438
  %v477 = vadd.f32 %v245, %v439
  %v478 = vadd.f32 %v246, %v440
  %v479 = vadd.f32 %v247, %v441
  %v480 = vadd.f32 %v248, %v442
  %v481 = vadd.f32 %v249, %v443
  %v482 = vadd.f32 %v250, %v444
  %v483 = vadd.f32 %v251, %v445
  %v484 = vadd.f32 %v252, %v446
  %v485 = vadd.f32 %v253, %v447
  %v486 = vadd.f32 %v254, %v448
  %v487 = vadd.f32 %v255, %v449
  %v488 = vadd.f32 %v256, %v450
  %v489 = vadd.f32 %v257, %v451
  %v490 = vadd.f32 %v258, %v452
  %v491 = vadd.f32 %v259, %v453
  %v492 = vadd.f32 %v260, %v454
  %v493 = vadd.f32 %v261, %v455
  %v494 = vadd.f32 %v262, %v456
  %v495 = vadd.f32 %v263, %v457
  %v496 = vadd.f32 %v264, %v458
  %v497 = vadd.f32 %v265, %v459
  %v498 = vadd.f32 %v266, %v460
  %v499 = vadd.f32 %v267, %v461
  %v500 = vadd.f32 %v268, %v462
  %v501 = vadd.f32 %v269, %v463
  %v502 = vadd.f32 %v270, %v464
  %v503 = vadd.f32 %v271, %v465
  %v504 = vadd.f32 %v272, %v466
  %v505 = vadd.f32 %v273, %v467
  %v506 = vadd.f32 %v274, %v468
  %v507 = vadd.f32 %v275, %v469
  %v508 = vadd.f32 %v276, %v470
  %v509 = vadd.f32 %v277, %v471
  %v510 = vadd.f32 %v278, %v472
  %v511 = vadd.f32 %v279, %v473
  %v512 = vadd.f32 %v280, %v474
  %v513 = vadd.f32 %v281, %v475
  %514 = vset.pattern.permute.xlu0 2
  %515 = vperm.xlu0 %514, %v11
  %v516 = vpop.permute.xlu0 %515
  %518 = vset.pattern.permute.xlu0 2
  %519 = vperm.xlu0 %518, %v12
  %v520 = vpop.permute.xlu0 %519
  %522 = vset.pattern.permute.xlu0 2
  %523 = vperm.xlu0 %522, %v13
  %v524 = vpop.permute.xlu0 %523
  %526 = vset.pattern.permute.xlu0 2
  %527 = vperm.xlu0 %526, %v14
  %v528 = vpop.permute.xlu0 %527
  %530 = vset.pattern.permute.xlu0 2
  %531 = vperm.xlu0 %530, %v15
  %v532 = vpop.permute.xlu0 %531
  %534 = vset.pattern.permute.xlu0 2
  %535 = vperm.xlu0 %534, %v16
  %v536 = vpop.permute.xlu0 %535
  %538 = vset.pattern.permute.xlu0 2
  %539 = vperm.xlu0 %538, %v17
  %v540 = vpop.permute.xlu0 %539
  %542 = vset.pattern.permute.xlu0 2
  %543 = vperm.xlu0 %542, %v18
  %v544 = vpop.permute.xlu0 %543
  %546 = vset.pattern.permute.xlu0 2
  %547 = vperm.xlu0 %546, %v19
  %v548 = vpop.permute.xlu0 %547
  %550 = vset.pattern.permute.xlu0 2
  %551 = vperm.xlu0 %550, %v20
  %v552 = vpop.permute.xlu0 %551
  %554 = vset.pattern.permute.xlu0 2
  %555 = vperm.xlu0 %554, %v21
  %v556 = vpop.permute.xlu0 %555
  %558 = vset.pattern.permute.xlu0 2
  %559 = vperm.xlu0 %558, %v22
  %v560 = vpop.permute.xlu0 %559
  %562 = vset.pattern.permute.xlu0 2
  %563 = vperm.xlu0 %562, %v23
  %v564 = vpop.permute.xlu0 %563
  %566 = vset.pattern.permute.xlu0 2
  %567 = vperm.xlu0 %566, %v24
  %v568 = vpop.permute.xlu0 %567
  %570 = vset.pattern.permute.xlu0 2
  %571 = vperm.xlu0 %570, %v25
  %v572 = vpop.permute.xlu0 %571
  %574 = vset.pattern.permute.xlu0 2
  %575 = vperm.xlu0 %574, %v26
  %v576 = vpop.permute.xlu0 %575
  %578 = vset.pattern.permute.xlu0 2
  %579 = vperm.xlu0 %578, %v27
  %v580 = vpop.permute.xlu0 %579
  %582 = vset.pattern.permute.xlu0 2
  %583 = vperm.xlu0 %582, %v28
  %v584 = vpop.permute.xlu0 %583
  %586 = vset.pattern.permute.xlu0 2
  %587 = vperm.xlu0 %586, %v29
  %v588 = vpop.permute.xlu0 %587
  %590 = vset.pattern.permute.xlu0 2
  %591 = vperm.xlu0 %590, %v30
  %v592 = vpop.permute.xlu0 %591
  %594 = vset.pattern.permute.xlu0 2
  %595 = vperm.xlu0 %594, %v31
  %v596 = vpop.permute.xlu0 %595
  %598 = vset.pattern.permute.xlu0 2
  %599 = vperm.xlu0 %598, %v32
  %v600 = vpop.permute.xlu0 %599
  %602 = vset.pattern.permute.xlu0 2
  %603 = vperm.xlu0 %602, %v33
  %v604 = vpop.permute.xlu0 %603
  %606 = vset.pattern.permute.xlu0 2
  %607 = vperm.xlu0 %606, %v34
  %v608 = vpop.permute.xlu0 %607
  %610 = vset.pattern.permute.xlu0 2
  %611 = vperm.xlu0 %610, %v35
  %v612 = vpop.permute.xlu0 %611
  %614 = vset.pattern.permute.xlu0 2
  %615 = vperm.xlu0 %614, %v36
  %v616 = vpop.permute.xlu0 %615
  %618 = vset.pattern.permute.xlu0 2
  %619 = vperm.xlu0 %618, %v37
  %v620 = vpop.permute.xlu0 %619
  %622 = vset.pattern.permute.xlu0 2
  %623 = vperm.xlu0 %622, %v38
  %v624 = vpop.permute.xlu0 %623
  %626 = vset.pattern.permute.xlu0 2
  %627 = vperm.xlu0 %626, %v39
  %v628 = vpop.permute.xlu0 %627
  %630 = vset.pattern.permute.xlu0 2
  %631 = vperm.xlu0 %630, %v40
  %v632 = vpop.permute.xlu0 %631
  %634 = vset.pattern.permute.xlu0 2
  %635 = vperm.xlu0 %634, %v41
  %v636 = vpop.permute.xlu0 %635
  %638 = vset.pattern.permute.xlu0 2
  %639 = vperm.xlu0 %638, %v42
  %v640 = vpop.permute.xlu0 %639
  %642 = vset.pattern.permute.xlu0 2
  %643 = vperm.xlu0 %642, %v43
  %v644 = vpop.permute.xlu0 %643
  %646 = vset.pattern.permute.xlu0 2
  %647 = vperm.xlu0 %646, %v44
  %v648 = vpop.permute.xlu0 %647
  %650 = vset.pattern.permute.xlu0 2
  %651 = vperm.xlu0 %650, %v45
  %v652 = vpop.permute.xlu0 %651
  %654 = vset.pattern.permute.xlu0 2
  %655 = vperm.xlu0 %654, %v46
  %v656 = vpop.permute.xlu0 %655
  %658 = vset.pattern.permute.xlu0 2
  %659 = vperm.xlu0 %658, %v47
  %v660 = vpop.permute.xlu0 %659
  %662 = vset.pattern.permute.xlu0 2
  %663 = vperm.xlu0 %662, %v48
  %v664 = vpop.permute.xlu0 %663
  %v666 = vlaneseq
  %v667 = vshrl.u32 %v666, 7
  %v668 = vsub.s32 2, %v667
  %v669 = vrot.slane %v49, %v668
  %v670 = vmul.f32 %v516, %v669
  %v671 = vmul.f32 %v520, %v669
  %v672 = vmul.f32 %v524, %v669
  %v673 = vmul.f32 %v528, %v669
  %v674 = vmul.f32 %v532, %v669
  %v675 = vmul.f32 %v536, %v669
  %v676 = vmul.f32 %v540, %v669
  %v677 = vmul.f32 %v544, %v669
  %v678 = vmul.f32 %v548, %v669
  %v679 = vmul.f32 %v552, %v669
  %v680 = vmul.f32 %v556, %v669
  %v681 = vmul.f32 %v560, %v669
  %v682 = vmul.f32 %v564, %v669
  %v683 = vmul.f32 %v568, %v669
  %v684 = vmul.f32 %v572, %v669
  %v685 = vmul.f32 %v576, %v669
  %v686 = vmul.f32 %v580, %v669
  %v687 = vmul.f32 %v584, %v669
  %v688 = vmul.f32 %v588, %v669
  %v689 = vmul.f32 %v592, %v669
  %v690 = vmul.f32 %v596, %v669
  %v691 = vmul.f32 %v600, %v669
  %v692 = vmul.f32 %v604, %v669
  %v693 = vmul.f32 %v608, %v669
  %v694 = vmul.f32 %v612, %v669
  %v695 = vmul.f32 %v616, %v669
  %v696 = vmul.f32 %v620, %v669
  %v697 = vmul.f32 %v624, %v669
  %v698 = vmul.f32 %v628, %v669
  %v699 = vmul.f32 %v632, %v669
  %v700 = vmul.f32 %v636, %v669
  %v701 = vmul.f32 %v640, %v669
  %v702 = vmul.f32 %v644, %v669
  %v703 = vmul.f32 %v648, %v669
  %v704 = vmul.f32 %v652, %v669
  %v705 = vmul.f32 %v656, %v669
  %v706 = vmul.f32 %v660, %v669
  %v707 = vmul.f32 %v664, %v669
  %v708 = vadd.f32 %v476, %v670
  %v709 = vadd.f32 %v477, %v671
  %v710 = vadd.f32 %v478, %v672
  %v711 = vadd.f32 %v479, %v673
  %v712 = vadd.f32 %v480, %v674
  %v713 = vadd.f32 %v481, %v675
  %v714 = vadd.f32 %v482, %v676
  %v715 = vadd.f32 %v483, %v677
  %v716 = vadd.f32 %v484, %v678
  %v717 = vadd.f32 %v485, %v679
  %v718 = vadd.f32 %v486, %v680
  %v719 = vadd.f32 %v487, %v681
  %v720 = vadd.f32 %v488, %v682
  %v721 = vadd.f32 %v489, %v683
  %v722 = vadd.f32 %v490, %v684
  %v723 = vadd.f32 %v491, %v685
  %v724 = vadd.f32 %v492, %v686
  %v725 = vadd.f32 %v493, %v687
  %v726 = vadd.f32 %v494, %v688
  %v727 = vadd.f32 %v495, %v689
  %v728 = vadd.f32 %v496, %v690
  %v729 = vadd.f32 %v497, %v691
  %v730 = vadd.f32 %v498, %v692
  %v731 = vadd.f32 %v499, %v693
  %v732 = vadd.f32 %v500, %v694
  %v733 = vadd.f32 %v501, %v695
  %v734 = vadd.f32 %v502, %v696
  %v735 = vadd.f32 %v503, %v697
  %v736 = vadd.f32 %v504, %v698
  %v737 = vadd.f32 %v505, %v699
  %v738 = vadd.f32 %v506, %v700
  %v739 = vadd.f32 %v507, %v701
  %v740 = vadd.f32 %v508, %v702
  %v741 = vadd.f32 %v509, %v703
  %v742 = vadd.f32 %v510, %v704
  %v743 = vadd.f32 %v511, %v705
  %v744 = vadd.f32 %v512, %v706
  %v745 = vadd.f32 %v513, %v707
  %v746 = vlaneseq
  %v747 = vshrl.u32 %v746, 7
  %v748 = vsub.s32 3, %v747
  %v749 = vrot.slane %v49, %v748
  %v750 = vadd.f32 %v708, %v749
  %v751 = vadd.f32 %v709, %v749
  %v752 = vadd.f32 %v710, %v749
  %v753 = vadd.f32 %v711, %v749
  %v754 = vadd.f32 %v712, %v749
  %v755 = vadd.f32 %v713, %v749
  %v756 = vadd.f32 %v714, %v749
  %v757 = vadd.f32 %v715, %v749
  %v758 = vadd.f32 %v716, %v749
  %v759 = vadd.f32 %v717, %v749
  %v760 = vadd.f32 %v718, %v749
  %v761 = vadd.f32 %v719, %v749
  %v762 = vadd.f32 %v720, %v749
  %v763 = vadd.f32 %v721, %v749
  %v764 = vadd.f32 %v722, %v749
  %v765 = vadd.f32 %v723, %v749
  %v766 = vadd.f32 %v724, %v749
  %v767 = vadd.f32 %v725, %v749
  %v768 = vadd.f32 %v726, %v749
  %v769 = vadd.f32 %v727, %v749
  %v770 = vadd.f32 %v728, %v749
  %v771 = vadd.f32 %v729, %v749
  %v772 = vadd.f32 %v730, %v749
  %v773 = vadd.f32 %v731, %v749
  %v774 = vadd.f32 %v732, %v749
  %v775 = vadd.f32 %v733, %v749
  %v776 = vadd.f32 %v734, %v749
  %v777 = vadd.f32 %v735, %v749
  %v778 = vadd.f32 %v736, %v749
  %v779 = vadd.f32 %v737, %v749
  %v780 = vadd.f32 %v738, %v749
  %v781 = vadd.f32 %v739, %v749
  %v782 = vadd.f32 %v740, %v749
  %v783 = vadd.f32 %v741, %v749
  %v784 = vadd.f32 %v742, %v749
  %v785 = vadd.f32 %v743, %v749
  %v786 = vadd.f32 %v744, %v749
  %v787 = vadd.f32 %v745, %v749
  %v788 = vand.u32 2147483647, %v750
  %vm789 = vcmp.le.f32.partialorder %v788, 0.7853982
  %vm790 = vcmp.lt.s32.totalorder %v750, 0
  %v791 = vand.u32 %v750, 2139095040
  %v792 = vshrl.u32 %v791, 23
  %v793 = vsub.s32 %v792, 127
  %v794 = vand.u32 2147483647, %v750
  %v795 = vand.u32 %v794, 8388607
  %v796 = vor.u32 %v795, 8388608
  %v797 = vsub.s32 0, %v796
  %v798 = vadd.s32 %v793, 1
  %vm799 = vcmp.gt.s32.totalorder %v798, 0
  %v800 = vsel %vm799, %v798, 0
  %v801 = vshrl.u32 %v800, 5
  %v802 = vand.u32 %v800, 31
  %v803 = vsub.s32 32, %v802
  %v804 = vshrl.u32 683565275, %v803
  %v805 = vshll.u32 683565275, %v802
  %v806 = vshrl.u32 2475754826, %v803
  %v807 = vor.u32 %v805, %v806
  %v808 = vshll.u32 2475754826, %v802
  %v809 = vshrl.u32 2131351028, %v803
  %v810 = vor.u32 %v808, %v809
  %v811 = vshll.u32 2131351028, %v802
  %v812 = vshrl.u32 2102212464, %v803
  %v813 = vor.u32 %v811, %v812
  %v814 = vshll.u32 2102212464, %v802
  %v815 = vshrl.u32 920167782, %v803
  %v816 = vor.u32 %v814, %v815
  %v817 = vshll.u32 920167782, %v802
  %v818 = vshrl.u32 1326507024, %v803
  %v819 = vor.u32 %v817, %v818
  %vm820 = vcmp.lt.s32.totalorder %v801, 1
  %vm821 = vcmp.lt.s32.totalorder %v801, 2
  %vm822 = vcmp.lt.s32.totalorder %v801, 3
  %vm823 = vcmp.lt.s32.totalorder %v801, 4
  %v824 = vsel %vm820, %v804, %v807
  %v825 = vsel %vm823, %v813, 2102212464
  %v826 = vsel %vm822, %v810, %v825
  %v827 = vsel %vm821, %v824, %v826
  %v828 = vsel %vm820, %v807, %v810
  %v829 = vsel %vm823, %v816, 920167782
  %v830 = vsel %vm822, %v813, %v829
  %v831 = vsel %vm821, %v828, %v830
  %v832 = vsel %vm820, %v810, %v813
  %v833 = vsel %vm823, %v819, 1326507024
  %v834 = vsel %vm822, %v816, %v833
  %v835 = vsel %vm821, %v832, %v834
  %v836 = vshll.u32 %v796, 8
  %v837 = vmul.u32.u64.compose %v836, %v835
  %v838 = vextract.low.u32 %v837
  %v839 = vextract.high.u32 %v837
  %v840 = vmul.u32.u64.compose %v836, %v831
  %v841 = vextract.low.u32 %v840
  %v842 = vextract.high.u32 %v840
  %v843 = vmul.u32 %v836, %v827
  %v844 = vadd.s32 %v839, %v841
  %vm845 = vc.u32 %v839, %v841
  %v846 = vadd.s32 %v842, 1
  %v847 = vsel %vm845, %v846, %v842
  %v848 = vadd.s32 %v843, %v847
  %v849 = vadd.s32 %v848, 536870912
  %v850 = vshrl.u32 %v849, 30
  %v851 = vshll.u32 %v850, 30
  %v852 = vsub.s32 %v848, %v851
  %vm853 = vcmp.lt.s32.totalorder %v852, 0
  %v854 = vsub.s32 0, %v852
  %v855 = vsel %vm853, %v854, %v852
  %v856 = vclz %v855
  %v857 = vsub.s32 %v856, 2
  %vm858 = vcmp.gt.s32.totalorder 0, %v857
  %v859 = vsel %vm858, 0, %v857
  %v860 = vsub.s32 32, %v859
  %v861 = vshll.u32 %v852, %v859
  %v862 = vshrl.u32 %v844, %v860
  %v863 = vor.u32 %v861, %v862
  %v864 = vsub.s32 4294967266, %v859
  %v865 = vadd.s32 %v864, 127
  %v866 = vshll.u32 %v865, 23
  %v867 = vor.u32 4788187, %v866
  %v868 = vand.u32 2147483647, %v867
  %v870 = vcvt.s32.f32 %v863
  %v871 = vmul.f32 %v870, %v868
  %v872 = vxor.u32 %v871, 2147483648
  %v873 = vsel %vm790, %v872, %v871
  %v874 = vsub.s32 4, %v850
  %v875 = vsel %vm790, %v874, %v850
  %v876 = vsel %vm789, %v750, %v873
  %v877 = vsel %vm789, 0, %v875
  %v878 = vcosq.f32.pop %v876
  %v879 = vsinq.f32.pop %v876
  %vm880 = vweird.f32 %v750
  %v881 = vadd.s32 %v877, 3
  %v882 = vand.u32 %v881, 3
  %vm883 = vcmp.lt.s32.totalorder %v882, 2
  %vm884 = vcmp.eq.s32.totalorder %v882, 0
  %v885 = vxor.u32 %v879, 2147483648
  %v886 = vsel %vm884, %v878, %v885
  %vm887 = vcmp.eq.s32.totalorder %v882, 2
  %v888 = vxor.u32 %v878, 2147483648
  %v889 = vsel %vm887, %v888, %v879
  %v890 = vsel %vm883, %v886, %v889
  %v891 = vsel %vm880, nan, %v890
  %v892 = vand.u32 2147483647, %v751
  %vm893 = vcmp.le.f32.partialorder %v892, 0.7853982
  %vm894 = vcmp.lt.s32.totalorder %v751, 0
  %v895 = vand.u32 %v751, 2139095040
  %v896 = vshrl.u32 %v895, 23
  %v897 = vsub.s32 %v896, 127
  %v898 = vand.u32 2147483647, %v751
  %v899 = vand.u32 %v898, 8388607
  %v900 = vor.u32 %v899, 8388608
  %v901 = vsub.s32 0, %v900
  %v902 = vadd.s32 %v897, 1
  %vm903 = vcmp.gt.s32.totalorder %v902, 0
  %v904 = vsel %vm903, %v902, 0
  %v905 = vshrl.u32 %v904, 5
  %v906 = vand.u32 %v904, 31
  %v907 = vsub.s32 32, %v906
  %v908 = vshrl.u32 683565275, %v907
  %v909 = vshll.u32 683565275, %v906
  %v910 = vshrl.u32 2475754826, %v907
  %v911 = vor.u32 %v909, %v910
  %v912 = vshll.u32 2475754826, %v906
  %v913 = vshrl.u32 2131351028, %v907
  %v914 = vor.u32 %v912, %v913
  %v915 = vshll.u32 2131351028, %v906
  %v916 = vshrl.u32 2102212464, %v907
  %v917 = vor.u32 %v915, %v916
  %v918 = vshll.u32 2102212464, %v906
  %v919 = vshrl.u32 920167782, %v907
  %v920 = vor.u32 %v918, %v919
  %v921 = vshll.u32 920167782, %v906
  %v922 = vshrl.u32 1326507024, %v907
  %v923 = vor.u32 %v921, %v922
  %vm924 = vcmp.lt.s32.totalorder %v905, 1
  %vm925 = vcmp.lt.s32.totalorder %v905, 2
  %vm926 = vcmp.lt.s32.totalorder %v905, 3
  %vm927 = vcmp.lt.s32.totalorder %v905, 4
  %v928 = vsel %vm924, %v908, %v911
  %v929 = vsel %vm927, %v917, 2102212464
  %v930 = vsel %vm926, %v914, %v929
  %v931 = vsel %vm925, %v928, %v930
  %v932 = vsel %vm924, %v911, %v914
  %v933 = vsel %vm927, %v920, 920167782
  %v934 = vsel %vm926, %v917, %v933
  %v935 = vsel %vm925, %v932, %v934
  %v936 = vsel %vm924, %v914, %v917
  %v937 = vsel %vm927, %v923, 1326507024
  %v938 = vsel %vm926, %v920, %v937
  %v939 = vsel %vm925, %v936, %v938
  %v940 = vshll.u32 %v900, 8
  %v941 = vmul.u32.u64.compose %v940, %v939
  %v942 = vextract.low.u32 %v941
  %v943 = vextract.high.u32 %v941
  %v944 = vmul.u32.u64.compose %v940, %v935
  %v945 = vextract.low.u32 %v944
  %v946 = vextract.high.u32 %v944
  %v947 = vmul.u32 %v940, %v931
  %v948 = vadd.s32 %v943, %v945
  %vm949 = vc.u32 %v943, %v945
  %v950 = vadd.s32 %v946, 1
  %v951 = vsel %vm949, %v950, %v946
  %v952 = vadd.s32 %v947, %v951
  %v953 = vadd.s32 %v952, 536870912
  %v954 = vshrl.u32 %v953, 30
  %v955 = vshll.u32 %v954, 30
  %v956 = vsub.s32 %v952, %v955
  %vm957 = vcmp.lt.s32.totalorder %v956, 0
  %v958 = vsub.s32 0, %v956
  %v959 = vsel %vm957, %v958, %v956
  %v960 = vclz %v959
  %v961 = vsub.s32 %v960, 2
  %vm962 = vcmp.gt.s32.totalorder 0, %v961
  %v963 = vsel %vm962, 0, %v961
  %v964 = vsub.s32 32, %v963
  %v965 = vshll.u32 %v956, %v963
  %v966 = vshrl.u32 %v948, %v964
  %v967 = vor.u32 %v965, %v966
  %v968 = vsub.s32 4294967266, %v963
  %v969 = vadd.s32 %v968, 127
  %v970 = vshll.u32 %v969, 23
  %v971 = vor.u32 4788187, %v970
  %v972 = vand.u32 2147483647, %v971
  %v974 = vcvt.s32.f32 %v967
  %v975 = vmul.f32 %v974, %v972
  %v976 = vxor.u32 %v975, 2147483648
  %v977 = vsel %vm894, %v976, %v975
  %v978 = vsub.s32 4, %v954
  %v979 = vsel %vm894, %v978, %v954
  %v980 = vsel %vm893, %v751, %v977
  %v981 = vsel %vm893, 0, %v979
  %v982 = vcosq.f32.pop %v980
  %v983 = vsinq.f32.pop %v980
  %vm984 = vweird.f32 %v751
  %v985 = vadd.s32 %v981, 3
  %v986 = vand.u32 %v985, 3
  %vm987 = vcmp.lt.s32.totalorder %v986, 2
  %vm988 = vcmp.eq.s32.totalorder %v986, 0
  %v989 = vxor.u32 %v983, 2147483648
  %v990 = vsel %vm988, %v982, %v989
  %vm991 = vcmp.eq.s32.totalorder %v986, 2
  %v992 = vxor.u32 %v982, 2147483648
  %v993 = vsel %vm991, %v992, %v983
  %v994 = vsel %vm987, %v990, %v993
  %v995 = vsel %vm984, nan, %v994
  %v996 = vand.u32 2147483647, %v752
  %vm997 = vcmp.le.f32.partialorder %v996, 0.7853982
  %vm998 = vcmp.lt.s32.totalorder %v752, 0
  %v999 = vand.u32 %v752, 2139095040
  %v1000 = vshrl.u32 %v999, 23
  %v1001 = vsub.s32 %v1000, 127
  %v1002 = vand.u32 2147483647, %v752
  %v1003 = vand.u32 %v1002, 8388607
  %v1004 = vor.u32 %v1003, 8388608
  %v1005 = vsub.s32 0, %v1004
  %v1006 = vadd.s32 %v1001, 1
  %vm1007 = vcmp.gt.s32.totalorder %v1006, 0
  %v1008 = vsel %vm1007, %v1006, 0
  %v1009 = vshrl.u32 %v1008, 5
  %v1010 = vand.u32 %v1008, 31
  %v1011 = vsub.s32 32, %v1010
  %v1012 = vshrl.u32 683565275, %v1011
  %v1013 = vshll.u32 683565275, %v1010
  %v1014 = vshrl.u32 2475754826, %v1011
  %v1015 = vor.u32 %v1013, %v1014
  %v1016 = vshll.u32 2475754826, %v1010
  %v1017 = vshrl.u32 2131351028, %v1011
  %v1018 = vor.u32 %v1016, %v1017
  %v1019 = vshll.u32 2131351028, %v1010
  %v1020 = vshrl.u32 2102212464, %v1011
  %v1021 = vor.u32 %v1019, %v1020
  %v1022 = vshll.u32 2102212464, %v1010
  %v1023 = vshrl.u32 920167782, %v1011
  %v1024 = vor.u32 %v1022, %v1023
  %v1025 = vshll.u32 920167782, %v1010
  %v1026 = vshrl.u32 1326507024, %v1011
  %v1027 = vor.u32 %v1025, %v1026
  %vm1028 = vcmp.lt.s32.totalorder %v1009, 1
  %vm1029 = vcmp.lt.s32.totalorder %v1009, 2
  %vm1030 = vcmp.lt.s32.totalorder %v1009, 3
  %vm1031 = vcmp.lt.s32.totalorder %v1009, 4
  %v1032 = vsel %vm1028, %v1012, %v1015
  %v1033 = vsel %vm1031, %v1021, 2102212464
  %v1034 = vsel %vm1030, %v1018, %v1033
  %v1035 = vsel %vm1029, %v1032, %v1034
  %v1036 = vsel %vm1028, %v1015, %v1018
  %v1037 = vsel %vm1031, %v1024, 920167782
  %v1038 = vsel %vm1030, %v1021, %v1037
  %v1039 = vsel %vm1029, %v1036, %v1038
  %v1040 = vsel %vm1028, %v1018, %v1021
  %v1041 = vsel %vm1031, %v1027, 1326507024
  %v1042 = vsel %vm1030, %v1024, %v1041
  %v1043 = vsel %vm1029, %v1040, %v1042
  %v1044 = vshll.u32 %v1004, 8
  %v1045 = vmul.u32.u64.compose %v1044, %v1043
  %v1046 = vextract.low.u32 %v1045
  %v1047 = vextract.high.u32 %v1045
  %v1048 = vmul.u32.u64.compose %v1044, %v1039
  %v1049 = vextract.low.u32 %v1048
  %v1050 = vextract.high.u32 %v1048
  %v1051 = vmul.u32 %v1044, %v1035
  %v1052 = vadd.s32 %v1047, %v1049
  %vm1053 = vc.u32 %v1047, %v1049
  %v1054 = vadd.s32 %v1050, 1
  %v1055 = vsel %vm1053, %v1054, %v1050
  %v1056 = vadd.s32 %v1051, %v1055
  %v1057 = vadd.s32 %v1056, 536870912
  %v1058 = vshrl.u32 %v1057, 30
  %v1059 = vshll.u32 %v1058, 30
  %v1060 = vsub.s32 %v1056, %v1059
  %vm1061 = vcmp.lt.s32.totalorder %v1060, 0
  %v1062 = vsub.s32 0, %v1060
  %v1063 = vsel %vm1061, %v1062, %v1060
  %v1064 = vclz %v1063
  %v1065 = vsub.s32 %v1064, 2
  %vm1066 = vcmp.gt.s32.totalorder 0, %v1065
  %v1067 = vsel %vm1066, 0, %v1065
  %v1068 = vsub.s32 32, %v1067
  %v1069 = vshll.u32 %v1060, %v1067
  %v1070 = vshrl.u32 %v1052, %v1068
  %v1071 = vor.u32 %v1069, %v1070
  %v1072 = vsub.s32 4294967266, %v1067
  %v1073 = vadd.s32 %v1072, 127
  %v1074 = vshll.u32 %v1073, 23
  %v1075 = vor.u32 4788187, %v1074
  %v1076 = vand.u32 2147483647, %v1075
  %v1078 = vcvt.s32.f32 %v1071
  %v1079 = vmul.f32 %v1078, %v1076
  %v1080 = vxor.u32 %v1079, 2147483648
  %v1081 = vsel %vm998, %v1080, %v1079
  %v1082 = vsub.s32 4, %v1058
  %v1083 = vsel %vm998, %v1082, %v1058
  %v1084 = vsel %vm997, %v752, %v1081
  %v1085 = vsel %vm997, 0, %v1083
  %v1086 = vcosq.f32.pop %v1084
  %v1087 = vsinq.f32.pop %v1084
  %vm1088 = vweird.f32 %v752
  %v1089 = vadd.s32 %v1085, 3
  %v1090 = vand.u32 %v1089, 3
  %vm1091 = vcmp.lt.s32.totalorder %v1090, 2
  %vm1092 = vcmp.eq.s32.totalorder %v1090, 0
  %v1093 = vxor.u32 %v1087, 2147483648
  %v1094 = vsel %vm1092, %v1086, %v1093
  %vm1095 = vcmp.eq.s32.totalorder %v1090, 2
  %v1096 = vxor.u32 %v1086, 2147483648
  %v1097 = vsel %vm1095, %v1096, %v1087
  %v1098 = vsel %vm1091, %v1094, %v1097
  %v1099 = vsel %vm1088, nan, %v1098
  %v1100 = vand.u32 2147483647, %v753
  %vm1101 = vcmp.le.f32.partialorder %v1100, 0.7853982
  %vm1102 = vcmp.lt.s32.totalorder %v753, 0
  %v1103 = vand.u32 %v753, 2139095040
  %v1104 = vshrl.u32 %v1103, 23
  %v1105 = vsub.s32 %v1104, 127
  %v1106 = vand.u32 2147483647, %v753
  %v1107 = vand.u32 %v1106, 8388607
  %v1108 = vor.u32 %v1107, 8388608
  %v1109 = vsub.s32 0, %v1108
  %v1110 = vadd.s32 %v1105, 1
  %vm1111 = vcmp.gt.s32.totalorder %v1110, 0
  %v1112 = vsel %vm1111, %v1110, 0
  %v1113 = vshrl.u32 %v1112, 5
  %v1114 = vand.u32 %v1112, 31
  %v1115 = vsub.s32 32, %v1114
  %v1116 = vshrl.u32 683565275, %v1115
  %v1117 = vshll.u32 683565275, %v1114
  %v1118 = vshrl.u32 2475754826, %v1115
  %v1119 = vor.u32 %v1117, %v1118
  %v1120 = vshll.u32 2475754826, %v1114
  %v1121 = vshrl.u32 2131351028, %v1115
  %v1122 = vor.u32 %v1120, %v1121
  %v1123 = vshll.u32 2131351028, %v1114
  %v1124 = vshrl.u32 2102212464, %v1115
  %v1125 = vor.u32 %v1123, %v1124
  %v1126 = vshll.u32 2102212464, %v1114
  %v1127 = vshrl.u32 920167782, %v1115
  %v1128 = vor.u32 %v1126, %v1127
  %v1129 = vshll.u32 920167782, %v1114
  %v1130 = vshrl.u32 1326507024, %v1115
  %v1131 = vor.u32 %v1129, %v1130
  %vm1132 = vcmp.lt.s32.totalorder %v1113, 1
  %vm1133 = vcmp.lt.s32.totalorder %v1113, 2
  %vm1134 = vcmp.lt.s32.totalorder %v1113, 3
  %vm1135 = vcmp.lt.s32.totalorder %v1113, 4
  %v1136 = vsel %vm1132, %v1116, %v1119
  %v1137 = vsel %vm1135, %v1125, 2102212464
  %v1138 = vsel %vm1134, %v1122, %v1137
  %v1139 = vsel %vm1133, %v1136, %v1138
  %v1140 = vsel %vm1132, %v1119, %v1122
  %v1141 = vsel %vm1135, %v1128, 920167782
  %v1142 = vsel %vm1134, %v1125, %v1141
  %v1143 = vsel %vm1133, %v1140, %v1142
  %v1144 = vsel %vm1132, %v1122, %v1125
  %v1145 = vsel %vm1135, %v1131, 1326507024
  %v1146 = vsel %vm1134, %v1128, %v1145
  %v1147 = vsel %vm1133, %v1144, %v1146
  %v1148 = vshll.u32 %v1108, 8
  %v1149 = vmul.u32.u64.compose %v1148, %v1147
  %v1150 = vextract.low.u32 %v1149
  %v1151 = vextract.high.u32 %v1149
  %v1152 = vmul.u32.u64.compose %v1148, %v1143
  %v1153 = vextract.low.u32 %v1152
  %v1154 = vextract.high.u32 %v1152
  %v1155 = vmul.u32 %v1148, %v1139
  %v1156 = vadd.s32 %v1151, %v1153
  %vm1157 = vc.u32 %v1151, %v1153
  %v1158 = vadd.s32 %v1154, 1
  %v1159 = vsel %vm1157, %v1158, %v1154
  %v1160 = vadd.s32 %v1155, %v1159
  %v1161 = vadd.s32 %v1160, 536870912
  %v1162 = vshrl.u32 %v1161, 30
  %v1163 = vshll.u32 %v1162, 30
  %v1164 = vsub.s32 %v1160, %v1163
  %vm1165 = vcmp.lt.s32.totalorder %v1164, 0
  %v1166 = vsub.s32 0, %v1164
  %v1167 = vsel %vm1165, %v1166, %v1164
  %v1168 = vclz %v1167
  %v1169 = vsub.s32 %v1168, 2
  %vm1170 = vcmp.gt.s32.totalorder 0, %v1169
  %v1171 = vsel %vm1170, 0, %v1169
  %v1172 = vsub.s32 32, %v1171
  %v1173 = vshll.u32 %v1164, %v1171
  %v1174 = vshrl.u32 %v1156, %v1172
  %v1175 = vor.u32 %v1173, %v1174
  %v1176 = vsub.s32 4294967266, %v1171
  %v1177 = vadd.s32 %v1176, 127
  %v1178 = vshll.u32 %v1177, 23
  %v1179 = vor.u32 4788187, %v1178
  %v1180 = vand.u32 2147483647, %v1179
  %v1182 = vcvt.s32.f32 %v1175
  %v1183 = vmul.f32 %v1182, %v1180
  %v1184 = vxor.u32 %v1183, 2147483648
  %v1185 = vsel %vm1102, %v1184, %v1183
  %v1186 = vsub.s32 4, %v1162
  %v1187 = vsel %vm1102, %v1186, %v1162
  %v1188 = vsel %vm1101, %v753, %v1185
  %v1189 = vsel %vm1101, 0, %v1187
  %v1190 = vcosq.f32.pop %v1188
  %v1191 = vsinq.f32.pop %v1188
  %vm1192 = vweird.f32 %v753
  %v1193 = vadd.s32 %v1189, 3
  %v1194 = vand.u32 %v1193, 3
  %vm1195 = vcmp.lt.s32.totalorder %v1194, 2
  %vm1196 = vcmp.eq.s32.totalorder %v1194, 0
  %v1197 = vxor.u32 %v1191, 2147483648
  %v1198 = vsel %vm1196, %v1190, %v1197
  %vm1199 = vcmp.eq.s32.totalorder %v1194, 2
  %v1200 = vxor.u32 %v1190, 2147483648
  %v1201 = vsel %vm1199, %v1200, %v1191
  %v1202 = vsel %vm1195, %v1198, %v1201
  %v1203 = vsel %vm1192, nan, %v1202
  %v1204 = vand.u32 2147483647, %v754
  %vm1205 = vcmp.le.f32.partialorder %v1204, 0.7853982
  %vm1206 = vcmp.lt.s32.totalorder %v754, 0
  %v1207 = vand.u32 %v754, 2139095040
  %v1208 = vshrl.u32 %v1207, 23
  %v1209 = vsub.s32 %v1208, 127
  %v1210 = vand.u32 2147483647, %v754
  %v1211 = vand.u32 %v1210, 8388607
  %v1212 = vor.u32 %v1211, 8388608
  %v1213 = vsub.s32 0, %v1212
  %v1214 = vadd.s32 %v1209, 1
  %vm1215 = vcmp.gt.s32.totalorder %v1214, 0
  %v1216 = vsel %vm1215, %v1214, 0
  %v1217 = vshrl.u32 %v1216, 5
  %v1218 = vand.u32 %v1216, 31
  %v1219 = vsub.s32 32, %v1218
  %v1220 = vshrl.u32 683565275, %v1219
  %v1221 = vshll.u32 683565275, %v1218
  %v1222 = vshrl.u32 2475754826, %v1219
  %v1223 = vor.u32 %v1221, %v1222
  %v1224 = vshll.u32 2475754826, %v1218
  %v1225 = vshrl.u32 2131351028, %v1219
  %v1226 = vor.u32 %v1224, %v1225
  %v1227 = vshll.u32 2131351028, %v1218
  %v1228 = vshrl.u32 2102212464, %v1219
  %v1229 = vor.u32 %v1227, %v1228
  %v1230 = vshll.u32 2102212464, %v1218
  %v1231 = vshrl.u32 920167782, %v1219
  %v1232 = vor.u32 %v1230, %v1231
  %v1233 = vshll.u32 920167782, %v1218
  %v1234 = vshrl.u32 1326507024, %v1219
  %v1235 = vor.u32 %v1233, %v1234
  %vm1236 = vcmp.lt.s32.totalorder %v1217, 1
  %vm1237 = vcmp.lt.s32.totalorder %v1217, 2
  %vm1238 = vcmp.lt.s32.totalorder %v1217, 3
  %vm1239 = vcmp.lt.s32.totalorder %v1217, 4
  %v1240 = vsel %vm1236, %v1220, %v1223
  %v1241 = vsel %vm1239, %v1229, 2102212464
  %v1242 = vsel %vm1238, %v1226, %v1241
  %v1243 = vsel %vm1237, %v1240, %v1242
  %v1244 = vsel %vm1236, %v1223, %v1226
  %v1245 = vsel %vm1239, %v1232, 920167782
  %v1246 = vsel %vm1238, %v1229, %v1245
  %v1247 = vsel %vm1237, %v1244, %v1246
  %v1248 = vsel %vm1236, %v1226, %v1229
  %v1249 = vsel %vm1239, %v1235, 1326507024
  %v1250 = vsel %vm1238, %v1232, %v1249
  %v1251 = vsel %vm1237, %v1248, %v1250
  %v1252 = vshll.u32 %v1212, 8
  %v1253 = vmul.u32.u64.compose %v1252, %v1251
  %v1254 = vextract.low.u32 %v1253
  %v1255 = vextract.high.u32 %v1253
  %v1256 = vmul.u32.u64.compose %v1252, %v1247
  %v1257 = vextract.low.u32 %v1256
  %v1258 = vextract.high.u32 %v1256
  %v1259 = vmul.u32 %v1252, %v1243
  %v1260 = vadd.s32 %v1255, %v1257
  %vm1261 = vc.u32 %v1255, %v1257
  %v1262 = vadd.s32 %v1258, 1
  %v1263 = vsel %vm1261, %v1262, %v1258
  %v1264 = vadd.s32 %v1259, %v1263
  %v1265 = vadd.s32 %v1264, 536870912
  %v1266 = vshrl.u32 %v1265, 30
  %v1267 = vshll.u32 %v1266, 30
  %v1268 = vsub.s32 %v1264, %v1267
  %vm1269 = vcmp.lt.s32.totalorder %v1268, 0
  %v1270 = vsub.s32 0, %v1268
  %v1271 = vsel %vm1269, %v1270, %v1268
  %v1272 = vclz %v1271
  %v1273 = vsub.s32 %v1272, 2
  %vm1274 = vcmp.gt.s32.totalorder 0, %v1273
  %v1275 = vsel %vm1274, 0, %v1273
  %v1276 = vsub.s32 32, %v1275
  %v1277 = vshll.u32 %v1268, %v1275
  %v1278 = vshrl.u32 %v1260, %v1276
  %v1279 = vor.u32 %v1277, %v1278
  %v1280 = vsub.s32 4294967266, %v1275
  %v1281 = vadd.s32 %v1280, 127
  %v1282 = vshll.u32 %v1281, 23
  %v1283 = vor.u32 4788187, %v1282
  %v1284 = vand.u32 2147483647, %v1283
  %v1286 = vcvt.s32.f32 %v1279
  %v1287 = vmul.f32 %v1286, %v1284
  %v1288 = vxor.u32 %v1287, 2147483648
  %v1289 = vsel %vm1206, %v1288, %v1287
  %v1290 = vsub.s32 4, %v1266
  %v1291 = vsel %vm1206, %v1290, %v1266
  %v1292 = vsel %vm1205, %v754, %v1289
  %v1293 = vsel %vm1205, 0, %v1291
  %v1294 = vcosq.f32.pop %v1292
  %v1295 = vsinq.f32.pop %v1292
  %vm1296 = vweird.f32 %v754
  %v1297 = vadd.s32 %v1293, 3
  %v1298 = vand.u32 %v1297, 3
  %vm1299 = vcmp.lt.s32.totalorder %v1298, 2
  %vm1300 = vcmp.eq.s32.totalorder %v1298, 0
  %v1301 = vxor.u32 %v1295, 2147483648
  %v1302 = vsel %vm1300, %v1294, %v1301
  %vm1303 = vcmp.eq.s32.totalorder %v1298, 2
  %v1304 = vxor.u32 %v1294, 2147483648
  %v1305 = vsel %vm1303, %v1304, %v1295
  %v1306 = vsel %vm1299, %v1302, %v1305
  %v1307 = vsel %vm1296, nan, %v1306
  %v1308 = vand.u32 2147483647, %v755
  %vm1309 = vcmp.le.f32.partialorder %v1308, 0.7853982
  %vm1310 = vcmp.lt.s32.totalorder %v755, 0
  %v1311 = vand.u32 %v755, 2139095040
  %v1312 = vshrl.u32 %v1311, 23
  %v1313 = vsub.s32 %v1312, 127
  %v1314 = vand.u32 2147483647, %v755
  %v1315 = vand.u32 %v1314, 8388607
  %v1316 = vor.u32 %v1315, 8388608
  %v1317 = vsub.s32 0, %v1316
  %v1318 = vadd.s32 %v1313, 1
  %vm1319 = vcmp.gt.s32.totalorder %v1318, 0
  %v1320 = vsel %vm1319, %v1318, 0
  %v1321 = vshrl.u32 %v1320, 5
  %v1322 = vand.u32 %v1320, 31
  %v1323 = vsub.s32 32, %v1322
  %v1324 = vshrl.u32 683565275, %v1323
  %v1325 = vshll.u32 683565275, %v1322
  %v1326 = vshrl.u32 2475754826, %v1323
  %v1327 = vor.u32 %v1325, %v1326
  %v1328 = vshll.u32 2475754826, %v1322
  %v1329 = vshrl.u32 2131351028, %v1323
  %v1330 = vor.u32 %v1328, %v1329
  %v1331 = vshll.u32 2131351028, %v1322
  %v1332 = vshrl.u32 2102212464, %v1323
  %v1333 = vor.u32 %v1331, %v1332
  %v1334 = vshll.u32 2102212464, %v1322
  %v1335 = vshrl.u32 920167782, %v1323
  %v1336 = vor.u32 %v1334, %v1335
  %v1337 = vshll.u32 920167782, %v1322
  %v1338 = vshrl.u32 1326507024, %v1323
  %v1339 = vor.u32 %v1337, %v1338
  %vm1340 = vcmp.lt.s32.totalorder %v1321, 1
  %vm1341 = vcmp.lt.s32.totalorder %v1321, 2
  %vm1342 = vcmp.lt.s32.totalorder %v1321, 3
  %vm1343 = vcmp.lt.s32.totalorder %v1321, 4
  %v1344 = vsel %vm1340, %v1324, %v1327
  %v1345 = vsel %vm1343, %v1333, 2102212464
  %v1346 = vsel %vm1342, %v1330, %v1345
  %v1347 = vsel %vm1341, %v1344, %v1346
  %v1348 = vsel %vm1340, %v1327, %v1330
  %v1349 = vsel %vm1343, %v1336, 920167782
  %v1350 = vsel %vm1342, %v1333, %v1349
  %v1351 = vsel %vm1341, %v1348, %v1350
  %v1352 = vsel %vm1340, %v1330, %v1333
  %v1353 = vsel %vm1343, %v1339, 1326507024
  %v1354 = vsel %vm1342, %v1336, %v1353
  %v1355 = vsel %vm1341, %v1352, %v1354
  %v1356 = vshll.u32 %v1316, 8
  %v1357 = vmul.u32.u64.compose %v1356, %v1355
  %v1358 = vextract.low.u32 %v1357
  %v1359 = vextract.high.u32 %v1357
  %v1360 = vmul.u32.u64.compose %v1356, %v1351
  %v1361 = vextract.low.u32 %v1360
  %v1362 = vextract.high.u32 %v1360
  %v1363 = vmul.u32 %v1356, %v1347
  %v1364 = vadd.s32 %v1359, %v1361
  %vm1365 = vc.u32 %v1359, %v1361
  %v1366 = vadd.s32 %v1362, 1
  %v1367 = vsel %vm1365, %v1366, %v1362
  %v1368 = vadd.s32 %v1363, %v1367
  %v1369 = vadd.s32 %v1368, 536870912
  %v1370 = vshrl.u32 %v1369, 30
  %v1371 = vshll.u32 %v1370, 30
  %v1372 = vsub.s32 %v1368, %v1371
  %vm1373 = vcmp.lt.s32.totalorder %v1372, 0
  %v1374 = vsub.s32 0, %v1372
  %v1375 = vsel %vm1373, %v1374, %v1372
  %v1376 = vclz %v1375
  %v1377 = vsub.s32 %v1376, 2
  %vm1378 = vcmp.gt.s32.totalorder 0, %v1377
  %v1379 = vsel %vm1378, 0, %v1377
  %v1380 = vsub.s32 32, %v1379
  %v1381 = vshll.u32 %v1372, %v1379
  %v1382 = vshrl.u32 %v1364, %v1380
  %v1383 = vor.u32 %v1381, %v1382
  %v1384 = vsub.s32 4294967266, %v1379
  %v1385 = vadd.s32 %v1384, 127
  %v1386 = vshll.u32 %v1385, 23
  %v1387 = vor.u32 4788187, %v1386
  %v1388 = vand.u32 2147483647, %v1387
  %v1390 = vcvt.s32.f32 %v1383
  %v1391 = vmul.f32 %v1390, %v1388
  %v1392 = vxor.u32 %v1391, 2147483648
  %v1393 = vsel %vm1310, %v1392, %v1391
  %v1394 = vsub.s32 4, %v1370
  %v1395 = vsel %vm1310, %v1394, %v1370
  %v1396 = vsel %vm1309, %v755, %v1393
  %v1397 = vsel %vm1309, 0, %v1395
  %v1398 = vcosq.f32.pop %v1396
  %v1399 = vsinq.f32.pop %v1396
  %vm1400 = vweird.f32 %v755
  %v1401 = vadd.s32 %v1397, 3
  %v1402 = vand.u32 %v1401, 3
  %vm1403 = vcmp.lt.s32.totalorder %v1402, 2
  %vm1404 = vcmp.eq.s32.totalorder %v1402, 0
  %v1405 = vxor.u32 %v1399, 2147483648
  %v1406 = vsel %vm1404, %v1398, %v1405
  %vm1407 = vcmp.eq.s32.totalorder %v1402, 2
  %v1408 = vxor.u32 %v1398, 2147483648
  %v1409 = vsel %vm1407, %v1408, %v1399
  %v1410 = vsel %vm1403, %v1406, %v1409
  %v1411 = vsel %vm1400, nan, %v1410
  %v1412 = vand.u32 2147483647, %v756
  %vm1413 = vcmp.le.f32.partialorder %v1412, 0.7853982
  %vm1414 = vcmp.lt.s32.totalorder %v756, 0
  %v1415 = vand.u32 %v756, 2139095040
  %v1416 = vshrl.u32 %v1415, 23
  %v1417 = vsub.s32 %v1416, 127
  %v1418 = vand.u32 2147483647, %v756
  %v1419 = vand.u32 %v1418, 8388607
  %v1420 = vor.u32 %v1419, 8388608
  %v1421 = vsub.s32 0, %v1420
  %v1422 = vadd.s32 %v1417, 1
  %vm1423 = vcmp.gt.s32.totalorder %v1422, 0
  %v1424 = vsel %vm1423, %v1422, 0
  %v1425 = vshrl.u32 %v1424, 5
  %v1426 = vand.u32 %v1424, 31
  %v1427 = vsub.s32 32, %v1426
  %v1428 = vshrl.u32 683565275, %v1427
  %v1429 = vshll.u32 683565275, %v1426
  %v1430 = vshrl.u32 2475754826, %v1427
  %v1431 = vor.u32 %v1429, %v1430
  %v1432 = vshll.u32 2475754826, %v1426
  %v1433 = vshrl.u32 2131351028, %v1427
  %v1434 = vor.u32 %v1432, %v1433
  %v1435 = vshll.u32 2131351028, %v1426
  %v1436 = vshrl.u32 2102212464, %v1427
  %v1437 = vor.u32 %v1435, %v1436
  %v1438 = vshll.u32 2102212464, %v1426
  %v1439 = vshrl.u32 920167782, %v1427
  %v1440 = vor.u32 %v1438, %v1439
  %v1441 = vshll.u32 920167782, %v1426
  %v1442 = vshrl.u32 1326507024, %v1427
  %v1443 = vor.u32 %v1441, %v1442
  %vm1444 = vcmp.lt.s32.totalorder %v1425, 1
  %vm1445 = vcmp.lt.s32.totalorder %v1425, 2
  %vm1446 = vcmp.lt.s32.totalorder %v1425, 3
  %vm1447 = vcmp.lt.s32.totalorder %v1425, 4
  %v1448 = vsel %vm1444, %v1428, %v1431
  %v1449 = vsel %vm1447, %v1437, 2102212464
  %v1450 = vsel %vm1446, %v1434, %v1449
  %v1451 = vsel %vm1445, %v1448, %v1450
  %v1452 = vsel %vm1444, %v1431, %v1434
  %v1453 = vsel %vm1447, %v1440, 920167782
  %v1454 = vsel %vm1446, %v1437, %v1453
  %v1455 = vsel %vm1445, %v1452, %v1454
  %v1456 = vsel %vm1444, %v1434, %v1437
  %v1457 = vsel %vm1447, %v1443, 1326507024
  %v1458 = vsel %vm1446, %v1440, %v1457
  %v1459 = vsel %vm1445, %v1456, %v1458
  %v1460 = vshll.u32 %v1420, 8
  %v1461 = vmul.u32.u64.compose %v1460, %v1459
  %v1462 = vextract.low.u32 %v1461
  %v1463 = vextract.high.u32 %v1461
  %v1464 = vmul.u32.u64.compose %v1460, %v1455
  %v1465 = vextract.low.u32 %v1464
  %v1466 = vextract.high.u32 %v1464
  %v1467 = vmul.u32 %v1460, %v1451
  %v1468 = vadd.s32 %v1463, %v1465
  %vm1469 = vc.u32 %v1463, %v1465
  %v1470 = vadd.s32 %v1466, 1
  %v1471 = vsel %vm1469, %v1470, %v1466
  %v1472 = vadd.s32 %v1467, %v1471
  %v1473 = vadd.s32 %v1472, 536870912
  %v1474 = vshrl.u32 %v1473, 30
  %v1475 = vshll.u32 %v1474, 30
  %v1476 = vsub.s32 %v1472, %v1475
  %vm1477 = vcmp.lt.s32.totalorder %v1476, 0
  %v1478 = vsub.s32 0, %v1476
  %v1479 = vsel %vm1477, %v1478, %v1476
  %v1480 = vclz %v1479
  %v1481 = vsub.s32 %v1480, 2
  %vm1482 = vcmp.gt.s32.totalorder 0, %v1481
  %v1483 = vsel %vm1482, 0, %v1481
  %v1484 = vsub.s32 32, %v1483
  %v1485 = vshll.u32 %v1476, %v1483
  %v1486 = vshrl.u32 %v1468, %v1484
  %v1487 = vor.u32 %v1485, %v1486
  %v1488 = vsub.s32 4294967266, %v1483
  %v1489 = vadd.s32 %v1488, 127
  %v1490 = vshll.u32 %v1489, 23
  %v1491 = vor.u32 4788187, %v1490
  %v1492 = vand.u32 2147483647, %v1491
  %v1494 = vcvt.s32.f32 %v1487
  %v1495 = vmul.f32 %v1494, %v1492
  %v1496 = vxor.u32 %v1495, 2147483648
  %v1497 = vsel %vm1414, %v1496, %v1495
  %v1498 = vsub.s32 4, %v1474
  %v1499 = vsel %vm1414, %v1498, %v1474
  %v1500 = vsel %vm1413, %v756, %v1497
  %v1501 = vsel %vm1413, 0, %v1499
  %v1502 = vcosq.f32.pop %v1500
  %v1503 = vsinq.f32.pop %v1500
  %vm1504 = vweird.f32 %v756
  %v1505 = vadd.s32 %v1501, 3
  %v1506 = vand.u32 %v1505, 3
  %vm1507 = vcmp.lt.s32.totalorder %v1506, 2
  %vm1508 = vcmp.eq.s32.totalorder %v1506, 0
  %v1509 = vxor.u32 %v1503, 2147483648
  %v1510 = vsel %vm1508, %v1502, %v1509
  %vm1511 = vcmp.eq.s32.totalorder %v1506, 2
  %v1512 = vxor.u32 %v1502, 2147483648
  %v1513 = vsel %vm1511, %v1512, %v1503
  %v1514 = vsel %vm1507, %v1510, %v1513
  %v1515 = vsel %vm1504, nan, %v1514
  %v1516 = vand.u32 2147483647, %v757
  %vm1517 = vcmp.le.f32.partialorder %v1516, 0.7853982
  %vm1518 = vcmp.lt.s32.totalorder %v757, 0
  %v1519 = vand.u32 %v757, 2139095040
  %v1520 = vshrl.u32 %v1519, 23
  %v1521 = vsub.s32 %v1520, 127
  %v1522 = vand.u32 2147483647, %v757
  %v1523 = vand.u32 %v1522, 8388607
  %v1524 = vor.u32 %v1523, 8388608
  %v1525 = vsub.s32 0, %v1524
  %v1526 = vadd.s32 %v1521, 1
  %vm1527 = vcmp.gt.s32.totalorder %v1526, 0
  %v1528 = vsel %vm1527, %v1526, 0
  %v1529 = vshrl.u32 %v1528, 5
  %v1530 = vand.u32 %v1528, 31
  %v1531 = vsub.s32 32, %v1530
  %v1532 = vshrl.u32 683565275, %v1531
  %v1533 = vshll.u32 683565275, %v1530
  %v1534 = vshrl.u32 2475754826, %v1531
  %v1535 = vor.u32 %v1533, %v1534
  %v1536 = vshll.u32 2475754826, %v1530
  %v1537 = vshrl.u32 2131351028, %v1531
  %v1538 = vor.u32 %v1536, %v1537
  %v1539 = vshll.u32 2131351028, %v1530
  %v1540 = vshrl.u32 2102212464, %v1531
  %v1541 = vor.u32 %v1539, %v1540
  %v1542 = vshll.u32 2102212464, %v1530
  %v1543 = vshrl.u32 920167782, %v1531
  %v1544 = vor.u32 %v1542, %v1543
  %v1545 = vshll.u32 920167782, %v1530
  %v1546 = vshrl.u32 1326507024, %v1531
  %v1547 = vor.u32 %v1545, %v1546
  %vm1548 = vcmp.lt.s32.totalorder %v1529, 1
  %vm1549 = vcmp.lt.s32.totalorder %v1529, 2
  %vm1550 = vcmp.lt.s32.totalorder %v1529, 3
  %vm1551 = vcmp.lt.s32.totalorder %v1529, 4
  %v1552 = vsel %vm1548, %v1532, %v1535
  %v1553 = vsel %vm1551, %v1541, 2102212464
  %v1554 = vsel %vm1550, %v1538, %v1553
  %v1555 = vsel %vm1549, %v1552, %v1554
  %v1556 = vsel %vm1548, %v1535, %v1538
  %v1557 = vsel %vm1551, %v1544, 920167782
  %v1558 = vsel %vm1550, %v1541, %v1557
  %v1559 = vsel %vm1549, %v1556, %v1558
  %v1560 = vsel %vm1548, %v1538, %v1541
  %v1561 = vsel %vm1551, %v1547, 1326507024
  %v1562 = vsel %vm1550, %v1544, %v1561
  %v1563 = vsel %vm1549, %v1560, %v1562
  %v1564 = vshll.u32 %v1524, 8
  %v1565 = vmul.u32.u64.compose %v1564, %v1563
  %v1566 = vextract.low.u32 %v1565
  %v1567 = vextract.high.u32 %v1565
  %v1568 = vmul.u32.u64.compose %v1564, %v1559
  %v1569 = vextract.low.u32 %v1568
  %v1570 = vextract.high.u32 %v1568
  %v1571 = vmul.u32 %v1564, %v1555
  %v1572 = vadd.s32 %v1567, %v1569
  %vm1573 = vc.u32 %v1567, %v1569
  %v1574 = vadd.s32 %v1570, 1
  %v1575 = vsel %vm1573, %v1574, %v1570
  %v1576 = vadd.s32 %v1571, %v1575
  %v1577 = vadd.s32 %v1576, 536870912
  %v1578 = vshrl.u32 %v1577, 30
  %v1579 = vshll.u32 %v1578, 30
  %v1580 = vsub.s32 %v1576, %v1579
  %vm1581 = vcmp.lt.s32.totalorder %v1580, 0
  %v1582 = vsub.s32 0, %v1580
  %v1583 = vsel %vm1581, %v1582, %v1580
  %v1584 = vclz %v1583
  %v1585 = vsub.s32 %v1584, 2
  %vm1586 = vcmp.gt.s32.totalorder 0, %v1585
  %v1587 = vsel %vm1586, 0, %v1585
  %v1588 = vsub.s32 32, %v1587
  %v1589 = vshll.u32 %v1580, %v1587
  %v1590 = vshrl.u32 %v1572, %v1588
  %v1591 = vor.u32 %v1589, %v1590
  %v1592 = vsub.s32 4294967266, %v1587
  %v1593 = vadd.s32 %v1592, 127
  %v1594 = vshll.u32 %v1593, 23
  %v1595 = vor.u32 4788187, %v1594
  %v1596 = vand.u32 2147483647, %v1595
  %v1598 = vcvt.s32.f32 %v1591
  %v1599 = vmul.f32 %v1598, %v1596
  %v1600 = vxor.u32 %v1599, 2147483648
  %v1601 = vsel %vm1518, %v1600, %v1599
  %v1602 = vsub.s32 4, %v1578
  %v1603 = vsel %vm1518, %v1602, %v1578
  %v1604 = vsel %vm1517, %v757, %v1601
  %v1605 = vsel %vm1517, 0, %v1603
  %v1606 = vcosq.f32.pop %v1604
  %v1607 = vsinq.f32.pop %v1604
  %vm1608 = vweird.f32 %v757
  %v1609 = vadd.s32 %v1605, 3
  %v1610 = vand.u32 %v1609, 3
  %vm1611 = vcmp.lt.s32.totalorder %v1610, 2
  %vm1612 = vcmp.eq.s32.totalorder %v1610, 0
  %v1613 = vxor.u32 %v1607, 2147483648
  %v1614 = vsel %vm1612, %v1606, %v1613
  %vm1615 = vcmp.eq.s32.totalorder %v1610, 2
  %v1616 = vxor.u32 %v1606, 2147483648
  %v1617 = vsel %vm1615, %v1616, %v1607
  %v1618 = vsel %vm1611, %v1614, %v1617
  %v1619 = vsel %vm1608, nan, %v1618
  %v1620 = vand.u32 2147483647, %v758
  %vm1621 = vcmp.le.f32.partialorder %v1620, 0.7853982
  %vm1622 = vcmp.lt.s32.totalorder %v758, 0
  %v1623 = vand.u32 %v758, 2139095040
  %v1624 = vshrl.u32 %v1623, 23
  %v1625 = vsub.s32 %v1624, 127
  %v1626 = vand.u32 2147483647, %v758
  %v1627 = vand.u32 %v1626, 8388607
  %v1628 = vor.u32 %v1627, 8388608
  %v1629 = vsub.s32 0, %v1628
  %v1630 = vadd.s32 %v1625, 1
  %vm1631 = vcmp.gt.s32.totalorder %v1630, 0
  %v1632 = vsel %vm1631, %v1630, 0
  %v1633 = vshrl.u32 %v1632, 5
  %v1634 = vand.u32 %v1632, 31
  %v1635 = vsub.s32 32, %v1634
  %v1636 = vshrl.u32 683565275, %v1635
  %v1637 = vshll.u32 683565275, %v1634
  %v1638 = vshrl.u32 2475754826, %v1635
  %v1639 = vor.u32 %v1637, %v1638
  %v1640 = vshll.u32 2475754826, %v1634
  %v1641 = vshrl.u32 2131351028, %v1635
  %v1642 = vor.u32 %v1640, %v1641
  %v1643 = vshll.u32 2131351028, %v1634
  %v1644 = vshrl.u32 2102212464, %v1635
  %v1645 = vor.u32 %v1643, %v1644
  %v1646 = vshll.u32 2102212464, %v1634
  %v1647 = vshrl.u32 920167782, %v1635
  %v1648 = vor.u32 %v1646, %v1647
  %v1649 = vshll.u32 920167782, %v1634
  %v1650 = vshrl.u32 1326507024, %v1635
  %v1651 = vor.u32 %v1649, %v1650
  %vm1652 = vcmp.lt.s32.totalorder %v1633, 1
  %vm1653 = vcmp.lt.s32.totalorder %v1633, 2
  %vm1654 = vcmp.lt.s32.totalorder %v1633, 3
  %vm1655 = vcmp.lt.s32.totalorder %v1633, 4
  %v1656 = vsel %vm1652, %v1636, %v1639
  %v1657 = vsel %vm1655, %v1645, 2102212464
  %v1658 = vsel %vm1654, %v1642, %v1657
  %v1659 = vsel %vm1653, %v1656, %v1658
  %v1660 = vsel %vm1652, %v1639, %v1642
  %v1661 = vsel %vm1655, %v1648, 920167782
  %v1662 = vsel %vm1654, %v1645, %v1661
  %v1663 = vsel %vm1653, %v1660, %v1662
  %v1664 = vsel %vm1652, %v1642, %v1645
  %v1665 = vsel %vm1655, %v1651, 1326507024
  %v1666 = vsel %vm1654, %v1648, %v1665
  %v1667 = vsel %vm1653, %v1664, %v1666
  %v1668 = vshll.u32 %v1628, 8
  %v1669 = vmul.u32.u64.compose %v1668, %v1667
  %v1670 = vextract.low.u32 %v1669
  %v1671 = vextract.high.u32 %v1669
  %v1672 = vmul.u32.u64.compose %v1668, %v1663
  %v1673 = vextract.low.u32 %v1672
  %v1674 = vextract.high.u32 %v1672
  %v1675 = vmul.u32 %v1668, %v1659
  %v1676 = vadd.s32 %v1671, %v1673
  %vm1677 = vc.u32 %v1671, %v1673
  %v1678 = vadd.s32 %v1674, 1
  %v1679 = vsel %vm1677, %v1678, %v1674
  %v1680 = vadd.s32 %v1675, %v1679
  %v1681 = vadd.s32 %v1680, 536870912
  %v1682 = vshrl.u32 %v1681, 30
  %v1683 = vshll.u32 %v1682, 30
  %v1684 = vsub.s32 %v1680, %v1683
  %vm1685 = vcmp.lt.s32.totalorder %v1684, 0
  %v1686 = vsub.s32 0, %v1684
  %v1687 = vsel %vm1685, %v1686, %v1684
  %v1688 = vclz %v1687
  %v1689 = vsub.s32 %v1688, 2
  %vm1690 = vcmp.gt.s32.totalorder 0, %v1689
  %v1691 = vsel %vm1690, 0, %v1689
  %v1692 = vsub.s32 32, %v1691
  %v1693 = vshll.u32 %v1684, %v1691
  %v1694 = vshrl.u32 %v1676, %v1692
  %v1695 = vor.u32 %v1693, %v1694
  %v1696 = vsub.s32 4294967266, %v1691
  %v1697 = vadd.s32 %v1696, 127
  %v1698 = vshll.u32 %v1697, 23
  %v1699 = vor.u32 4788187, %v1698
  %v1700 = vand.u32 2147483647, %v1699
  %v1702 = vcvt.s32.f32 %v1695
  %v1703 = vmul.f32 %v1702, %v1700
  %v1704 = vxor.u32 %v1703, 2147483648
  %v1705 = vsel %vm1622, %v1704, %v1703
  %v1706 = vsub.s32 4, %v1682
  %v1707 = vsel %vm1622, %v1706, %v1682
  %v1708 = vsel %vm1621, %v758, %v1705
  %v1709 = vsel %vm1621, 0, %v1707
  %v1710 = vcosq.f32.pop %v1708
  %v1711 = vsinq.f32.pop %v1708
  %vm1712 = vweird.f32 %v758
  %v1713 = vadd.s32 %v1709, 3
  %v1714 = vand.u32 %v1713, 3
  %vm1715 = vcmp.lt.s32.totalorder %v1714, 2
  %vm1716 = vcmp.eq.s32.totalorder %v1714, 0
  %v1717 = vxor.u32 %v1711, 2147483648
  %v1718 = vsel %vm1716, %v1710, %v1717
  %vm1719 = vcmp.eq.s32.totalorder %v1714, 2
  %v1720 = vxor.u32 %v1710, 2147483648
  %v1721 = vsel %vm1719, %v1720, %v1711
  %v1722 = vsel %vm1715, %v1718, %v1721
  %v1723 = vsel %vm1712, nan, %v1722
  %v1724 = vand.u32 2147483647, %v759
  %vm1725 = vcmp.le.f32.partialorder %v1724, 0.7853982
  %vm1726 = vcmp.lt.s32.totalorder %v759, 0
  %v1727 = vand.u32 %v759, 2139095040
  %v1728 = vshrl.u32 %v1727, 23
  %v1729 = vsub.s32 %v1728, 127
  %v1730 = vand.u32 2147483647, %v759
  %v1731 = vand.u32 %v1730, 8388607
  %v1732 = vor.u32 %v1731, 8388608
  %v1733 = vsub.s32 0, %v1732
  %v1734 = vadd.s32 %v1729, 1
  %vm1735 = vcmp.gt.s32.totalorder %v1734, 0
  %v1736 = vsel %vm1735, %v1734, 0
  %v1737 = vshrl.u32 %v1736, 5
  %v1738 = vand.u32 %v1736, 31
  %v1739 = vsub.s32 32, %v1738
  %v1740 = vshrl.u32 683565275, %v1739
  %v1741 = vshll.u32 683565275, %v1738
  %v1742 = vshrl.u32 2475754826, %v1739
  %v1743 = vor.u32 %v1741, %v1742
  %v1744 = vshll.u32 2475754826, %v1738
  %v1745 = vshrl.u32 2131351028, %v1739
  %v1746 = vor.u32 %v1744, %v1745
  %v1747 = vshll.u32 2131351028, %v1738
  %v1748 = vshrl.u32 2102212464, %v1739
  %v1749 = vor.u32 %v1747, %v1748
  %v1750 = vshll.u32 2102212464, %v1738
  %v1751 = vshrl.u32 920167782, %v1739
  %v1752 = vor.u32 %v1750, %v1751
  %v1753 = vshll.u32 920167782, %v1738
  %v1754 = vshrl.u32 1326507024, %v1739
  %v1755 = vor.u32 %v1753, %v1754
  %vm1756 = vcmp.lt.s32.totalorder %v1737, 1
  %vm1757 = vcmp.lt.s32.totalorder %v1737, 2
  %vm1758 = vcmp.lt.s32.totalorder %v1737, 3
  %vm1759 = vcmp.lt.s32.totalorder %v1737, 4
  %v1760 = vsel %vm1756, %v1740, %v1743
  %v1761 = vsel %vm1759, %v1749, 2102212464
  %v1762 = vsel %vm1758, %v1746, %v1761
  %v1763 = vsel %vm1757, %v1760, %v1762
  %v1764 = vsel %vm1756, %v1743, %v1746
  %v1765 = vsel %vm1759, %v1752, 920167782
  %v1766 = vsel %vm1758, %v1749, %v1765
  %v1767 = vsel %vm1757, %v1764, %v1766
  %v1768 = vsel %vm1756, %v1746, %v1749
  %v1769 = vsel %vm1759, %v1755, 1326507024
  %v1770 = vsel %vm1758, %v1752, %v1769
  %v1771 = vsel %vm1757, %v1768, %v1770
  %v1772 = vshll.u32 %v1732, 8
  %v1773 = vmul.u32.u64.compose %v1772, %v1771
  %v1774 = vextract.low.u32 %v1773
  %v1775 = vextract.high.u32 %v1773
  %v1776 = vmul.u32.u64.compose %v1772, %v1767
  %v1777 = vextract.low.u32 %v1776
  %v1778 = vextract.high.u32 %v1776
  %v1779 = vmul.u32 %v1772, %v1763
  %v1780 = vadd.s32 %v1775, %v1777
  %vm1781 = vc.u32 %v1775, %v1777
  %v1782 = vadd.s32 %v1778, 1
  %v1783 = vsel %vm1781, %v1782, %v1778
  %v1784 = vadd.s32 %v1779, %v1783
  %v1785 = vadd.s32 %v1784, 536870912
  %v1786 = vshrl.u32 %v1785, 30
  %v1787 = vshll.u32 %v1786, 30
  %v1788 = vsub.s32 %v1784, %v1787
  %vm1789 = vcmp.lt.s32.totalorder %v1788, 0
  %v1790 = vsub.s32 0, %v1788
  %v1791 = vsel %vm1789, %v1790, %v1788
  %v1792 = vclz %v1791
  %v1793 = vsub.s32 %v1792, 2
  %vm1794 = vcmp.gt.s32.totalorder 0, %v1793
  %v1795 = vsel %vm1794, 0, %v1793
  %v1796 = vsub.s32 32, %v1795
  %v1797 = vshll.u32 %v1788, %v1795
  %v1798 = vshrl.u32 %v1780, %v1796
  %v1799 = vor.u32 %v1797, %v1798
  %v1800 = vsub.s32 4294967266, %v1795
  %v1801 = vadd.s32 %v1800, 127
  %v1802 = vshll.u32 %v1801, 23
  %v1803 = vor.u32 4788187, %v1802
  %v1804 = vand.u32 2147483647, %v1803
  %v1806 = vcvt.s32.f32 %v1799
  %v1807 = vmul.f32 %v1806, %v1804
  %v1808 = vxor.u32 %v1807, 2147483648
  %v1809 = vsel %vm1726, %v1808, %v1807
  %v1810 = vsub.s32 4, %v1786
  %v1811 = vsel %vm1726, %v1810, %v1786
  %v1812 = vsel %vm1725, %v759, %v1809
  %v1813 = vsel %vm1725, 0, %v1811
  %v1814 = vcosq.f32.pop %v1812
  %v1815 = vsinq.f32.pop %v1812
  %vm1816 = vweird.f32 %v759
  %v1817 = vadd.s32 %v1813, 3
  %v1818 = vand.u32 %v1817, 3
  %vm1819 = vcmp.lt.s32.totalorder %v1818, 2
  %vm1820 = vcmp.eq.s32.totalorder %v1818, 0
  %v1821 = vxor.u32 %v1815, 2147483648
  %v1822 = vsel %vm1820, %v1814, %v1821
  %vm1823 = vcmp.eq.s32.totalorder %v1818, 2
  %v1824 = vxor.u32 %v1814, 2147483648
  %v1825 = vsel %vm1823, %v1824, %v1815
  %v1826 = vsel %vm1819, %v1822, %v1825
  %v1827 = vsel %vm1816, nan, %v1826
  %v1828 = vand.u32 2147483647, %v760
  %vm1829 = vcmp.le.f32.partialorder %v1828, 0.7853982
  %vm1830 = vcmp.lt.s32.totalorder %v760, 0
  %v1831 = vand.u32 %v760, 2139095040
  %v1832 = vshrl.u32 %v1831, 23
  %v1833 = vsub.s32 %v1832, 127
  %v1834 = vand.u32 2147483647, %v760
  %v1835 = vand.u32 %v1834, 8388607
  %v1836 = vor.u32 %v1835, 8388608
  %v1837 = vsub.s32 0, %v1836
  %v1838 = vadd.s32 %v1833, 1
  %vm1839 = vcmp.gt.s32.totalorder %v1838, 0
  %v1840 = vsel %vm1839, %v1838, 0
  %v1841 = vshrl.u32 %v1840, 5
  %v1842 = vand.u32 %v1840, 31
  %v1843 = vsub.s32 32, %v1842
  %v1844 = vshrl.u32 683565275, %v1843
  %v1845 = vshll.u32 683565275, %v1842
  %v1846 = vshrl.u32 2475754826, %v1843
  %v1847 = vor.u32 %v1845, %v1846
  %v1848 = vshll.u32 2475754826, %v1842
  %v1849 = vshrl.u32 2131351028, %v1843
  %v1850 = vor.u32 %v1848, %v1849
  %v1851 = vshll.u32 2131351028, %v1842
  %v1852 = vshrl.u32 2102212464, %v1843
  %v1853 = vor.u32 %v1851, %v1852
  %v1854 = vshll.u32 2102212464, %v1842
  %v1855 = vshrl.u32 920167782, %v1843
  %v1856 = vor.u32 %v1854, %v1855
  %v1857 = vshll.u32 920167782, %v1842
  %v1858 = vshrl.u32 1326507024, %v1843
  %v1859 = vor.u32 %v1857, %v1858
  %vm1860 = vcmp.lt.s32.totalorder %v1841, 1
  %vm1861 = vcmp.lt.s32.totalorder %v1841, 2
  %vm1862 = vcmp.lt.s32.totalorder %v1841, 3
  %vm1863 = vcmp.lt.s32.totalorder %v1841, 4
  %v1864 = vsel %vm1860, %v1844, %v1847
  %v1865 = vsel %vm1863, %v1853, 2102212464
  %v1866 = vsel %vm1862, %v1850, %v1865
  %v1867 = vsel %vm1861, %v1864, %v1866
  %v1868 = vsel %vm1860, %v1847, %v1850
  %v1869 = vsel %vm1863, %v1856, 920167782
  %v1870 = vsel %vm1862, %v1853, %v1869
  %v1871 = vsel %vm1861, %v1868, %v1870
  %v1872 = vsel %vm1860, %v1850, %v1853
  %v1873 = vsel %vm1863, %v1859, 1326507024
  %v1874 = vsel %vm1862, %v1856, %v1873
  %v1875 = vsel %vm1861, %v1872, %v1874
  %v1876 = vshll.u32 %v1836, 8
  %v1877 = vmul.u32.u64.compose %v1876, %v1875
  %v1878 = vextract.low.u32 %v1877
  %v1879 = vextract.high.u32 %v1877
  %v1880 = vmul.u32.u64.compose %v1876, %v1871
  %v1881 = vextract.low.u32 %v1880
  %v1882 = vextract.high.u32 %v1880
  %v1883 = vmul.u32 %v1876, %v1867
  %v1884 = vadd.s32 %v1879, %v1881
  %vm1885 = vc.u32 %v1879, %v1881
  %v1886 = vadd.s32 %v1882, 1
  %v1887 = vsel %vm1885, %v1886, %v1882
  %v1888 = vadd.s32 %v1883, %v1887
  %v1889 = vadd.s32 %v1888, 536870912
  %v1890 = vshrl.u32 %v1889, 30
  %v1891 = vshll.u32 %v1890, 30
  %v1892 = vsub.s32 %v1888, %v1891
  %vm1893 = vcmp.lt.s32.totalorder %v1892, 0
  %v1894 = vsub.s32 0, %v1892
  %v1895 = vsel %vm1893, %v1894, %v1892
  %v1896 = vclz %v1895
  %v1897 = vsub.s32 %v1896, 2
  %vm1898 = vcmp.gt.s32.totalorder 0, %v1897
  %v1899 = vsel %vm1898, 0, %v1897
  %v1900 = vsub.s32 32, %v1899
  %v1901 = vshll.u32 %v1892, %v1899
  %v1902 = vshrl.u32 %v1884, %v1900
  %v1903 = vor.u32 %v1901, %v1902
  %v1904 = vsub.s32 4294967266, %v1899
  %v1905 = vadd.s32 %v1904, 127
  %v1906 = vshll.u32 %v1905, 23
  %v1907 = vor.u32 4788187, %v1906
  %v1908 = vand.u32 2147483647, %v1907
  %v1910 = vcvt.s32.f32 %v1903
  %v1911 = vmul.f32 %v1910, %v1908
  %v1912 = vxor.u32 %v1911, 2147483648
  %v1913 = vsel %vm1830, %v1912, %v1911
  %v1914 = vsub.s32 4, %v1890
  %v1915 = vsel %vm1830, %v1914, %v1890
  %v1916 = vsel %vm1829, %v760, %v1913
  %v1917 = vsel %vm1829, 0, %v1915
  %v1918 = vcosq.f32.pop %v1916
  %v1919 = vsinq.f32.pop %v1916
  %vm1920 = vweird.f32 %v760
  %v1921 = vadd.s32 %v1917, 3
  %v1922 = vand.u32 %v1921, 3
  %vm1923 = vcmp.lt.s32.totalorder %v1922, 2
  %vm1924 = vcmp.eq.s32.totalorder %v1922, 0
  %v1925 = vxor.u32 %v1919, 2147483648
  %v1926 = vsel %vm1924, %v1918, %v1925
  %vm1927 = vcmp.eq.s32.totalorder %v1922, 2
  %v1928 = vxor.u32 %v1918, 2147483648
  %v1929 = vsel %vm1927, %v1928, %v1919
  %v1930 = vsel %vm1923, %v1926, %v1929
  %v1931 = vsel %vm1920, nan, %v1930
  %v1932 = vand.u32 2147483647, %v761
  %vm1933 = vcmp.le.f32.partialorder %v1932, 0.7853982
  %vm1934 = vcmp.lt.s32.totalorder %v761, 0
  %v1935 = vand.u32 %v761, 2139095040
  %v1936 = vshrl.u32 %v1935, 23
  %v1937 = vsub.s32 %v1936, 127
  %v1938 = vand.u32 2147483647, %v761
  %v1939 = vand.u32 %v1938, 8388607
  %v1940 = vor.u32 %v1939, 8388608
  %v1941 = vsub.s32 0, %v1940
  %v1942 = vadd.s32 %v1937, 1
  %vm1943 = vcmp.gt.s32.totalorder %v1942, 0
  %v1944 = vsel %vm1943, %v1942, 0
  %v1945 = vshrl.u32 %v1944, 5
  %v1946 = vand.u32 %v1944, 31
  %v1947 = vsub.s32 32, %v1946
  %v1948 = vshrl.u32 683565275, %v1947
  %v1949 = vshll.u32 683565275, %v1946
  %v1950 = vshrl.u32 2475754826, %v1947
  %v1951 = vor.u32 %v1949, %v1950
  %v1952 = vshll.u32 2475754826, %v1946
  %v1953 = vshrl.u32 2131351028, %v1947
  %v1954 = vor.u32 %v1952, %v1953
  %v1955 = vshll.u32 2131351028, %v1946
  %v1956 = vshrl.u32 2102212464, %v1947
  %v1957 = vor.u32 %v1955, %v1956
  %v1958 = vshll.u32 2102212464, %v1946
  %v1959 = vshrl.u32 920167782, %v1947
  %v1960 = vor.u32 %v1958, %v1959
  %v1961 = vshll.u32 920167782, %v1946
  %v1962 = vshrl.u32 1326507024, %v1947
  %v1963 = vor.u32 %v1961, %v1962
  %vm1964 = vcmp.lt.s32.totalorder %v1945, 1
  %vm1965 = vcmp.lt.s32.totalorder %v1945, 2
  %vm1966 = vcmp.lt.s32.totalorder %v1945, 3
  %vm1967 = vcmp.lt.s32.totalorder %v1945, 4
  %v1968 = vsel %vm1964, %v1948, %v1951
  %v1969 = vsel %vm1967, %v1957, 2102212464
  %v1970 = vsel %vm1966, %v1954, %v1969
  %v1971 = vsel %vm1965, %v1968, %v1970
  %v1972 = vsel %vm1964, %v1951, %v1954
  %v1973 = vsel %vm1967, %v1960, 920167782
  %v1974 = vsel %vm1966, %v1957, %v1973
  %v1975 = vsel %vm1965, %v1972, %v1974
  %v1976 = vsel %vm1964, %v1954, %v1957
  %v1977 = vsel %vm1967, %v1963, 1326507024
  %v1978 = vsel %vm1966, %v1960, %v1977
  %v1979 = vsel %vm1965, %v1976, %v1978
  %v1980 = vshll.u32 %v1940, 8
  %v1981 = vmul.u32.u64.compose %v1980, %v1979
  %v1982 = vextract.low.u32 %v1981
  %v1983 = vextract.high.u32 %v1981
  %v1984 = vmul.u32.u64.compose %v1980, %v1975
  %v1985 = vextract.low.u32 %v1984
  %v1986 = vextract.high.u32 %v1984
  %v1987 = vmul.u32 %v1980, %v1971
  %v1988 = vadd.s32 %v1983, %v1985
  %vm1989 = vc.u32 %v1983, %v1985
  %v1990 = vadd.s32 %v1986, 1
  %v1991 = vsel %vm1989, %v1990, %v1986
  %v1992 = vadd.s32 %v1987, %v1991
  %v1993 = vadd.s32 %v1992, 536870912
  %v1994 = vshrl.u32 %v1993, 30
  %v1995 = vshll.u32 %v1994, 30
  %v1996 = vsub.s32 %v1992, %v1995
  %vm1997 = vcmp.lt.s32.totalorder %v1996, 0
  %v1998 = vsub.s32 0, %v1996
  %v1999 = vsel %vm1997, %v1998, %v1996
  %v2000 = vclz %v1999
  %v2001 = vsub.s32 %v2000, 2
  %vm2002 = vcmp.gt.s32.totalorder 0, %v2001
  %v2003 = vsel %vm2002, 0, %v2001
  %v2004 = vsub.s32 32, %v2003
  %v2005 = vshll.u32 %v1996, %v2003
  %v2006 = vshrl.u32 %v1988, %v2004
  %v2007 = vor.u32 %v2005, %v2006
  %v2008 = vsub.s32 4294967266, %v2003
  %v2009 = vadd.s32 %v2008, 127
  %v2010 = vshll.u32 %v2009, 23
  %v2011 = vor.u32 4788187, %v2010
  %v2012 = vand.u32 2147483647, %v2011
  %v2014 = vcvt.s32.f32 %v2007
  %v2015 = vmul.f32 %v2014, %v2012
  %v2016 = vxor.u32 %v2015, 2147483648
  %v2017 = vsel %vm1934, %v2016, %v2015
  %v2018 = vsub.s32 4, %v1994
  %v2019 = vsel %vm1934, %v2018, %v1994
  %v2020 = vsel %vm1933, %v761, %v2017
  %v2021 = vsel %vm1933, 0, %v2019
  %v2022 = vcosq.f32.pop %v2020
  %v2023 = vsinq.f32.pop %v2020
  %vm2024 = vweird.f32 %v761
  %v2025 = vadd.s32 %v2021, 3
  %v2026 = vand.u32 %v2025, 3
  %vm2027 = vcmp.lt.s32.totalorder %v2026, 2
  %vm2028 = vcmp.eq.s32.totalorder %v2026, 0
  %v2029 = vxor.u32 %v2023, 2147483648
  %v2030 = vsel %vm2028, %v2022, %v2029
  %vm2031 = vcmp.eq.s32.totalorder %v2026, 2
  %v2032 = vxor.u32 %v2022, 2147483648
  %v2033 = vsel %vm2031, %v2032, %v2023
  %v2034 = vsel %vm2027, %v2030, %v2033
  %v2035 = vsel %vm2024, nan, %v2034
  %v2036 = vand.u32 2147483647, %v762
  %vm2037 = vcmp.le.f32.partialorder %v2036, 0.7853982
  %vm2038 = vcmp.lt.s32.totalorder %v762, 0
  %v2039 = vand.u32 %v762, 2139095040
  %v2040 = vshrl.u32 %v2039, 23
  %v2041 = vsub.s32 %v2040, 127
  %v2042 = vand.u32 2147483647, %v762
  %v2043 = vand.u32 %v2042, 8388607
  %v2044 = vor.u32 %v2043, 8388608
  %v2045 = vsub.s32 0, %v2044
  %v2046 = vadd.s32 %v2041, 1
  %vm2047 = vcmp.gt.s32.totalorder %v2046, 0
  %v2048 = vsel %vm2047, %v2046, 0
  %v2049 = vshrl.u32 %v2048, 5
  %v2050 = vand.u32 %v2048, 31
  %v2051 = vsub.s32 32, %v2050
  %v2052 = vshrl.u32 683565275, %v2051
  %v2053 = vshll.u32 683565275, %v2050
  %v2054 = vshrl.u32 2475754826, %v2051
  %v2055 = vor.u32 %v2053, %v2054
  %v2056 = vshll.u32 2475754826, %v2050
  %v2057 = vshrl.u32 2131351028, %v2051
  %v2058 = vor.u32 %v2056, %v2057
  %v2059 = vshll.u32 2131351028, %v2050
  %v2060 = vshrl.u32 2102212464, %v2051
  %v2061 = vor.u32 %v2059, %v2060
  %v2062 = vshll.u32 2102212464, %v2050
  %v2063 = vshrl.u32 920167782, %v2051
  %v2064 = vor.u32 %v2062, %v2063
  %v2065 = vshll.u32 920167782, %v2050
  %v2066 = vshrl.u32 1326507024, %v2051
  %v2067 = vor.u32 %v2065, %v2066
  %vm2068 = vcmp.lt.s32.totalorder %v2049, 1
  %vm2069 = vcmp.lt.s32.totalorder %v2049, 2
  %vm2070 = vcmp.lt.s32.totalorder %v2049, 3
  %vm2071 = vcmp.lt.s32.totalorder %v2049, 4
  %v2072 = vsel %vm2068, %v2052, %v2055
  %v2073 = vsel %vm2071, %v2061, 2102212464
  %v2074 = vsel %vm2070, %v2058, %v2073
  %v2075 = vsel %vm2069, %v2072, %v2074
  %v2076 = vsel %vm2068, %v2055, %v2058
  %v2077 = vsel %vm2071, %v2064, 920167782
  %v2078 = vsel %vm2070, %v2061, %v2077
  %v2079 = vsel %vm2069, %v2076, %v2078
  %v2080 = vsel %vm2068, %v2058, %v2061
  %v2081 = vsel %vm2071, %v2067, 1326507024
  %v2082 = vsel %vm2070, %v2064, %v2081
  %v2083 = vsel %vm2069, %v2080, %v2082
  %v2084 = vshll.u32 %v2044, 8
  %v2085 = vmul.u32.u64.compose %v2084, %v2083
  %v2086 = vextract.low.u32 %v2085
  %v2087 = vextract.high.u32 %v2085
  %v2088 = vmul.u32.u64.compose %v2084, %v2079
  %v2089 = vextract.low.u32 %v2088
  %v2090 = vextract.high.u32 %v2088
  %v2091 = vmul.u32 %v2084, %v2075
  %v2092 = vadd.s32 %v2087, %v2089
  %vm2093 = vc.u32 %v2087, %v2089
  %v2094 = vadd.s32 %v2090, 1
  %v2095 = vsel %vm2093, %v2094, %v2090
  %v2096 = vadd.s32 %v2091, %v2095
  %v2097 = vadd.s32 %v2096, 536870912
  %v2098 = vshrl.u32 %v2097, 30
  %v2099 = vshll.u32 %v2098, 30
  %v2100 = vsub.s32 %v2096, %v2099
  %vm2101 = vcmp.lt.s32.totalorder %v2100, 0
  %v2102 = vsub.s32 0, %v2100
  %v2103 = vsel %vm2101, %v2102, %v2100
  %v2104 = vclz %v2103
  %v2105 = vsub.s32 %v2104, 2
  %vm2106 = vcmp.gt.s32.totalorder 0, %v2105
  %v2107 = vsel %vm2106, 0, %v2105
  %v2108 = vsub.s32 32, %v2107
  %v2109 = vshll.u32 %v2100, %v2107
  %v2110 = vshrl.u32 %v2092, %v2108
  %v2111 = vor.u32 %v2109, %v2110
  %v2112 = vsub.s32 4294967266, %v2107
  %v2113 = vadd.s32 %v2112, 127
  %v2114 = vshll.u32 %v2113, 23
  %v2115 = vor.u32 4788187, %v2114
  %v2116 = vand.u32 2147483647, %v2115
  %v2118 = vcvt.s32.f32 %v2111
  %v2119 = vmul.f32 %v2118, %v2116
  %v2120 = vxor.u32 %v2119, 2147483648
  %v2121 = vsel %vm2038, %v2120, %v2119
  %v2122 = vsub.s32 4, %v2098
  %v2123 = vsel %vm2038, %v2122, %v2098
  %v2124 = vsel %vm2037, %v762, %v2121
  %v2125 = vsel %vm2037, 0, %v2123
  %v2126 = vcosq.f32.pop %v2124
  %v2127 = vsinq.f32.pop %v2124
  %vm2128 = vweird.f32 %v762
  %v2129 = vadd.s32 %v2125, 3
  %v2130 = vand.u32 %v2129, 3
  %vm2131 = vcmp.lt.s32.totalorder %v2130, 2
  %vm2132 = vcmp.eq.s32.totalorder %v2130, 0
  %v2133 = vxor.u32 %v2127, 2147483648
  %v2134 = vsel %vm2132, %v2126, %v2133
  %vm2135 = vcmp.eq.s32.totalorder %v2130, 2
  %v2136 = vxor.u32 %v2126, 2147483648
  %v2137 = vsel %vm2135, %v2136, %v2127
  %v2138 = vsel %vm2131, %v2134, %v2137
  %v2139 = vsel %vm2128, nan, %v2138
  %v2140 = vand.u32 2147483647, %v763
  %vm2141 = vcmp.le.f32.partialorder %v2140, 0.7853982
  %vm2142 = vcmp.lt.s32.totalorder %v763, 0
  %v2143 = vand.u32 %v763, 2139095040
  %v2144 = vshrl.u32 %v2143, 23
  %v2145 = vsub.s32 %v2144, 127
  %v2146 = vand.u32 2147483647, %v763
  %v2147 = vand.u32 %v2146, 8388607
  %v2148 = vor.u32 %v2147, 8388608
  %v2149 = vsub.s32 0, %v2148
  %v2150 = vadd.s32 %v2145, 1
  %vm2151 = vcmp.gt.s32.totalorder %v2150, 0
  %v2152 = vsel %vm2151, %v2150, 0
  %v2153 = vshrl.u32 %v2152, 5
  %v2154 = vand.u32 %v2152, 31
  %v2155 = vsub.s32 32, %v2154
  %v2156 = vshrl.u32 683565275, %v2155
  %v2157 = vshll.u32 683565275, %v2154
  %v2158 = vshrl.u32 2475754826, %v2155
  %v2159 = vor.u32 %v2157, %v2158
  %v2160 = vshll.u32 2475754826, %v2154
  %v2161 = vshrl.u32 2131351028, %v2155
  %v2162 = vor.u32 %v2160, %v2161
  %v2163 = vshll.u32 2131351028, %v2154
  %v2164 = vshrl.u32 2102212464, %v2155
  %v2165 = vor.u32 %v2163, %v2164
  %v2166 = vshll.u32 2102212464, %v2154
  %v2167 = vshrl.u32 920167782, %v2155
  %v2168 = vor.u32 %v2166, %v2167
  %v2169 = vshll.u32 920167782, %v2154
  %v2170 = vshrl.u32 1326507024, %v2155
  %v2171 = vor.u32 %v2169, %v2170
  %vm2172 = vcmp.lt.s32.totalorder %v2153, 1
  %vm2173 = vcmp.lt.s32.totalorder %v2153, 2
  %vm2174 = vcmp.lt.s32.totalorder %v2153, 3
  %vm2175 = vcmp.lt.s32.totalorder %v2153, 4
  %v2176 = vsel %vm2172, %v2156, %v2159
  %v2177 = vsel %vm2175, %v2165, 2102212464
  %v2178 = vsel %vm2174, %v2162, %v2177
  %v2179 = vsel %vm2173, %v2176, %v2178
  %v2180 = vsel %vm2172, %v2159, %v2162
  %v2181 = vsel %vm2175, %v2168, 920167782
  %v2182 = vsel %vm2174, %v2165, %v2181
  %v2183 = vsel %vm2173, %v2180, %v2182
  %v2184 = vsel %vm2172, %v2162, %v2165
  %v2185 = vsel %vm2175, %v2171, 1326507024
  %v2186 = vsel %vm2174, %v2168, %v2185
  %v2187 = vsel %vm2173, %v2184, %v2186
  %v2188 = vshll.u32 %v2148, 8
  %v2189 = vmul.u32.u64.compose %v2188, %v2187
  %v2190 = vextract.low.u32 %v2189
  %v2191 = vextract.high.u32 %v2189
  %v2192 = vmul.u32.u64.compose %v2188, %v2183
  %v2193 = vextract.low.u32 %v2192
  %v2194 = vextract.high.u32 %v2192
  %v2195 = vmul.u32 %v2188, %v2179
  %v2196 = vadd.s32 %v2191, %v2193
  %vm2197 = vc.u32 %v2191, %v2193
  %v2198 = vadd.s32 %v2194, 1
  %v2199 = vsel %vm2197, %v2198, %v2194
  %v2200 = vadd.s32 %v2195, %v2199
  %v2201 = vadd.s32 %v2200, 536870912
  %v2202 = vshrl.u32 %v2201, 30
  %v2203 = vshll.u32 %v2202, 30
  %v2204 = vsub.s32 %v2200, %v2203
  %vm2205 = vcmp.lt.s32.totalorder %v2204, 0
  %v2206 = vsub.s32 0, %v2204
  %v2207 = vsel %vm2205, %v2206, %v2204
  %v2208 = vclz %v2207
  %v2209 = vsub.s32 %v2208, 2
  %vm2210 = vcmp.gt.s32.totalorder 0, %v2209
  %v2211 = vsel %vm2210, 0, %v2209
  %v2212 = vsub.s32 32, %v2211
  %v2213 = vshll.u32 %v2204, %v2211
  %v2214 = vshrl.u32 %v2196, %v2212
  %v2215 = vor.u32 %v2213, %v2214
  %v2216 = vsub.s32 4294967266, %v2211
  %v2217 = vadd.s32 %v2216, 127
  %v2218 = vshll.u32 %v2217, 23
  %v2219 = vor.u32 4788187, %v2218
  %v2220 = vand.u32 2147483647, %v2219
  %v2222 = vcvt.s32.f32 %v2215
  %v2223 = vmul.f32 %v2222, %v2220
  %v2224 = vxor.u32 %v2223, 2147483648
  %v2225 = vsel %vm2142, %v2224, %v2223
  %v2226 = vsub.s32 4, %v2202
  %v2227 = vsel %vm2142, %v2226, %v2202
  %v2228 = vsel %vm2141, %v763, %v2225
  %v2229 = vsel %vm2141, 0, %v2227
  %v2230 = vcosq.f32.pop %v2228
  %v2231 = vsinq.f32.pop %v2228
  %vm2232 = vweird.f32 %v763
  %v2233 = vadd.s32 %v2229, 3
  %v2234 = vand.u32 %v2233, 3
  %vm2235 = vcmp.lt.s32.totalorder %v2234, 2
  %vm2236 = vcmp.eq.s32.totalorder %v2234, 0
  %v2237 = vxor.u32 %v2231, 2147483648
  %v2238 = vsel %vm2236, %v2230, %v2237
  %vm2239 = vcmp.eq.s32.totalorder %v2234, 2
  %v2240 = vxor.u32 %v2230, 2147483648
  %v2241 = vsel %vm2239, %v2240, %v2231
  %v2242 = vsel %vm2235, %v2238, %v2241
  %v2243 = vsel %vm2232, nan, %v2242
  %v2244 = vand.u32 2147483647, %v764
  %vm2245 = vcmp.le.f32.partialorder %v2244, 0.7853982
  %vm2246 = vcmp.lt.s32.totalorder %v764, 0
  %v2247 = vand.u32 %v764, 2139095040
  %v2248 = vshrl.u32 %v2247, 23
  %v2249 = vsub.s32 %v2248, 127
  %v2250 = vand.u32 2147483647, %v764
  %v2251 = vand.u32 %v2250, 8388607
  %v2252 = vor.u32 %v2251, 8388608
  %v2253 = vsub.s32 0, %v2252
  %v2254 = vadd.s32 %v2249, 1
  %vm2255 = vcmp.gt.s32.totalorder %v2254, 0
  %v2256 = vsel %vm2255, %v2254, 0
  %v2257 = vshrl.u32 %v2256, 5
  %v2258 = vand.u32 %v2256, 31
  %v2259 = vsub.s32 32, %v2258
  %v2260 = vshrl.u32 683565275, %v2259
  %v2261 = vshll.u32 683565275, %v2258
  %v2262 = vshrl.u32 2475754826, %v2259
  %v2263 = vor.u32 %v2261, %v2262
  %v2264 = vshll.u32 2475754826, %v2258
  %v2265 = vshrl.u32 2131351028, %v2259
  %v2266 = vor.u32 %v2264, %v2265
  %v2267 = vshll.u32 2131351028, %v2258
  %v2268 = vshrl.u32 2102212464, %v2259
  %v2269 = vor.u32 %v2267, %v2268
  %v2270 = vshll.u32 2102212464, %v2258
  %v2271 = vshrl.u32 920167782, %v2259
  %v2272 = vor.u32 %v2270, %v2271
  %v2273 = vshll.u32 920167782, %v2258
  %v2274 = vshrl.u32 1326507024, %v2259
  %v2275 = vor.u32 %v2273, %v2274
  %vm2276 = vcmp.lt.s32.totalorder %v2257, 1
  %vm2277 = vcmp.lt.s32.totalorder %v2257, 2
  %vm2278 = vcmp.lt.s32.totalorder %v2257, 3
  %vm2279 = vcmp.lt.s32.totalorder %v2257, 4
  %v2280 = vsel %vm2276, %v2260, %v2263
  %v2281 = vsel %vm2279, %v2269, 2102212464
  %v2282 = vsel %vm2278, %v2266, %v2281
  %v2283 = vsel %vm2277, %v2280, %v2282
  %v2284 = vsel %vm2276, %v2263, %v2266
  %v2285 = vsel %vm2279, %v2272, 920167782
  %v2286 = vsel %vm2278, %v2269, %v2285
  %v2287 = vsel %vm2277, %v2284, %v2286
  %v2288 = vsel %vm2276, %v2266, %v2269
  %v2289 = vsel %vm2279, %v2275, 1326507024
  %v2290 = vsel %vm2278, %v2272, %v2289
  %v2291 = vsel %vm2277, %v2288, %v2290
  %v2292 = vshll.u32 %v2252, 8
  %v2293 = vmul.u32.u64.compose %v2292, %v2291
  %v2294 = vextract.low.u32 %v2293
  %v2295 = vextract.high.u32 %v2293
  %v2296 = vmul.u32.u64.compose %v2292, %v2287
  %v2297 = vextract.low.u32 %v2296
  %v2298 = vextract.high.u32 %v2296
  %v2299 = vmul.u32 %v2292, %v2283
  %v2300 = vadd.s32 %v2295, %v2297
  %vm2301 = vc.u32 %v2295, %v2297
  %v2302 = vadd.s32 %v2298, 1
  %v2303 = vsel %vm2301, %v2302, %v2298
  %v2304 = vadd.s32 %v2299, %v2303
  %v2305 = vadd.s32 %v2304, 536870912
  %v2306 = vshrl.u32 %v2305, 30
  %v2307 = vshll.u32 %v2306, 30
  %v2308 = vsub.s32 %v2304, %v2307
  %vm2309 = vcmp.lt.s32.totalorder %v2308, 0
  %v2310 = vsub.s32 0, %v2308
  %v2311 = vsel %vm2309, %v2310, %v2308
  %v2312 = vclz %v2311
  %v2313 = vsub.s32 %v2312, 2
  %vm2314 = vcmp.gt.s32.totalorder 0, %v2313
  %v2315 = vsel %vm2314, 0, %v2313
  %v2316 = vsub.s32 32, %v2315
  %v2317 = vshll.u32 %v2308, %v2315
  %v2318 = vshrl.u32 %v2300, %v2316
  %v2319 = vor.u32 %v2317, %v2318
  %v2320 = vsub.s32 4294967266, %v2315
  %v2321 = vadd.s32 %v2320, 127
  %v2322 = vshll.u32 %v2321, 23
  %v2323 = vor.u32 4788187, %v2322
  %v2324 = vand.u32 2147483647, %v2323
  %v2326 = vcvt.s32.f32 %v2319
  %v2327 = vmul.f32 %v2326, %v2324
  %v2328 = vxor.u32 %v2327, 2147483648
  %v2329 = vsel %vm2246, %v2328, %v2327
  %v2330 = vsub.s32 4, %v2306
  %v2331 = vsel %vm2246, %v2330, %v2306
  %v2332 = vsel %vm2245, %v764, %v2329
  %v2333 = vsel %vm2245, 0, %v2331
  %v2334 = vcosq.f32.pop %v2332
  %v2335 = vsinq.f32.pop %v2332
  %vm2336 = vweird.f32 %v764
  %v2337 = vadd.s32 %v2333, 3
  %v2338 = vand.u32 %v2337, 3
  %vm2339 = vcmp.lt.s32.totalorder %v2338, 2
  %vm2340 = vcmp.eq.s32.totalorder %v2338, 0
  %v2341 = vxor.u32 %v2335, 2147483648
  %v2342 = vsel %vm2340, %v2334, %v2341
  %vm2343 = vcmp.eq.s32.totalorder %v2338, 2
  %v2344 = vxor.u32 %v2334, 2147483648
  %v2345 = vsel %vm2343, %v2344, %v2335
  %v2346 = vsel %vm2339, %v2342, %v2345
  %v2347 = vsel %vm2336, nan, %v2346
  %v2348 = vand.u32 2147483647, %v765
  %vm2349 = vcmp.le.f32.partialorder %v2348, 0.7853982
  %vm2350 = vcmp.lt.s32.totalorder %v765, 0
  %v2351 = vand.u32 %v765, 2139095040
  %v2352 = vshrl.u32 %v2351, 23
  %v2353 = vsub.s32 %v2352, 127
  %v2354 = vand.u32 2147483647, %v765
  %v2355 = vand.u32 %v2354, 8388607
  %v2356 = vor.u32 %v2355, 8388608
  %v2357 = vsub.s32 0, %v2356
  %v2358 = vadd.s32 %v2353, 1
  %vm2359 = vcmp.gt.s32.totalorder %v2358, 0
  %v2360 = vsel %vm2359, %v2358, 0
  %v2361 = vshrl.u32 %v2360, 5
  %v2362 = vand.u32 %v2360, 31
  %v2363 = vsub.s32 32, %v2362
  %v2364 = vshrl.u32 683565275, %v2363
  %v2365 = vshll.u32 683565275, %v2362
  %v2366 = vshrl.u32 2475754826, %v2363
  %v2367 = vor.u32 %v2365, %v2366
  %v2368 = vshll.u32 2475754826, %v2362
  %v2369 = vshrl.u32 2131351028, %v2363
  %v2370 = vor.u32 %v2368, %v2369
  %v2371 = vshll.u32 2131351028, %v2362
  %v2372 = vshrl.u32 2102212464, %v2363
  %v2373 = vor.u32 %v2371, %v2372
  %v2374 = vshll.u32 2102212464, %v2362
  %v2375 = vshrl.u32 920167782, %v2363
  %v2376 = vor.u32 %v2374, %v2375
  %v2377 = vshll.u32 920167782, %v2362
  %v2378 = vshrl.u32 1326507024, %v2363
  %v2379 = vor.u32 %v2377, %v2378
  %vm2380 = vcmp.lt.s32.totalorder %v2361, 1
  %vm2381 = vcmp.lt.s32.totalorder %v2361, 2
  %vm2382 = vcmp.lt.s32.totalorder %v2361, 3
  %vm2383 = vcmp.lt.s32.totalorder %v2361, 4
  %v2384 = vsel %vm2380, %v2364, %v2367
  %v2385 = vsel %vm2383, %v2373, 2102212464
  %v2386 = vsel %vm2382, %v2370, %v2385
  %v2387 = vsel %vm2381, %v2384, %v2386
  %v2388 = vsel %vm2380, %v2367, %v2370
  %v2389 = vsel %vm2383, %v2376, 920167782
  %v2390 = vsel %vm2382, %v2373, %v2389
  %v2391 = vsel %vm2381, %v2388, %v2390
  %v2392 = vsel %vm2380, %v2370, %v2373
  %v2393 = vsel %vm2383, %v2379, 1326507024
  %v2394 = vsel %vm2382, %v2376, %v2393
  %v2395 = vsel %vm2381, %v2392, %v2394
  %v2396 = vshll.u32 %v2356, 8
  %v2397 = vmul.u32.u64.compose %v2396, %v2395
  %v2398 = vextract.low.u32 %v2397
  %v2399 = vextract.high.u32 %v2397
  %v2400 = vmul.u32.u64.compose %v2396, %v2391
  %v2401 = vextract.low.u32 %v2400
  %v2402 = vextract.high.u32 %v2400
  %v2403 = vmul.u32 %v2396, %v2387
  %v2404 = vadd.s32 %v2399, %v2401
  %vm2405 = vc.u32 %v2399, %v2401
  %v2406 = vadd.s32 %v2402, 1
  %v2407 = vsel %vm2405, %v2406, %v2402
  %v2408 = vadd.s32 %v2403, %v2407
  %v2409 = vadd.s32 %v2408, 536870912
  %v2410 = vshrl.u32 %v2409, 30
  %v2411 = vshll.u32 %v2410, 30
  %v2412 = vsub.s32 %v2408, %v2411
  %vm2413 = vcmp.lt.s32.totalorder %v2412, 0
  %v2414 = vsub.s32 0, %v2412
  %v2415 = vsel %vm2413, %v2414, %v2412
  %v2416 = vclz %v2415
  %v2417 = vsub.s32 %v2416, 2
  %vm2418 = vcmp.gt.s32.totalorder 0, %v2417
  %v2419 = vsel %vm2418, 0, %v2417
  %v2420 = vsub.s32 32, %v2419
  %v2421 = vshll.u32 %v2412, %v2419
  %v2422 = vshrl.u32 %v2404, %v2420
  %v2423 = vor.u32 %v2421, %v2422
  %v2424 = vsub.s32 4294967266, %v2419
  %v2425 = vadd.s32 %v2424, 127
  %v2426 = vshll.u32 %v2425, 23
  %v2427 = vor.u32 4788187, %v2426
  %v2428 = vand.u32 2147483647, %v2427
  %v2430 = vcvt.s32.f32 %v2423
  %v2431 = vmul.f32 %v2430, %v2428
  %v2432 = vxor.u32 %v2431, 2147483648
  %v2433 = vsel %vm2350, %v2432, %v2431
  %v2434 = vsub.s32 4, %v2410
  %v2435 = vsel %vm2350, %v2434, %v2410
  %v2436 = vsel %vm2349, %v765, %v2433
  %v2437 = vsel %vm2349, 0, %v2435
  %v2438 = vcosq.f32.pop %v2436
  %v2439 = vsinq.f32.pop %v2436
  %vm2440 = vweird.f32 %v765
  %v2441 = vadd.s32 %v2437, 3
  %v2442 = vand.u32 %v2441, 3
  %vm2443 = vcmp.lt.s32.totalorder %v2442, 2
  %vm2444 = vcmp.eq.s32.totalorder %v2442, 0
  %v2445 = vxor.u32 %v2439, 2147483648
  %v2446 = vsel %vm2444, %v2438, %v2445
  %vm2447 = vcmp.eq.s32.totalorder %v2442, 2
  %v2448 = vxor.u32 %v2438, 2147483648
  %v2449 = vsel %vm2447, %v2448, %v2439
  %v2450 = vsel %vm2443, %v2446, %v2449
  %v2451 = vsel %vm2440, nan, %v2450
  %v2452 = vand.u32 2147483647, %v766
  %vm2453 = vcmp.le.f32.partialorder %v2452, 0.7853982
  %vm2454 = vcmp.lt.s32.totalorder %v766, 0
  %v2455 = vand.u32 %v766, 2139095040
  %v2456 = vshrl.u32 %v2455, 23
  %v2457 = vsub.s32 %v2456, 127
  %v2458 = vand.u32 2147483647, %v766
  %v2459 = vand.u32 %v2458, 8388607
  %v2460 = vor.u32 %v2459, 8388608
  %v2461 = vsub.s32 0, %v2460
  %v2462 = vadd.s32 %v2457, 1
  %vm2463 = vcmp.gt.s32.totalorder %v2462, 0
  %v2464 = vsel %vm2463, %v2462, 0
  %v2465 = vshrl.u32 %v2464, 5
  %v2466 = vand.u32 %v2464, 31
  %v2467 = vsub.s32 32, %v2466
  %v2468 = vshrl.u32 683565275, %v2467
  %v2469 = vshll.u32 683565275, %v2466
  %v2470 = vshrl.u32 2475754826, %v2467
  %v2471 = vor.u32 %v2469, %v2470
  %v2472 = vshll.u32 2475754826, %v2466
  %v2473 = vshrl.u32 2131351028, %v2467
  %v2474 = vor.u32 %v2472, %v2473
  %v2475 = vshll.u32 2131351028, %v2466
  %v2476 = vshrl.u32 2102212464, %v2467
  %v2477 = vor.u32 %v2475, %v2476
  %v2478 = vshll.u32 2102212464, %v2466
  %v2479 = vshrl.u32 920167782, %v2467
  %v2480 = vor.u32 %v2478, %v2479
  %v2481 = vshll.u32 920167782, %v2466
  %v2482 = vshrl.u32 1326507024, %v2467
  %v2483 = vor.u32 %v2481, %v2482
  %vm2484 = vcmp.lt.s32.totalorder %v2465, 1
  %vm2485 = vcmp.lt.s32.totalorder %v2465, 2
  %vm2486 = vcmp.lt.s32.totalorder %v2465, 3
  %vm2487 = vcmp.lt.s32.totalorder %v2465, 4
  %v2488 = vsel %vm2484, %v2468, %v2471
  %v2489 = vsel %vm2487, %v2477, 2102212464
  %v2490 = vsel %vm2486, %v2474, %v2489
  %v2491 = vsel %vm2485, %v2488, %v2490
  %v2492 = vsel %vm2484, %v2471, %v2474
  %v2493 = vsel %vm2487, %v2480, 920167782
  %v2494 = vsel %vm2486, %v2477, %v2493
  %v2495 = vsel %vm2485, %v2492, %v2494
  %v2496 = vsel %vm2484, %v2474, %v2477
  %v2497 = vsel %vm2487, %v2483, 1326507024
  %v2498 = vsel %vm2486, %v2480, %v2497
  %v2499 = vsel %vm2485, %v2496, %v2498
  %v2500 = vshll.u32 %v2460, 8
  %v2501 = vmul.u32.u64.compose %v2500, %v2499
  %v2502 = vextract.low.u32 %v2501
  %v2503 = vextract.high.u32 %v2501
  %v2504 = vmul.u32.u64.compose %v2500, %v2495
  %v2505 = vextract.low.u32 %v2504
  %v2506 = vextract.high.u32 %v2504
  %v2507 = vmul.u32 %v2500, %v2491
  %v2508 = vadd.s32 %v2503, %v2505
  %vm2509 = vc.u32 %v2503, %v2505
  %v2510 = vadd.s32 %v2506, 1
  %v2511 = vsel %vm2509, %v2510, %v2506
  %v2512 = vadd.s32 %v2507, %v2511
  %v2513 = vadd.s32 %v2512, 536870912
  %v2514 = vshrl.u32 %v2513, 30
  %v2515 = vshll.u32 %v2514, 30
  %v2516 = vsub.s32 %v2512, %v2515
  %vm2517 = vcmp.lt.s32.totalorder %v2516, 0
  %v2518 = vsub.s32 0, %v2516
  %v2519 = vsel %vm2517, %v2518, %v2516
  %v2520 = vclz %v2519
  %v2521 = vsub.s32 %v2520, 2
  %vm2522 = vcmp.gt.s32.totalorder 0, %v2521
  %v2523 = vsel %vm2522, 0, %v2521
  %v2524 = vsub.s32 32, %v2523
  %v2525 = vshll.u32 %v2516, %v2523
  %v2526 = vshrl.u32 %v2508, %v2524
  %v2527 = vor.u32 %v2525, %v2526
  %v2528 = vsub.s32 4294967266, %v2523
  %v2529 = vadd.s32 %v2528, 127
  %v2530 = vshll.u32 %v2529, 23
  %v2531 = vor.u32 4788187, %v2530
  %v2532 = vand.u32 2147483647, %v2531
  %v2534 = vcvt.s32.f32 %v2527
  %v2535 = vmul.f32 %v2534, %v2532
  %v2536 = vxor.u32 %v2535, 2147483648
  %v2537 = vsel %vm2454, %v2536, %v2535
  %v2538 = vsub.s32 4, %v2514
  %v2539 = vsel %vm2454, %v2538, %v2514
  %v2540 = vsel %vm2453, %v766, %v2537
  %v2541 = vsel %vm2453, 0, %v2539
  %v2542 = vcosq.f32.pop %v2540
  %v2543 = vsinq.f32.pop %v2540
  %vm2544 = vweird.f32 %v766
  %v2545 = vadd.s32 %v2541, 3
  %v2546 = vand.u32 %v2545, 3
  %vm2547 = vcmp.lt.s32.totalorder %v2546, 2
  %vm2548 = vcmp.eq.s32.totalorder %v2546, 0
  %v2549 = vxor.u32 %v2543, 2147483648
  %v2550 = vsel %vm2548, %v2542, %v2549
  %vm2551 = vcmp.eq.s32.totalorder %v2546, 2
  %v2552 = vxor.u32 %v2542, 2147483648
  %v2553 = vsel %vm2551, %v2552, %v2543
  %v2554 = vsel %vm2547, %v2550, %v2553
  %v2555 = vsel %vm2544, nan, %v2554
  %v2556 = vand.u32 2147483647, %v767
  %vm2557 = vcmp.le.f32.partialorder %v2556, 0.7853982
  %vm2558 = vcmp.lt.s32.totalorder %v767, 0
  %v2559 = vand.u32 %v767, 2139095040
  %v2560 = vshrl.u32 %v2559, 23
  %v2561 = vsub.s32 %v2560, 127
  %v2562 = vand.u32 2147483647, %v767
  %v2563 = vand.u32 %v2562, 8388607
  %v2564 = vor.u32 %v2563, 8388608
  %v2565 = vsub.s32 0, %v2564
  %v2566 = vadd.s32 %v2561, 1
  %vm2567 = vcmp.gt.s32.totalorder %v2566, 0
  %v2568 = vsel %vm2567, %v2566, 0
  %v2569 = vshrl.u32 %v2568, 5
  %v2570 = vand.u32 %v2568, 31
  %v2571 = vsub.s32 32, %v2570
  %v2572 = vshrl.u32 683565275, %v2571
  %v2573 = vshll.u32 683565275, %v2570
  %v2574 = vshrl.u32 2475754826, %v2571
  %v2575 = vor.u32 %v2573, %v2574
  %v2576 = vshll.u32 2475754826, %v2570
  %v2577 = vshrl.u32 2131351028, %v2571
  %v2578 = vor.u32 %v2576, %v2577
  %v2579 = vshll.u32 2131351028, %v2570
  %v2580 = vshrl.u32 2102212464, %v2571
  %v2581 = vor.u32 %v2579, %v2580
  %v2582 = vshll.u32 2102212464, %v2570
  %v2583 = vshrl.u32 920167782, %v2571
  %v2584 = vor.u32 %v2582, %v2583
  %v2585 = vshll.u32 920167782, %v2570
  %v2586 = vshrl.u32 1326507024, %v2571
  %v2587 = vor.u32 %v2585, %v2586
  %vm2588 = vcmp.lt.s32.totalorder %v2569, 1
  %vm2589 = vcmp.lt.s32.totalorder %v2569, 2
  %vm2590 = vcmp.lt.s32.totalorder %v2569, 3
  %vm2591 = vcmp.lt.s32.totalorder %v2569, 4
  %v2592 = vsel %vm2588, %v2572, %v2575
  %v2593 = vsel %vm2591, %v2581, 2102212464
  %v2594 = vsel %vm2590, %v2578, %v2593
  %v2595 = vsel %vm2589, %v2592, %v2594
  %v2596 = vsel %vm2588, %v2575, %v2578
  %v2597 = vsel %vm2591, %v2584, 920167782
  %v2598 = vsel %vm2590, %v2581, %v2597
  %v2599 = vsel %vm2589, %v2596, %v2598
  %v2600 = vsel %vm2588, %v2578, %v2581
  %v2601 = vsel %vm2591, %v2587, 1326507024
  %v2602 = vsel %vm2590, %v2584, %v2601
  %v2603 = vsel %vm2589, %v2600, %v2602
  %v2604 = vshll.u32 %v2564, 8
  %v2605 = vmul.u32.u64.compose %v2604, %v2603
  %v2606 = vextract.low.u32 %v2605
  %v2607 = vextract.high.u32 %v2605
  %v2608 = vmul.u32.u64.compose %v2604, %v2599
  %v2609 = vextract.low.u32 %v2608
  %v2610 = vextract.high.u32 %v2608
  %v2611 = vmul.u32 %v2604, %v2595
  %v2612 = vadd.s32 %v2607, %v2609
  %vm2613 = vc.u32 %v2607, %v2609
  %v2614 = vadd.s32 %v2610, 1
  %v2615 = vsel %vm2613, %v2614, %v2610
  %v2616 = vadd.s32 %v2611, %v2615
  %v2617 = vadd.s32 %v2616, 536870912
  %v2618 = vshrl.u32 %v2617, 30
  %v2619 = vshll.u32 %v2618, 30
  %v2620 = vsub.s32 %v2616, %v2619
  %vm2621 = vcmp.lt.s32.totalorder %v2620, 0
  %v2622 = vsub.s32 0, %v2620
  %v2623 = vsel %vm2621, %v2622, %v2620
  %v2624 = vclz %v2623
  %v2625 = vsub.s32 %v2624, 2
  %vm2626 = vcmp.gt.s32.totalorder 0, %v2625
  %v2627 = vsel %vm2626, 0, %v2625
  %v2628 = vsub.s32 32, %v2627
  %v2629 = vshll.u32 %v2620, %v2627
  %v2630 = vshrl.u32 %v2612, %v2628
  %v2631 = vor.u32 %v2629, %v2630
  %v2632 = vsub.s32 4294967266, %v2627
  %v2633 = vadd.s32 %v2632, 127
  %v2634 = vshll.u32 %v2633, 23
  %v2635 = vor.u32 4788187, %v2634
  %v2636 = vand.u32 2147483647, %v2635
  %v2638 = vcvt.s32.f32 %v2631
  %v2639 = vmul.f32 %v2638, %v2636
  %v2640 = vxor.u32 %v2639, 2147483648
  %v2641 = vsel %vm2558, %v2640, %v2639
  %v2642 = vsub.s32 4, %v2618
  %v2643 = vsel %vm2558, %v2642, %v2618
  %v2644 = vsel %vm2557, %v767, %v2641
  %v2645 = vsel %vm2557, 0, %v2643
  %v2646 = vcosq.f32.pop %v2644
  %v2647 = vsinq.f32.pop %v2644
  %vm2648 = vweird.f32 %v767
  %v2649 = vadd.s32 %v2645, 3
  %v2650 = vand.u32 %v2649, 3
  %vm2651 = vcmp.lt.s32.totalorder %v2650, 2
  %vm2652 = vcmp.eq.s32.totalorder %v2650, 0
  %v2653 = vxor.u32 %v2647, 2147483648
  %v2654 = vsel %vm2652, %v2646, %v2653
  %vm2655 = vcmp.eq.s32.totalorder %v2650, 2
  %v2656 = vxor.u32 %v2646, 2147483648
  %v2657 = vsel %vm2655, %v2656, %v2647
  %v2658 = vsel %vm2651, %v2654, %v2657
  %v2659 = vsel %vm2648, nan, %v2658
  %v2660 = vand.u32 2147483647, %v768
  %vm2661 = vcmp.le.f32.partialorder %v2660, 0.7853982
  %vm2662 = vcmp.lt.s32.totalorder %v768, 0
  %v2663 = vand.u32 %v768, 2139095040
  %v2664 = vshrl.u32 %v2663, 23
  %v2665 = vsub.s32 %v2664, 127
  %v2666 = vand.u32 2147483647, %v768
  %v2667 = vand.u32 %v2666, 8388607
  %v2668 = vor.u32 %v2667, 8388608
  %v2669 = vsub.s32 0, %v2668
  %v2670 = vadd.s32 %v2665, 1
  %vm2671 = vcmp.gt.s32.totalorder %v2670, 0
  %v2672 = vsel %vm2671, %v2670, 0
  %v2673 = vshrl.u32 %v2672, 5
  %v2674 = vand.u32 %v2672, 31
  %v2675 = vsub.s32 32, %v2674
  %v2676 = vshrl.u32 683565275, %v2675
  %v2677 = vshll.u32 683565275, %v2674
  %v2678 = vshrl.u32 2475754826, %v2675
  %v2679 = vor.u32 %v2677, %v2678
  %v2680 = vshll.u32 2475754826, %v2674
  %v2681 = vshrl.u32 2131351028, %v2675
  %v2682 = vor.u32 %v2680, %v2681
  %v2683 = vshll.u32 2131351028, %v2674
  %v2684 = vshrl.u32 2102212464, %v2675
  %v2685 = vor.u32 %v2683, %v2684
  %v2686 = vshll.u32 2102212464, %v2674
  %v2687 = vshrl.u32 920167782, %v2675
  %v2688 = vor.u32 %v2686, %v2687
  %v2689 = vshll.u32 920167782, %v2674
  %v2690 = vshrl.u32 1326507024, %v2675
  %v2691 = vor.u32 %v2689, %v2690
  %vm2692 = vcmp.lt.s32.totalorder %v2673, 1
  %vm2693 = vcmp.lt.s32.totalorder %v2673, 2
  %vm2694 = vcmp.lt.s32.totalorder %v2673, 3
  %vm2695 = vcmp.lt.s32.totalorder %v2673, 4
  %v2696 = vsel %vm2692, %v2676, %v2679
  %v2697 = vsel %vm2695, %v2685, 2102212464
  %v2698 = vsel %vm2694, %v2682, %v2697
  %v2699 = vsel %vm2693, %v2696, %v2698
  %v2700 = vsel %vm2692, %v2679, %v2682
  %v2701 = vsel %vm2695, %v2688, 920167782
  %v2702 = vsel %vm2694, %v2685, %v2701
  %v2703 = vsel %vm2693, %v2700, %v2702
  %v2704 = vsel %vm2692, %v2682, %v2685
  %v2705 = vsel %vm2695, %v2691, 1326507024
  %v2706 = vsel %vm2694, %v2688, %v2705
  %v2707 = vsel %vm2693, %v2704, %v2706
  %v2708 = vshll.u32 %v2668, 8
  %v2709 = vmul.u32.u64.compose %v2708, %v2707
  %v2710 = vextract.low.u32 %v2709
  %v2711 = vextract.high.u32 %v2709
  %v2712 = vmul.u32.u64.compose %v2708, %v2703
  %v2713 = vextract.low.u32 %v2712
  %v2714 = vextract.high.u32 %v2712
  %v2715 = vmul.u32 %v2708, %v2699
  %v2716 = vadd.s32 %v2711, %v2713
  %vm2717 = vc.u32 %v2711, %v2713
  %v2718 = vadd.s32 %v2714, 1
  %v2719 = vsel %vm2717, %v2718, %v2714
  %v2720 = vadd.s32 %v2715, %v2719
  %v2721 = vadd.s32 %v2720, 536870912
  %v2722 = vshrl.u32 %v2721, 30
  %v2723 = vshll.u32 %v2722, 30
  %v2724 = vsub.s32 %v2720, %v2723
  %vm2725 = vcmp.lt.s32.totalorder %v2724, 0
  %v2726 = vsub.s32 0, %v2724
  %v2727 = vsel %vm2725, %v2726, %v2724
  %v2728 = vclz %v2727
  %v2729 = vsub.s32 %v2728, 2
  %vm2730 = vcmp.gt.s32.totalorder 0, %v2729
  %v2731 = vsel %vm2730, 0, %v2729
  %v2732 = vsub.s32 32, %v2731
  %v2733 = vshll.u32 %v2724, %v2731
  %v2734 = vshrl.u32 %v2716, %v2732
  %v2735 = vor.u32 %v2733, %v2734
  %v2736 = vsub.s32 4294967266, %v2731
  %v2737 = vadd.s32 %v2736, 127
  %v2738 = vshll.u32 %v2737, 23
  %v2739 = vor.u32 4788187, %v2738
  %v2740 = vand.u32 2147483647, %v2739
  %v2742 = vcvt.s32.f32 %v2735
  %v2743 = vmul.f32 %v2742, %v2740
  %v2744 = vxor.u32 %v2743, 2147483648
  %v2745 = vsel %vm2662, %v2744, %v2743
  %v2746 = vsub.s32 4, %v2722
  %v2747 = vsel %vm2662, %v2746, %v2722
  %v2748 = vsel %vm2661, %v768, %v2745
  %v2749 = vsel %vm2661, 0, %v2747
  %v2750 = vcosq.f32.pop %v2748
  %v2751 = vsinq.f32.pop %v2748
  %vm2752 = vweird.f32 %v768
  %v2753 = vadd.s32 %v2749, 3
  %v2754 = vand.u32 %v2753, 3
  %vm2755 = vcmp.lt.s32.totalorder %v2754, 2
  %vm2756 = vcmp.eq.s32.totalorder %v2754, 0
  %v2757 = vxor.u32 %v2751, 2147483648
  %v2758 = vsel %vm2756, %v2750, %v2757
  %vm2759 = vcmp.eq.s32.totalorder %v2754, 2
  %v2760 = vxor.u32 %v2750, 2147483648
  %v2761 = vsel %vm2759, %v2760, %v2751
  %v2762 = vsel %vm2755, %v2758, %v2761
  %v2763 = vsel %vm2752, nan, %v2762
  %v2764 = vand.u32 2147483647, %v769
  %vm2765 = vcmp.le.f32.partialorder %v2764, 0.7853982
  %vm2766 = vcmp.lt.s32.totalorder %v769, 0
  %v2767 = vand.u32 %v769, 2139095040
  %v2768 = vshrl.u32 %v2767, 23
  %v2769 = vsub.s32 %v2768, 127
  %v2770 = vand.u32 2147483647, %v769
  %v2771 = vand.u32 %v2770, 8388607
  %v2772 = vor.u32 %v2771, 8388608
  %v2773 = vsub.s32 0, %v2772
  %v2774 = vadd.s32 %v2769, 1
  %vm2775 = vcmp.gt.s32.totalorder %v2774, 0
  %v2776 = vsel %vm2775, %v2774, 0
  %v2777 = vshrl.u32 %v2776, 5
  %v2778 = vand.u32 %v2776, 31
  %v2779 = vsub.s32 32, %v2778
  %v2780 = vshrl.u32 683565275, %v2779
  %v2781 = vshll.u32 683565275, %v2778
  %v2782 = vshrl.u32 2475754826, %v2779
  %v2783 = vor.u32 %v2781, %v2782
  %v2784 = vshll.u32 2475754826, %v2778
  %v2785 = vshrl.u32 2131351028, %v2779
  %v2786 = vor.u32 %v2784, %v2785
  %v2787 = vshll.u32 2131351028, %v2778
  %v2788 = vshrl.u32 2102212464, %v2779
  %v2789 = vor.u32 %v2787, %v2788
  %v2790 = vshll.u32 2102212464, %v2778
  %v2791 = vshrl.u32 920167782, %v2779
  %v2792 = vor.u32 %v2790, %v2791
  %v2793 = vshll.u32 920167782, %v2778
  %v2794 = vshrl.u32 1326507024, %v2779
  %v2795 = vor.u32 %v2793, %v2794
  %vm2796 = vcmp.lt.s32.totalorder %v2777, 1
  %vm2797 = vcmp.lt.s32.totalorder %v2777, 2
  %vm2798 = vcmp.lt.s32.totalorder %v2777, 3
  %vm2799 = vcmp.lt.s32.totalorder %v2777, 4
  %v2800 = vsel %vm2796, %v2780, %v2783
  %v2801 = vsel %vm2799, %v2789, 2102212464
  %v2802 = vsel %vm2798, %v2786, %v2801
  %v2803 = vsel %vm2797, %v2800, %v2802
  %v2804 = vsel %vm2796, %v2783, %v2786
  %v2805 = vsel %vm2799, %v2792, 920167782
  %v2806 = vsel %vm2798, %v2789, %v2805
  %v2807 = vsel %vm2797, %v2804, %v2806
  %v2808 = vsel %vm2796, %v2786, %v2789
  %v2809 = vsel %vm2799, %v2795, 1326507024
  %v2810 = vsel %vm2798, %v2792, %v2809
  %v2811 = vsel %vm2797, %v2808, %v2810
  %v2812 = vshll.u32 %v2772, 8
  %v2813 = vmul.u32.u64.compose %v2812, %v2811
  %v2814 = vextract.low.u32 %v2813
  %v2815 = vextract.high.u32 %v2813
  %v2816 = vmul.u32.u64.compose %v2812, %v2807
  %v2817 = vextract.low.u32 %v2816
  %v2818 = vextract.high.u32 %v2816
  %v2819 = vmul.u32 %v2812, %v2803
  %v2820 = vadd.s32 %v2815, %v2817
  %vm2821 = vc.u32 %v2815, %v2817
  %v2822 = vadd.s32 %v2818, 1
  %v2823 = vsel %vm2821, %v2822, %v2818
  %v2824 = vadd.s32 %v2819, %v2823
  %v2825 = vadd.s32 %v2824, 536870912
  %v2826 = vshrl.u32 %v2825, 30
  %v2827 = vshll.u32 %v2826, 30
  %v2828 = vsub.s32 %v2824, %v2827
  %vm2829 = vcmp.lt.s32.totalorder %v2828, 0
  %v2830 = vsub.s32 0, %v2828
  %v2831 = vsel %vm2829, %v2830, %v2828
  %v2832 = vclz %v2831
  %v2833 = vsub.s32 %v2832, 2
  %vm2834 = vcmp.gt.s32.totalorder 0, %v2833
  %v2835 = vsel %vm2834, 0, %v2833
  %v2836 = vsub.s32 32, %v2835
  %v2837 = vshll.u32 %v2828, %v2835
  %v2838 = vshrl.u32 %v2820, %v2836
  %v2839 = vor.u32 %v2837, %v2838
  %v2840 = vsub.s32 4294967266, %v2835
  %v2841 = vadd.s32 %v2840, 127
  %v2842 = vshll.u32 %v2841, 23
  %v2843 = vor.u32 4788187, %v2842
  %v2844 = vand.u32 2147483647, %v2843
  %v2846 = vcvt.s32.f32 %v2839
  %v2847 = vmul.f32 %v2846, %v2844
  %v2848 = vxor.u32 %v2847, 2147483648
  %v2849 = vsel %vm2766, %v2848, %v2847
  %v2850 = vsub.s32 4, %v2826
  %v2851 = vsel %vm2766, %v2850, %v2826
  %v2852 = vsel %vm2765, %v769, %v2849
  %v2853 = vsel %vm2765, 0, %v2851
  %v2854 = vcosq.f32.pop %v2852
  %v2855 = vsinq.f32.pop %v2852
  %vm2856 = vweird.f32 %v769
  %v2857 = vadd.s32 %v2853, 3
  %v2858 = vand.u32 %v2857, 3
  %vm2859 = vcmp.lt.s32.totalorder %v2858, 2
  %vm2860 = vcmp.eq.s32.totalorder %v2858, 0
  %v2861 = vxor.u32 %v2855, 2147483648
  %v2862 = vsel %vm2860, %v2854, %v2861
  %vm2863 = vcmp.eq.s32.totalorder %v2858, 2
  %v2864 = vxor.u32 %v2854, 2147483648
  %v2865 = vsel %vm2863, %v2864, %v2855
  %v2866 = vsel %vm2859, %v2862, %v2865
  %v2867 = vsel %vm2856, nan, %v2866
  %v2868 = vand.u32 2147483647, %v770
  %vm2869 = vcmp.le.f32.partialorder %v2868, 0.7853982
  %vm2870 = vcmp.lt.s32.totalorder %v770, 0
  %v2871 = vand.u32 %v770, 2139095040
  %v2872 = vshrl.u32 %v2871, 23
  %v2873 = vsub.s32 %v2872, 127
  %v2874 = vand.u32 2147483647, %v770
  %v2875 = vand.u32 %v2874, 8388607
  %v2876 = vor.u32 %v2875, 8388608
  %v2877 = vsub.s32 0, %v2876
  %v2878 = vadd.s32 %v2873, 1
  %vm2879 = vcmp.gt.s32.totalorder %v2878, 0
  %v2880 = vsel %vm2879, %v2878, 0
  %v2881 = vshrl.u32 %v2880, 5
  %v2882 = vand.u32 %v2880, 31
  %v2883 = vsub.s32 32, %v2882
  %v2884 = vshrl.u32 683565275, %v2883
  %v2885 = vshll.u32 683565275, %v2882
  %v2886 = vshrl.u32 2475754826, %v2883
  %v2887 = vor.u32 %v2885, %v2886
  %v2888 = vshll.u32 2475754826, %v2882
  %v2889 = vshrl.u32 2131351028, %v2883
  %v2890 = vor.u32 %v2888, %v2889
  %v2891 = vshll.u32 2131351028, %v2882
  %v2892 = vshrl.u32 2102212464, %v2883
  %v2893 = vor.u32 %v2891, %v2892
  %v2894 = vshll.u32 2102212464, %v2882
  %v2895 = vshrl.u32 920167782, %v2883
  %v2896 = vor.u32 %v2894, %v2895
  %v2897 = vshll.u32 920167782, %v2882
  %v2898 = vshrl.u32 1326507024, %v2883
  %v2899 = vor.u32 %v2897, %v2898
  %vm2900 = vcmp.lt.s32.totalorder %v2881, 1
  %vm2901 = vcmp.lt.s32.totalorder %v2881, 2
  %vm2902 = vcmp.lt.s32.totalorder %v2881, 3
  %vm2903 = vcmp.lt.s32.totalorder %v2881, 4
  %v2904 = vsel %vm2900, %v2884, %v2887
  %v2905 = vsel %vm2903, %v2893, 2102212464
  %v2906 = vsel %vm2902, %v2890, %v2905
  %v2907 = vsel %vm2901, %v2904, %v2906
  %v2908 = vsel %vm2900, %v2887, %v2890
  %v2909 = vsel %vm2903, %v2896, 920167782
  %v2910 = vsel %vm2902, %v2893, %v2909
  %v2911 = vsel %vm2901, %v2908, %v2910
  %v2912 = vsel %vm2900, %v2890, %v2893
  %v2913 = vsel %vm2903, %v2899, 1326507024
  %v2914 = vsel %vm2902, %v2896, %v2913
  %v2915 = vsel %vm2901, %v2912, %v2914
  %v2916 = vshll.u32 %v2876, 8
  %v2917 = vmul.u32.u64.compose %v2916, %v2915
  %v2918 = vextract.low.u32 %v2917
  %v2919 = vextract.high.u32 %v2917
  %v2920 = vmul.u32.u64.compose %v2916, %v2911
  %v2921 = vextract.low.u32 %v2920
  %v2922 = vextract.high.u32 %v2920
  %v2923 = vmul.u32 %v2916, %v2907
  %v2924 = vadd.s32 %v2919, %v2921
  %vm2925 = vc.u32 %v2919, %v2921
  %v2926 = vadd.s32 %v2922, 1
  %v2927 = vsel %vm2925, %v2926, %v2922
  %v2928 = vadd.s32 %v2923, %v2927
  %v2929 = vadd.s32 %v2928, 536870912
  %v2930 = vshrl.u32 %v2929, 30
  %v2931 = vshll.u32 %v2930, 30
  %v2932 = vsub.s32 %v2928, %v2931
  %vm2933 = vcmp.lt.s32.totalorder %v2932, 0
  %v2934 = vsub.s32 0, %v2932
  %v2935 = vsel %vm2933, %v2934, %v2932
  %v2936 = vclz %v2935
  %v2937 = vsub.s32 %v2936, 2
  %vm2938 = vcmp.gt.s32.totalorder 0, %v2937
  %v2939 = vsel %vm2938, 0, %v2937
  %v2940 = vsub.s32 32, %v2939
  %v2941 = vshll.u32 %v2932, %v2939
  %v2942 = vshrl.u32 %v2924, %v2940
  %v2943 = vor.u32 %v2941, %v2942
  %v2944 = vsub.s32 4294967266, %v2939
  %v2945 = vadd.s32 %v2944, 127
  %v2946 = vshll.u32 %v2945, 23
  %v2947 = vor.u32 4788187, %v2946
  %v2948 = vand.u32 2147483647, %v2947
  %v2950 = vcvt.s32.f32 %v2943
  %v2951 = vmul.f32 %v2950, %v2948
  %v2952 = vxor.u32 %v2951, 2147483648
  %v2953 = vsel %vm2870, %v2952, %v2951
  %v2954 = vsub.s32 4, %v2930
  %v2955 = vsel %vm2870, %v2954, %v2930
  %v2956 = vsel %vm2869, %v770, %v2953
  %v2957 = vsel %vm2869, 0, %v2955
  %v2958 = vcosq.f32.pop %v2956
  %v2959 = vsinq.f32.pop %v2956
  %vm2960 = vweird.f32 %v770
  %v2961 = vadd.s32 %v2957, 3
  %v2962 = vand.u32 %v2961, 3
  %vm2963 = vcmp.lt.s32.totalorder %v2962, 2
  %vm2964 = vcmp.eq.s32.totalorder %v2962, 0
  %v2965 = vxor.u32 %v2959, 2147483648
  %v2966 = vsel %vm2964, %v2958, %v2965
  %vm2967 = vcmp.eq.s32.totalorder %v2962, 2
  %v2968 = vxor.u32 %v2958, 2147483648
  %v2969 = vsel %vm2967, %v2968, %v2959
  %v2970 = vsel %vm2963, %v2966, %v2969
  %v2971 = vsel %vm2960, nan, %v2970
  %v2972 = vand.u32 2147483647, %v771
  %vm2973 = vcmp.le.f32.partialorder %v2972, 0.7853982
  %vm2974 = vcmp.lt.s32.totalorder %v771, 0
  %v2975 = vand.u32 %v771, 2139095040
  %v2976 = vshrl.u32 %v2975, 23
  %v2977 = vsub.s32 %v2976, 127
  %v2978 = vand.u32 2147483647, %v771
  %v2979 = vand.u32 %v2978, 8388607
  %v2980 = vor.u32 %v2979, 8388608
  %v2981 = vsub.s32 0, %v2980
  %v2982 = vadd.s32 %v2977, 1
  %vm2983 = vcmp.gt.s32.totalorder %v2982, 0
  %v2984 = vsel %vm2983, %v2982, 0
  %v2985 = vshrl.u32 %v2984, 5
  %v2986 = vand.u32 %v2984, 31
  %v2987 = vsub.s32 32, %v2986
  %v2988 = vshrl.u32 683565275, %v2987
  %v2989 = vshll.u32 683565275, %v2986
  %v2990 = vshrl.u32 2475754826, %v2987
  %v2991 = vor.u32 %v2989, %v2990
  %v2992 = vshll.u32 2475754826, %v2986
  %v2993 = vshrl.u32 2131351028, %v2987
  %v2994 = vor.u32 %v2992, %v2993
  %v2995 = vshll.u32 2131351028, %v2986
  %v2996 = vshrl.u32 2102212464, %v2987
  %v2997 = vor.u32 %v2995, %v2996
  %v2998 = vshll.u32 2102212464, %v2986
  %v2999 = vshrl.u32 920167782, %v2987
  %v3000 = vor.u32 %v2998, %v2999
  %v3001 = vshll.u32 920167782, %v2986
  %v3002 = vshrl.u32 1326507024, %v2987
  %v3003 = vor.u32 %v3001, %v3002
  %vm3004 = vcmp.lt.s32.totalorder %v2985, 1
  %vm3005 = vcmp.lt.s32.totalorder %v2985, 2
  %vm3006 = vcmp.lt.s32.totalorder %v2985, 3
  %vm3007 = vcmp.lt.s32.totalorder %v2985, 4
  %v3008 = vsel %vm3004, %v2988, %v2991
  %v3009 = vsel %vm3007, %v2997, 2102212464
  %v3010 = vsel %vm3006, %v2994, %v3009
  %v3011 = vsel %vm3005, %v3008, %v3010
  %v3012 = vsel %vm3004, %v2991, %v2994
  %v3013 = vsel %vm3007, %v3000, 920167782
  %v3014 = vsel %vm3006, %v2997, %v3013
  %v3015 = vsel %vm3005, %v3012, %v3014
  %v3016 = vsel %vm3004, %v2994, %v2997
  %v3017 = vsel %vm3007, %v3003, 1326507024
  %v3018 = vsel %vm3006, %v3000, %v3017
  %v3019 = vsel %vm3005, %v3016, %v3018
  %v3020 = vshll.u32 %v2980, 8
  %v3021 = vmul.u32.u64.compose %v3020, %v3019
  %v3022 = vextract.low.u32 %v3021
  %v3023 = vextract.high.u32 %v3021
  %v3024 = vmul.u32.u64.compose %v3020, %v3015
  %v3025 = vextract.low.u32 %v3024
  %v3026 = vextract.high.u32 %v3024
  %v3027 = vmul.u32 %v3020, %v3011
  %v3028 = vadd.s32 %v3023, %v3025
  %vm3029 = vc.u32 %v3023, %v3025
  %v3030 = vadd.s32 %v3026, 1
  %v3031 = vsel %vm3029, %v3030, %v3026
  %v3032 = vadd.s32 %v3027, %v3031
  %v3033 = vadd.s32 %v3032, 536870912
  %v3034 = vshrl.u32 %v3033, 30
  %v3035 = vshll.u32 %v3034, 30
  %v3036 = vsub.s32 %v3032, %v3035
  %vm3037 = vcmp.lt.s32.totalorder %v3036, 0
  %v3038 = vsub.s32 0, %v3036
  %v3039 = vsel %vm3037, %v3038, %v3036
  %v3040 = vclz %v3039
  %v3041 = vsub.s32 %v3040, 2
  %vm3042 = vcmp.gt.s32.totalorder 0, %v3041
  %v3043 = vsel %vm3042, 0, %v3041
  %v3044 = vsub.s32 32, %v3043
  %v3045 = vshll.u32 %v3036, %v3043
  %v3046 = vshrl.u32 %v3028, %v3044
  %v3047 = vor.u32 %v3045, %v3046
  %v3048 = vsub.s32 4294967266, %v3043
  %v3049 = vadd.s32 %v3048, 127
  %v3050 = vshll.u32 %v3049, 23
  %v3051 = vor.u32 4788187, %v3050
  %v3052 = vand.u32 2147483647, %v3051
  %v3054 = vcvt.s32.f32 %v3047
  %v3055 = vmul.f32 %v3054, %v3052
  %v3056 = vxor.u32 %v3055, 2147483648
  %v3057 = vsel %vm2974, %v3056, %v3055
  %v3058 = vsub.s32 4, %v3034
  %v3059 = vsel %vm2974, %v3058, %v3034
  %v3060 = vsel %vm2973, %v771, %v3057
  %v3061 = vsel %vm2973, 0, %v3059
  %v3062 = vcosq.f32.pop %v3060
  %v3063 = vsinq.f32.pop %v3060
  %vm3064 = vweird.f32 %v771
  %v3065 = vadd.s32 %v3061, 3
  %v3066 = vand.u32 %v3065, 3
  %vm3067 = vcmp.lt.s32.totalorder %v3066, 2
  %vm3068 = vcmp.eq.s32.totalorder %v3066, 0
  %v3069 = vxor.u32 %v3063, 2147483648
  %v3070 = vsel %vm3068, %v3062, %v3069
  %vm3071 = vcmp.eq.s32.totalorder %v3066, 2
  %v3072 = vxor.u32 %v3062, 2147483648
  %v3073 = vsel %vm3071, %v3072, %v3063
  %v3074 = vsel %vm3067, %v3070, %v3073
  %v3075 = vsel %vm3064, nan, %v3074
  %v3076 = vand.u32 2147483647, %v772
  %vm3077 = vcmp.le.f32.partialorder %v3076, 0.7853982
  %vm3078 = vcmp.lt.s32.totalorder %v772, 0
  %v3079 = vand.u32 %v772, 2139095040
  %v3080 = vshrl.u32 %v3079, 23
  %v3081 = vsub.s32 %v3080, 127
  %v3082 = vand.u32 2147483647, %v772
  %v3083 = vand.u32 %v3082, 8388607
  %v3084 = vor.u32 %v3083, 8388608
  %v3085 = vsub.s32 0, %v3084
  %v3086 = vadd.s32 %v3081, 1
  %vm3087 = vcmp.gt.s32.totalorder %v3086, 0
  %v3088 = vsel %vm3087, %v3086, 0
  %v3089 = vshrl.u32 %v3088, 5
  %v3090 = vand.u32 %v3088, 31
  %v3091 = vsub.s32 32, %v3090
  %v3092 = vshrl.u32 683565275, %v3091
  %v3093 = vshll.u32 683565275, %v3090
  %v3094 = vshrl.u32 2475754826, %v3091
  %v3095 = vor.u32 %v3093, %v3094
  %v3096 = vshll.u32 2475754826, %v3090
  %v3097 = vshrl.u32 2131351028, %v3091
  %v3098 = vor.u32 %v3096, %v3097
  %v3099 = vshll.u32 2131351028, %v3090
  %v3100 = vshrl.u32 2102212464, %v3091
  %v3101 = vor.u32 %v3099, %v3100
  %v3102 = vshll.u32 2102212464, %v3090
  %v3103 = vshrl.u32 920167782, %v3091
  %v3104 = vor.u32 %v3102, %v3103
  %v3105 = vshll.u32 920167782, %v3090
  %v3106 = vshrl.u32 1326507024, %v3091
  %v3107 = vor.u32 %v3105, %v3106
  %vm3108 = vcmp.lt.s32.totalorder %v3089, 1
  %vm3109 = vcmp.lt.s32.totalorder %v3089, 2
  %vm3110 = vcmp.lt.s32.totalorder %v3089, 3
  %vm3111 = vcmp.lt.s32.totalorder %v3089, 4
  %v3112 = vsel %vm3108, %v3092, %v3095
  %v3113 = vsel %vm3111, %v3101, 2102212464
  %v3114 = vsel %vm3110, %v3098, %v3113
  %v3115 = vsel %vm3109, %v3112, %v3114
  %v3116 = vsel %vm3108, %v3095, %v3098
  %v3117 = vsel %vm3111, %v3104, 920167782
  %v3118 = vsel %vm3110, %v3101, %v3117
  %v3119 = vsel %vm3109, %v3116, %v3118
  %v3120 = vsel %vm3108, %v3098, %v3101
  %v3121 = vsel %vm3111, %v3107, 1326507024
  %v3122 = vsel %vm3110, %v3104, %v3121
  %v3123 = vsel %vm3109, %v3120, %v3122
  %v3124 = vshll.u32 %v3084, 8
  %v3125 = vmul.u32.u64.compose %v3124, %v3123
  %v3126 = vextract.low.u32 %v3125
  %v3127 = vextract.high.u32 %v3125
  %v3128 = vmul.u32.u64.compose %v3124, %v3119
  %v3129 = vextract.low.u32 %v3128
  %v3130 = vextract.high.u32 %v3128
  %v3131 = vmul.u32 %v3124, %v3115
  %v3132 = vadd.s32 %v3127, %v3129
  %vm3133 = vc.u32 %v3127, %v3129
  %v3134 = vadd.s32 %v3130, 1
  %v3135 = vsel %vm3133, %v3134, %v3130
  %v3136 = vadd.s32 %v3131, %v3135
  %v3137 = vadd.s32 %v3136, 536870912
  %v3138 = vshrl.u32 %v3137, 30
  %v3139 = vshll.u32 %v3138, 30
  %v3140 = vsub.s32 %v3136, %v3139
  %vm3141 = vcmp.lt.s32.totalorder %v3140, 0
  %v3142 = vsub.s32 0, %v3140
  %v3143 = vsel %vm3141, %v3142, %v3140
  %v3144 = vclz %v3143
  %v3145 = vsub.s32 %v3144, 2
  %vm3146 = vcmp.gt.s32.totalorder 0, %v3145
  %v3147 = vsel %vm3146, 0, %v3145
  %v3148 = vsub.s32 32, %v3147
  %v3149 = vshll.u32 %v3140, %v3147
  %v3150 = vshrl.u32 %v3132, %v3148
  %v3151 = vor.u32 %v3149, %v3150
  %v3152 = vsub.s32 4294967266, %v3147
  %v3153 = vadd.s32 %v3152, 127
  %v3154 = vshll.u32 %v3153, 23
  %v3155 = vor.u32 4788187, %v3154
  %v3156 = vand.u32 2147483647, %v3155
  %v3158 = vcvt.s32.f32 %v3151
  %v3159 = vmul.f32 %v3158, %v3156
  %v3160 = vxor.u32 %v3159, 2147483648
  %v3161 = vsel %vm3078, %v3160, %v3159
  %v3162 = vsub.s32 4, %v3138
  %v3163 = vsel %vm3078, %v3162, %v3138
  %v3164 = vsel %vm3077, %v772, %v3161
  %v3165 = vsel %vm3077, 0, %v3163
  %v3166 = vcosq.f32.pop %v3164
  %v3167 = vsinq.f32.pop %v3164
  %vm3168 = vweird.f32 %v772
  %v3169 = vadd.s32 %v3165, 3
  %v3170 = vand.u32 %v3169, 3
  %vm3171 = vcmp.lt.s32.totalorder %v3170, 2
  %vm3172 = vcmp.eq.s32.totalorder %v3170, 0
  %v3173 = vxor.u32 %v3167, 2147483648
  %v3174 = vsel %vm3172, %v3166, %v3173
  %vm3175 = vcmp.eq.s32.totalorder %v3170, 2
  %v3176 = vxor.u32 %v3166, 2147483648
  %v3177 = vsel %vm3175, %v3176, %v3167
  %v3178 = vsel %vm3171, %v3174, %v3177
  %v3179 = vsel %vm3168, nan, %v3178
  %v3180 = vand.u32 2147483647, %v773
  %vm3181 = vcmp.le.f32.partialorder %v3180, 0.7853982
  %vm3182 = vcmp.lt.s32.totalorder %v773, 0
  %v3183 = vand.u32 %v773, 2139095040
  %v3184 = vshrl.u32 %v3183, 23
  %v3185 = vsub.s32 %v3184, 127
  %v3186 = vand.u32 2147483647, %v773
  %v3187 = vand.u32 %v3186, 8388607
  %v3188 = vor.u32 %v3187, 8388608
  %v3189 = vsub.s32 0, %v3188
  %v3190 = vadd.s32 %v3185, 1
  %vm3191 = vcmp.gt.s32.totalorder %v3190, 0
  %v3192 = vsel %vm3191, %v3190, 0
  %v3193 = vshrl.u32 %v3192, 5
  %v3194 = vand.u32 %v3192, 31
  %v3195 = vsub.s32 32, %v3194
  %v3196 = vshrl.u32 683565275, %v3195
  %v3197 = vshll.u32 683565275, %v3194
  %v3198 = vshrl.u32 2475754826, %v3195
  %v3199 = vor.u32 %v3197, %v3198
  %v3200 = vshll.u32 2475754826, %v3194
  %v3201 = vshrl.u32 2131351028, %v3195
  %v3202 = vor.u32 %v3200, %v3201
  %v3203 = vshll.u32 2131351028, %v3194
  %v3204 = vshrl.u32 2102212464, %v3195
  %v3205 = vor.u32 %v3203, %v3204
  %v3206 = vshll.u32 2102212464, %v3194
  %v3207 = vshrl.u32 920167782, %v3195
  %v3208 = vor.u32 %v3206, %v3207
  %v3209 = vshll.u32 920167782, %v3194
  %v3210 = vshrl.u32 1326507024, %v3195
  %v3211 = vor.u32 %v3209, %v3210
  %vm3212 = vcmp.lt.s32.totalorder %v3193, 1
  %vm3213 = vcmp.lt.s32.totalorder %v3193, 2
  %vm3214 = vcmp.lt.s32.totalorder %v3193, 3
  %vm3215 = vcmp.lt.s32.totalorder %v3193, 4
  %v3216 = vsel %vm3212, %v3196, %v3199
  %v3217 = vsel %vm3215, %v3205, 2102212464
  %v3218 = vsel %vm3214, %v3202, %v3217
  %v3219 = vsel %vm3213, %v3216, %v3218
  %v3220 = vsel %vm3212, %v3199, %v3202
  %v3221 = vsel %vm3215, %v3208, 920167782
  %v3222 = vsel %vm3214, %v3205, %v3221
  %v3223 = vsel %vm3213, %v3220, %v3222
  %v3224 = vsel %vm3212, %v3202, %v3205
  %v3225 = vsel %vm3215, %v3211, 1326507024
  %v3226 = vsel %vm3214, %v3208, %v3225
  %v3227 = vsel %vm3213, %v3224, %v3226
  %v3228 = vshll.u32 %v3188, 8
  %v3229 = vmul.u32.u64.compose %v3228, %v3227
  %v3230 = vextract.low.u32 %v3229
  %v3231 = vextract.high.u32 %v3229
  %v3232 = vmul.u32.u64.compose %v3228, %v3223
  %v3233 = vextract.low.u32 %v3232
  %v3234 = vextract.high.u32 %v3232
  %v3235 = vmul.u32 %v3228, %v3219
  %v3236 = vadd.s32 %v3231, %v3233
  %vm3237 = vc.u32 %v3231, %v3233
  %v3238 = vadd.s32 %v3234, 1
  %v3239 = vsel %vm3237, %v3238, %v3234
  %v3240 = vadd.s32 %v3235, %v3239
  %v3241 = vadd.s32 %v3240, 536870912
  %v3242 = vshrl.u32 %v3241, 30
  %v3243 = vshll.u32 %v3242, 30
  %v3244 = vsub.s32 %v3240, %v3243
  %vm3245 = vcmp.lt.s32.totalorder %v3244, 0
  %v3246 = vsub.s32 0, %v3244
  %v3247 = vsel %vm3245, %v3246, %v3244
  %v3248 = vclz %v3247
  %v3249 = vsub.s32 %v3248, 2
  %vm3250 = vcmp.gt.s32.totalorder 0, %v3249
  %v3251 = vsel %vm3250, 0, %v3249
  %v3252 = vsub.s32 32, %v3251
  %v3253 = vshll.u32 %v3244, %v3251
  %v3254 = vshrl.u32 %v3236, %v3252
  %v3255 = vor.u32 %v3253, %v3254
  %v3256 = vsub.s32 4294967266, %v3251
  %v3257 = vadd.s32 %v3256, 127
  %v3258 = vshll.u32 %v3257, 23
  %v3259 = vor.u32 4788187, %v3258
  %v3260 = vand.u32 2147483647, %v3259
  %v3262 = vcvt.s32.f32 %v3255
  %v3263 = vmul.f32 %v3262, %v3260
  %v3264 = vxor.u32 %v3263, 2147483648
  %v3265 = vsel %vm3182, %v3264, %v3263
  %v3266 = vsub.s32 4, %v3242
  %v3267 = vsel %vm3182, %v3266, %v3242
  %v3268 = vsel %vm3181, %v773, %v3265
  %v3269 = vsel %vm3181, 0, %v3267
  %v3270 = vcosq.f32.pop %v3268
  %v3271 = vsinq.f32.pop %v3268
  %vm3272 = vweird.f32 %v773
  %v3273 = vadd.s32 %v3269, 3
  %v3274 = vand.u32 %v3273, 3
  %vm3275 = vcmp.lt.s32.totalorder %v3274, 2
  %vm3276 = vcmp.eq.s32.totalorder %v3274, 0
  %v3277 = vxor.u32 %v3271, 2147483648
  %v3278 = vsel %vm3276, %v3270, %v3277
  %vm3279 = vcmp.eq.s32.totalorder %v3274, 2
  %v3280 = vxor.u32 %v3270, 2147483648
  %v3281 = vsel %vm3279, %v3280, %v3271
  %v3282 = vsel %vm3275, %v3278, %v3281
  %v3283 = vsel %vm3272, nan, %v3282
  %v3284 = vand.u32 2147483647, %v774
  %vm3285 = vcmp.le.f32.partialorder %v3284, 0.7853982
  %vm3286 = vcmp.lt.s32.totalorder %v774, 0
  %v3287 = vand.u32 %v774, 2139095040
  %v3288 = vshrl.u32 %v3287, 23
  %v3289 = vsub.s32 %v3288, 127
  %v3290 = vand.u32 2147483647, %v774
  %v3291 = vand.u32 %v3290, 8388607
  %v3292 = vor.u32 %v3291, 8388608
  %v3293 = vsub.s32 0, %v3292
  %v3294 = vadd.s32 %v3289, 1
  %vm3295 = vcmp.gt.s32.totalorder %v3294, 0
  %v3296 = vsel %vm3295, %v3294, 0
  %v3297 = vshrl.u32 %v3296, 5
  %v3298 = vand.u32 %v3296, 31
  %v3299 = vsub.s32 32, %v3298
  %v3300 = vshrl.u32 683565275, %v3299
  %v3301 = vshll.u32 683565275, %v3298
  %v3302 = vshrl.u32 2475754826, %v3299
  %v3303 = vor.u32 %v3301, %v3302
  %v3304 = vshll.u32 2475754826, %v3298
  %v3305 = vshrl.u32 2131351028, %v3299
  %v3306 = vor.u32 %v3304, %v3305
  %v3307 = vshll.u32 2131351028, %v3298
  %v3308 = vshrl.u32 2102212464, %v3299
  %v3309 = vor.u32 %v3307, %v3308
  %v3310 = vshll.u32 2102212464, %v3298
  %v3311 = vshrl.u32 920167782, %v3299
  %v3312 = vor.u32 %v3310, %v3311
  %v3313 = vshll.u32 920167782, %v3298
  %v3314 = vshrl.u32 1326507024, %v3299
  %v3315 = vor.u32 %v3313, %v3314
  %vm3316 = vcmp.lt.s32.totalorder %v3297, 1
  %vm3317 = vcmp.lt.s32.totalorder %v3297, 2
  %vm3318 = vcmp.lt.s32.totalorder %v3297, 3
  %vm3319 = vcmp.lt.s32.totalorder %v3297, 4
  %v3320 = vsel %vm3316, %v3300, %v3303
  %v3321 = vsel %vm3319, %v3309, 2102212464
  %v3322 = vsel %vm3318, %v3306, %v3321
  %v3323 = vsel %vm3317, %v3320, %v3322
  %v3324 = vsel %vm3316, %v3303, %v3306
  %v3325 = vsel %vm3319, %v3312, 920167782
  %v3326 = vsel %vm3318, %v3309, %v3325
  %v3327 = vsel %vm3317, %v3324, %v3326
  %v3328 = vsel %vm3316, %v3306, %v3309
  %v3329 = vsel %vm3319, %v3315, 1326507024
  %v3330 = vsel %vm3318, %v3312, %v3329
  %v3331 = vsel %vm3317, %v3328, %v3330
  %v3332 = vshll.u32 %v3292, 8
  %v3333 = vmul.u32.u64.compose %v3332, %v3331
  %v3334 = vextract.low.u32 %v3333
  %v3335 = vextract.high.u32 %v3333
  %v3336 = vmul.u32.u64.compose %v3332, %v3327
  %v3337 = vextract.low.u32 %v3336
  %v3338 = vextract.high.u32 %v3336
  %v3339 = vmul.u32 %v3332, %v3323
  %v3340 = vadd.s32 %v3335, %v3337
  %vm3341 = vc.u32 %v3335, %v3337
  %v3342 = vadd.s32 %v3338, 1
  %v3343 = vsel %vm3341, %v3342, %v3338
  %v3344 = vadd.s32 %v3339, %v3343
  %v3345 = vadd.s32 %v3344, 536870912
  %v3346 = vshrl.u32 %v3345, 30
  %v3347 = vshll.u32 %v3346, 30
  %v3348 = vsub.s32 %v3344, %v3347
  %vm3349 = vcmp.lt.s32.totalorder %v3348, 0
  %v3350 = vsub.s32 0, %v3348
  %v3351 = vsel %vm3349, %v3350, %v3348
  %v3352 = vclz %v3351
  %v3353 = vsub.s32 %v3352, 2
  %vm3354 = vcmp.gt.s32.totalorder 0, %v3353
  %v3355 = vsel %vm3354, 0, %v3353
  %v3356 = vsub.s32 32, %v3355
  %v3357 = vshll.u32 %v3348, %v3355
  %v3358 = vshrl.u32 %v3340, %v3356
  %v3359 = vor.u32 %v3357, %v3358
  %v3360 = vsub.s32 4294967266, %v3355
  %v3361 = vadd.s32 %v3360, 127
  %v3362 = vshll.u32 %v3361, 23
  %v3363 = vor.u32 4788187, %v3362
  %v3364 = vand.u32 2147483647, %v3363
  %v3366 = vcvt.s32.f32 %v3359
  %v3367 = vmul.f32 %v3366, %v3364
  %v3368 = vxor.u32 %v3367, 2147483648
  %v3369 = vsel %vm3286, %v3368, %v3367
  %v3370 = vsub.s32 4, %v3346
  %v3371 = vsel %vm3286, %v3370, %v3346
  %v3372 = vsel %vm3285, %v774, %v3369
  %v3373 = vsel %vm3285, 0, %v3371
  %v3374 = vcosq.f32.pop %v3372
  %v3375 = vsinq.f32.pop %v3372
  %vm3376 = vweird.f32 %v774
  %v3377 = vadd.s32 %v3373, 3
  %v3378 = vand.u32 %v3377, 3
  %vm3379 = vcmp.lt.s32.totalorder %v3378, 2
  %vm3380 = vcmp.eq.s32.totalorder %v3378, 0
  %v3381 = vxor.u32 %v3375, 2147483648
  %v3382 = vsel %vm3380, %v3374, %v3381
  %vm3383 = vcmp.eq.s32.totalorder %v3378, 2
  %v3384 = vxor.u32 %v3374, 2147483648
  %v3385 = vsel %vm3383, %v3384, %v3375
  %v3386 = vsel %vm3379, %v3382, %v3385
  %v3387 = vsel %vm3376, nan, %v3386
  %v3388 = vand.u32 2147483647, %v775
  %vm3389 = vcmp.le.f32.partialorder %v3388, 0.7853982
  %vm3390 = vcmp.lt.s32.totalorder %v775, 0
  %v3391 = vand.u32 %v775, 2139095040
  %v3392 = vshrl.u32 %v3391, 23
  %v3393 = vsub.s32 %v3392, 127
  %v3394 = vand.u32 2147483647, %v775
  %v3395 = vand.u32 %v3394, 8388607
  %v3396 = vor.u32 %v3395, 8388608
  %v3397 = vsub.s32 0, %v3396
  %v3398 = vadd.s32 %v3393, 1
  %vm3399 = vcmp.gt.s32.totalorder %v3398, 0
  %v3400 = vsel %vm3399, %v3398, 0
  %v3401 = vshrl.u32 %v3400, 5
  %v3402 = vand.u32 %v3400, 31
  %v3403 = vsub.s32 32, %v3402
  %v3404 = vshrl.u32 683565275, %v3403
  %v3405 = vshll.u32 683565275, %v3402
  %v3406 = vshrl.u32 2475754826, %v3403
  %v3407 = vor.u32 %v3405, %v3406
  %v3408 = vshll.u32 2475754826, %v3402
  %v3409 = vshrl.u32 2131351028, %v3403
  %v3410 = vor.u32 %v3408, %v3409
  %v3411 = vshll.u32 2131351028, %v3402
  %v3412 = vshrl.u32 2102212464, %v3403
  %v3413 = vor.u32 %v3411, %v3412
  %v3414 = vshll.u32 2102212464, %v3402
  %v3415 = vshrl.u32 920167782, %v3403
  %v3416 = vor.u32 %v3414, %v3415
  %v3417 = vshll.u32 920167782, %v3402
  %v3418 = vshrl.u32 1326507024, %v3403
  %v3419 = vor.u32 %v3417, %v3418
  %vm3420 = vcmp.lt.s32.totalorder %v3401, 1
  %vm3421 = vcmp.lt.s32.totalorder %v3401, 2
  %vm3422 = vcmp.lt.s32.totalorder %v3401, 3
  %vm3423 = vcmp.lt.s32.totalorder %v3401, 4
  %v3424 = vsel %vm3420, %v3404, %v3407
  %v3425 = vsel %vm3423, %v3413, 2102212464
  %v3426 = vsel %vm3422, %v3410, %v3425
  %v3427 = vsel %vm3421, %v3424, %v3426
  %v3428 = vsel %vm3420, %v3407, %v3410
  %v3429 = vsel %vm3423, %v3416, 920167782
  %v3430 = vsel %vm3422, %v3413, %v3429
  %v3431 = vsel %vm3421, %v3428, %v3430
  %v3432 = vsel %vm3420, %v3410, %v3413
  %v3433 = vsel %vm3423, %v3419, 1326507024
  %v3434 = vsel %vm3422, %v3416, %v3433
  %v3435 = vsel %vm3421, %v3432, %v3434
  %v3436 = vshll.u32 %v3396, 8
  %v3437 = vmul.u32.u64.compose %v3436, %v3435
  %v3438 = vextract.low.u32 %v3437
  %v3439 = vextract.high.u32 %v3437
  %v3440 = vmul.u32.u64.compose %v3436, %v3431
  %v3441 = vextract.low.u32 %v3440
  %v3442 = vextract.high.u32 %v3440
  %v3443 = vmul.u32 %v3436, %v3427
  %v3444 = vadd.s32 %v3439, %v3441
  %vm3445 = vc.u32 %v3439, %v3441
  %v3446 = vadd.s32 %v3442, 1
  %v3447 = vsel %vm3445, %v3446, %v3442
  %v3448 = vadd.s32 %v3443, %v3447
  %v3449 = vadd.s32 %v3448, 536870912
  %v3450 = vshrl.u32 %v3449, 30
  %v3451 = vshll.u32 %v3450, 30
  %v3452 = vsub.s32 %v3448, %v3451
  %vm3453 = vcmp.lt.s32.totalorder %v3452, 0
  %v3454 = vsub.s32 0, %v3452
  %v3455 = vsel %vm3453, %v3454, %v3452
  %v3456 = vclz %v3455
  %v3457 = vsub.s32 %v3456, 2
  %vm3458 = vcmp.gt.s32.totalorder 0, %v3457
  %v3459 = vsel %vm3458, 0, %v3457
  %v3460 = vsub.s32 32, %v3459
  %v3461 = vshll.u32 %v3452, %v3459
  %v3462 = vshrl.u32 %v3444, %v3460
  %v3463 = vor.u32 %v3461, %v3462
  %v3464 = vsub.s32 4294967266, %v3459
  %v3465 = vadd.s32 %v3464, 127
  %v3466 = vshll.u32 %v3465, 23
  %v3467 = vor.u32 4788187, %v3466
  %v3468 = vand.u32 2147483647, %v3467
  %v3470 = vcvt.s32.f32 %v3463
  %v3471 = vmul.f32 %v3470, %v3468
  %v3472 = vxor.u32 %v3471, 2147483648
  %v3473 = vsel %vm3390, %v3472, %v3471
  %v3474 = vsub.s32 4, %v3450
  %v3475 = vsel %vm3390, %v3474, %v3450
  %v3476 = vsel %vm3389, %v775, %v3473
  %v3477 = vsel %vm3389, 0, %v3475
  %v3478 = vcosq.f32.pop %v3476
  %v3479 = vsinq.f32.pop %v3476
  %vm3480 = vweird.f32 %v775
  %v3481 = vadd.s32 %v3477, 3
  %v3482 = vand.u32 %v3481, 3
  %vm3483 = vcmp.lt.s32.totalorder %v3482, 2
  %vm3484 = vcmp.eq.s32.totalorder %v3482, 0
  %v3485 = vxor.u32 %v3479, 2147483648
  %v3486 = vsel %vm3484, %v3478, %v3485
  %vm3487 = vcmp.eq.s32.totalorder %v3482, 2
  %v3488 = vxor.u32 %v3478, 2147483648
  %v3489 = vsel %vm3487, %v3488, %v3479
  %v3490 = vsel %vm3483, %v3486, %v3489
  %v3491 = vsel %vm3480, nan, %v3490
  %v3492 = vand.u32 2147483647, %v776
  %vm3493 = vcmp.le.f32.partialorder %v3492, 0.7853982
  %vm3494 = vcmp.lt.s32.totalorder %v776, 0
  %v3495 = vand.u32 %v776, 2139095040
  %v3496 = vshrl.u32 %v3495, 23
  %v3497 = vsub.s32 %v3496, 127
  %v3498 = vand.u32 2147483647, %v776
  %v3499 = vand.u32 %v3498, 8388607
  %v3500 = vor.u32 %v3499, 8388608
  %v3501 = vsub.s32 0, %v3500
  %v3502 = vadd.s32 %v3497, 1
  %vm3503 = vcmp.gt.s32.totalorder %v3502, 0
  %v3504 = vsel %vm3503, %v3502, 0
  %v3505 = vshrl.u32 %v3504, 5
  %v3506 = vand.u32 %v3504, 31
  %v3507 = vsub.s32 32, %v3506
  %v3508 = vshrl.u32 683565275, %v3507
  %v3509 = vshll.u32 683565275, %v3506
  %v3510 = vshrl.u32 2475754826, %v3507
  %v3511 = vor.u32 %v3509, %v3510
  %v3512 = vshll.u32 2475754826, %v3506
  %v3513 = vshrl.u32 2131351028, %v3507
  %v3514 = vor.u32 %v3512, %v3513
  %v3515 = vshll.u32 2131351028, %v3506
  %v3516 = vshrl.u32 2102212464, %v3507
  %v3517 = vor.u32 %v3515, %v3516
  %v3518 = vshll.u32 2102212464, %v3506
  %v3519 = vshrl.u32 920167782, %v3507
  %v3520 = vor.u32 %v3518, %v3519
  %v3521 = vshll.u32 920167782, %v3506
  %v3522 = vshrl.u32 1326507024, %v3507
  %v3523 = vor.u32 %v3521, %v3522
  %vm3524 = vcmp.lt.s32.totalorder %v3505, 1
  %vm3525 = vcmp.lt.s32.totalorder %v3505, 2
  %vm3526 = vcmp.lt.s32.totalorder %v3505, 3
  %vm3527 = vcmp.lt.s32.totalorder %v3505, 4
  %v3528 = vsel %vm3524, %v3508, %v3511
  %v3529 = vsel %vm3527, %v3517, 2102212464
  %v3530 = vsel %vm3526, %v3514, %v3529
  %v3531 = vsel %vm3525, %v3528, %v3530
  %v3532 = vsel %vm3524, %v3511, %v3514
  %v3533 = vsel %vm3527, %v3520, 920167782
  %v3534 = vsel %vm3526, %v3517, %v3533
  %v3535 = vsel %vm3525, %v3532, %v3534
  %v3536 = vsel %vm3524, %v3514, %v3517
  %v3537 = vsel %vm3527, %v3523, 1326507024
  %v3538 = vsel %vm3526, %v3520, %v3537
  %v3539 = vsel %vm3525, %v3536, %v3538
  %v3540 = vshll.u32 %v3500, 8
  %v3541 = vmul.u32.u64.compose %v3540, %v3539
  %v3542 = vextract.low.u32 %v3541
  %v3543 = vextract.high.u32 %v3541
  %v3544 = vmul.u32.u64.compose %v3540, %v3535
  %v3545 = vextract.low.u32 %v3544
  %v3546 = vextract.high.u32 %v3544
  %v3547 = vmul.u32 %v3540, %v3531
  %v3548 = vadd.s32 %v3543, %v3545
  %vm3549 = vc.u32 %v3543, %v3545
  %v3550 = vadd.s32 %v3546, 1
  %v3551 = vsel %vm3549, %v3550, %v3546
  %v3552 = vadd.s32 %v3547, %v3551
  %v3553 = vadd.s32 %v3552, 536870912
  %v3554 = vshrl.u32 %v3553, 30
  %v3555 = vshll.u32 %v3554, 30
  %v3556 = vsub.s32 %v3552, %v3555
  %vm3557 = vcmp.lt.s32.totalorder %v3556, 0
  %v3558 = vsub.s32 0, %v3556
  %v3559 = vsel %vm3557, %v3558, %v3556
  %v3560 = vclz %v3559
  %v3561 = vsub.s32 %v3560, 2
  %vm3562 = vcmp.gt.s32.totalorder 0, %v3561
  %v3563 = vsel %vm3562, 0, %v3561
  %v3564 = vsub.s32 32, %v3563
  %v3565 = vshll.u32 %v3556, %v3563
  %v3566 = vshrl.u32 %v3548, %v3564
  %v3567 = vor.u32 %v3565, %v3566
  %v3568 = vsub.s32 4294967266, %v3563
  %v3569 = vadd.s32 %v3568, 127
  %v3570 = vshll.u32 %v3569, 23
  %v3571 = vor.u32 4788187, %v3570
  %v3572 = vand.u32 2147483647, %v3571
  %v3574 = vcvt.s32.f32 %v3567
  %v3575 = vmul.f32 %v3574, %v3572
  %v3576 = vxor.u32 %v3575, 2147483648
  %v3577 = vsel %vm3494, %v3576, %v3575
  %v3578 = vsub.s32 4, %v3554
  %v3579 = vsel %vm3494, %v3578, %v3554
  %v3580 = vsel %vm3493, %v776, %v3577
  %v3581 = vsel %vm3493, 0, %v3579
  %v3582 = vcosq.f32.pop %v3580
  %v3583 = vsinq.f32.pop %v3580
  %vm3584 = vweird.f32 %v776
  %v3585 = vadd.s32 %v3581, 3
  %v3586 = vand.u32 %v3585, 3
  %vm3587 = vcmp.lt.s32.totalorder %v3586, 2
  %vm3588 = vcmp.eq.s32.totalorder %v3586, 0
  %v3589 = vxor.u32 %v3583, 2147483648
  %v3590 = vsel %vm3588, %v3582, %v3589
  %vm3591 = vcmp.eq.s32.totalorder %v3586, 2
  %v3592 = vxor.u32 %v3582, 2147483648
  %v3593 = vsel %vm3591, %v3592, %v3583
  %v3594 = vsel %vm3587, %v3590, %v3593
  %v3595 = vsel %vm3584, nan, %v3594
  %v3596 = vand.u32 2147483647, %v777
  %vm3597 = vcmp.le.f32.partialorder %v3596, 0.7853982
  %vm3598 = vcmp.lt.s32.totalorder %v777, 0
  %v3599 = vand.u32 %v777, 2139095040
  %v3600 = vshrl.u32 %v3599, 23
  %v3601 = vsub.s32 %v3600, 127
  %v3602 = vand.u32 2147483647, %v777
  %v3603 = vand.u32 %v3602, 8388607
  %v3604 = vor.u32 %v3603, 8388608
  %v3605 = vsub.s32 0, %v3604
  %v3606 = vadd.s32 %v3601, 1
  %vm3607 = vcmp.gt.s32.totalorder %v3606, 0
  %v3608 = vsel %vm3607, %v3606, 0
  %v3609 = vshrl.u32 %v3608, 5
  %v3610 = vand.u32 %v3608, 31
  %v3611 = vsub.s32 32, %v3610
  %v3612 = vshrl.u32 683565275, %v3611
  %v3613 = vshll.u32 683565275, %v3610
  %v3614 = vshrl.u32 2475754826, %v3611
  %v3615 = vor.u32 %v3613, %v3614
  %v3616 = vshll.u32 2475754826, %v3610
  %v3617 = vshrl.u32 2131351028, %v3611
  %v3618 = vor.u32 %v3616, %v3617
  %v3619 = vshll.u32 2131351028, %v3610
  %v3620 = vshrl.u32 2102212464, %v3611
  %v3621 = vor.u32 %v3619, %v3620
  %v3622 = vshll.u32 2102212464, %v3610
  %v3623 = vshrl.u32 920167782, %v3611
  %v3624 = vor.u32 %v3622, %v3623
  %v3625 = vshll.u32 920167782, %v3610
  %v3626 = vshrl.u32 1326507024, %v3611
  %v3627 = vor.u32 %v3625, %v3626
  %vm3628 = vcmp.lt.s32.totalorder %v3609, 1
  %vm3629 = vcmp.lt.s32.totalorder %v3609, 2
  %vm3630 = vcmp.lt.s32.totalorder %v3609, 3
  %vm3631 = vcmp.lt.s32.totalorder %v3609, 4
  %v3632 = vsel %vm3628, %v3612, %v3615
  %v3633 = vsel %vm3631, %v3621, 2102212464
  %v3634 = vsel %vm3630, %v3618, %v3633
  %v3635 = vsel %vm3629, %v3632, %v3634
  %v3636 = vsel %vm3628, %v3615, %v3618
  %v3637 = vsel %vm3631, %v3624, 920167782
  %v3638 = vsel %vm3630, %v3621, %v3637
  %v3639 = vsel %vm3629, %v3636, %v3638
  %v3640 = vsel %vm3628, %v3618, %v3621
  %v3641 = vsel %vm3631, %v3627, 1326507024
  %v3642 = vsel %vm3630, %v3624, %v3641
  %v3643 = vsel %vm3629, %v3640, %v3642
  %v3644 = vshll.u32 %v3604, 8
  %v3645 = vmul.u32.u64.compose %v3644, %v3643
  %v3646 = vextract.low.u32 %v3645
  %v3647 = vextract.high.u32 %v3645
  %v3648 = vmul.u32.u64.compose %v3644, %v3639
  %v3649 = vextract.low.u32 %v3648
  %v3650 = vextract.high.u32 %v3648
  %v3651 = vmul.u32 %v3644, %v3635
  %v3652 = vadd.s32 %v3647, %v3649
  %vm3653 = vc.u32 %v3647, %v3649
  %v3654 = vadd.s32 %v3650, 1
  %v3655 = vsel %vm3653, %v3654, %v3650
  %v3656 = vadd.s32 %v3651, %v3655
  %v3657 = vadd.s32 %v3656, 536870912
  %v3658 = vshrl.u32 %v3657, 30
  %v3659 = vshll.u32 %v3658, 30
  %v3660 = vsub.s32 %v3656, %v3659
  %vm3661 = vcmp.lt.s32.totalorder %v3660, 0
  %v3662 = vsub.s32 0, %v3660
  %v3663 = vsel %vm3661, %v3662, %v3660
  %v3664 = vclz %v3663
  %v3665 = vsub.s32 %v3664, 2
  %vm3666 = vcmp.gt.s32.totalorder 0, %v3665
  %v3667 = vsel %vm3666, 0, %v3665
  %v3668 = vsub.s32 32, %v3667
  %v3669 = vshll.u32 %v3660, %v3667
  %v3670 = vshrl.u32 %v3652, %v3668
  %v3671 = vor.u32 %v3669, %v3670
  %v3672 = vsub.s32 4294967266, %v3667
  %v3673 = vadd.s32 %v3672, 127
  %v3674 = vshll.u32 %v3673, 23
  %v3675 = vor.u32 4788187, %v3674
  %v3676 = vand.u32 2147483647, %v3675
  %v3678 = vcvt.s32.f32 %v3671
  %v3679 = vmul.f32 %v3678, %v3676
  %v3680 = vxor.u32 %v3679, 2147483648
  %v3681 = vsel %vm3598, %v3680, %v3679
  %v3682 = vsub.s32 4, %v3658
  %v3683 = vsel %vm3598, %v3682, %v3658
  %v3684 = vsel %vm3597, %v777, %v3681
  %v3685 = vsel %vm3597, 0, %v3683
  %v3686 = vcosq.f32.pop %v3684
  %v3687 = vsinq.f32.pop %v3684
  %vm3688 = vweird.f32 %v777
  %v3689 = vadd.s32 %v3685, 3
  %v3690 = vand.u32 %v3689, 3
  %vm3691 = vcmp.lt.s32.totalorder %v3690, 2
  %vm3692 = vcmp.eq.s32.totalorder %v3690, 0
  %v3693 = vxor.u32 %v3687, 2147483648
  %v3694 = vsel %vm3692, %v3686, %v3693
  %vm3695 = vcmp.eq.s32.totalorder %v3690, 2
  %v3696 = vxor.u32 %v3686, 2147483648
  %v3697 = vsel %vm3695, %v3696, %v3687
  %v3698 = vsel %vm3691, %v3694, %v3697
  %v3699 = vsel %vm3688, nan, %v3698
  %v3700 = vand.u32 2147483647, %v778
  %vm3701 = vcmp.le.f32.partialorder %v3700, 0.7853982
  %vm3702 = vcmp.lt.s32.totalorder %v778, 0
  %v3703 = vand.u32 %v778, 2139095040
  %v3704 = vshrl.u32 %v3703, 23
  %v3705 = vsub.s32 %v3704, 127
  %v3706 = vand.u32 2147483647, %v778
  %v3707 = vand.u32 %v3706, 8388607
  %v3708 = vor.u32 %v3707, 8388608
  %v3709 = vsub.s32 0, %v3708
  %v3710 = vadd.s32 %v3705, 1
  %vm3711 = vcmp.gt.s32.totalorder %v3710, 0
  %v3712 = vsel %vm3711, %v3710, 0
  %v3713 = vshrl.u32 %v3712, 5
  %v3714 = vand.u32 %v3712, 31
  %v3715 = vsub.s32 32, %v3714
  %v3716 = vshrl.u32 683565275, %v3715
  %v3717 = vshll.u32 683565275, %v3714
  %v3718 = vshrl.u32 2475754826, %v3715
  %v3719 = vor.u32 %v3717, %v3718
  %v3720 = vshll.u32 2475754826, %v3714
  %v3721 = vshrl.u32 2131351028, %v3715
  %v3722 = vor.u32 %v3720, %v3721
  %v3723 = vshll.u32 2131351028, %v3714
  %v3724 = vshrl.u32 2102212464, %v3715
  %v3725 = vor.u32 %v3723, %v3724
  %v3726 = vshll.u32 2102212464, %v3714
  %v3727 = vshrl.u32 920167782, %v3715
  %v3728 = vor.u32 %v3726, %v3727
  %v3729 = vshll.u32 920167782, %v3714
  %v3730 = vshrl.u32 1326507024, %v3715
  %v3731 = vor.u32 %v3729, %v3730
  %vm3732 = vcmp.lt.s32.totalorder %v3713, 1
  %vm3733 = vcmp.lt.s32.totalorder %v3713, 2
  %vm3734 = vcmp.lt.s32.totalorder %v3713, 3
  %vm3735 = vcmp.lt.s32.totalorder %v3713, 4
  %v3736 = vsel %vm3732, %v3716, %v3719
  %v3737 = vsel %vm3735, %v3725, 2102212464
  %v3738 = vsel %vm3734, %v3722, %v3737
  %v3739 = vsel %vm3733, %v3736, %v3738
  %v3740 = vsel %vm3732, %v3719, %v3722
  %v3741 = vsel %vm3735, %v3728, 920167782
  %v3742 = vsel %vm3734, %v3725, %v3741
  %v3743 = vsel %vm3733, %v3740, %v3742
  %v3744 = vsel %vm3732, %v3722, %v3725
  %v3745 = vsel %vm3735, %v3731, 1326507024
  %v3746 = vsel %vm3734, %v3728, %v3745
  %v3747 = vsel %vm3733, %v3744, %v3746
  %v3748 = vshll.u32 %v3708, 8
  %v3749 = vmul.u32.u64.compose %v3748, %v3747
  %v3750 = vextract.low.u32 %v3749
  %v3751 = vextract.high.u32 %v3749
  %v3752 = vmul.u32.u64.compose %v3748, %v3743
  %v3753 = vextract.low.u32 %v3752
  %v3754 = vextract.high.u32 %v3752
  %v3755 = vmul.u32 %v3748, %v3739
  %v3756 = vadd.s32 %v3751, %v3753
  %vm3757 = vc.u32 %v3751, %v3753
  %v3758 = vadd.s32 %v3754, 1
  %v3759 = vsel %vm3757, %v3758, %v3754
  %v3760 = vadd.s32 %v3755, %v3759
  %v3761 = vadd.s32 %v3760, 536870912
  %v3762 = vshrl.u32 %v3761, 30
  %v3763 = vshll.u32 %v3762, 30
  %v3764 = vsub.s32 %v3760, %v3763
  %vm3765 = vcmp.lt.s32.totalorder %v3764, 0
  %v3766 = vsub.s32 0, %v3764
  %v3767 = vsel %vm3765, %v3766, %v3764
  %v3768 = vclz %v3767
  %v3769 = vsub.s32 %v3768, 2
  %vm3770 = vcmp.gt.s32.totalorder 0, %v3769
  %v3771 = vsel %vm3770, 0, %v3769
  %v3772 = vsub.s32 32, %v3771
  %v3773 = vshll.u32 %v3764, %v3771
  %v3774 = vshrl.u32 %v3756, %v3772
  %v3775 = vor.u32 %v3773, %v3774
  %v3776 = vsub.s32 4294967266, %v3771
  %v3777 = vadd.s32 %v3776, 127
  %v3778 = vshll.u32 %v3777, 23
  %v3779 = vor.u32 4788187, %v3778
  %v3780 = vand.u32 2147483647, %v3779
  %v3782 = vcvt.s32.f32 %v3775
  %v3783 = vmul.f32 %v3782, %v3780
  %v3784 = vxor.u32 %v3783, 2147483648
  %v3785 = vsel %vm3702, %v3784, %v3783
  %v3786 = vsub.s32 4, %v3762
  %v3787 = vsel %vm3702, %v3786, %v3762
  %v3788 = vsel %vm3701, %v778, %v3785
  %v3789 = vsel %vm3701, 0, %v3787
  %v3790 = vcosq.f32.pop %v3788
  %v3791 = vsinq.f32.pop %v3788
  %vm3792 = vweird.f32 %v778
  %v3793 = vadd.s32 %v3789, 3
  %v3794 = vand.u32 %v3793, 3
  %vm3795 = vcmp.lt.s32.totalorder %v3794, 2
  %vm3796 = vcmp.eq.s32.totalorder %v3794, 0
  %v3797 = vxor.u32 %v3791, 2147483648
  %v3798 = vsel %vm3796, %v3790, %v3797
  %vm3799 = vcmp.eq.s32.totalorder %v3794, 2
  %v3800 = vxor.u32 %v3790, 2147483648
  %v3801 = vsel %vm3799, %v3800, %v3791
  %v3802 = vsel %vm3795, %v3798, %v3801
  %v3803 = vsel %vm3792, nan, %v3802
  %v3804 = vand.u32 2147483647, %v779
  %vm3805 = vcmp.le.f32.partialorder %v3804, 0.7853982
  %vm3806 = vcmp.lt.s32.totalorder %v779, 0
  %v3807 = vand.u32 %v779, 2139095040
  %v3808 = vshrl.u32 %v3807, 23
  %v3809 = vsub.s32 %v3808, 127
  %v3810 = vand.u32 2147483647, %v779
  %v3811 = vand.u32 %v3810, 8388607
  %v3812 = vor.u32 %v3811, 8388608
  %v3813 = vsub.s32 0, %v3812
  %v3814 = vadd.s32 %v3809, 1
  %vm3815 = vcmp.gt.s32.totalorder %v3814, 0
  %v3816 = vsel %vm3815, %v3814, 0
  %v3817 = vshrl.u32 %v3816, 5
  %v3818 = vand.u32 %v3816, 31
  %v3819 = vsub.s32 32, %v3818
  %v3820 = vshrl.u32 683565275, %v3819
  %v3821 = vshll.u32 683565275, %v3818
  %v3822 = vshrl.u32 2475754826, %v3819
  %v3823 = vor.u32 %v3821, %v3822
  %v3824 = vshll.u32 2475754826, %v3818
  %v3825 = vshrl.u32 2131351028, %v3819
  %v3826 = vor.u32 %v3824, %v3825
  %v3827 = vshll.u32 2131351028, %v3818
  %v3828 = vshrl.u32 2102212464, %v3819
  %v3829 = vor.u32 %v3827, %v3828
  %v3830 = vshll.u32 2102212464, %v3818
  %v3831 = vshrl.u32 920167782, %v3819
  %v3832 = vor.u32 %v3830, %v3831
  %v3833 = vshll.u32 920167782, %v3818
  %v3834 = vshrl.u32 1326507024, %v3819
  %v3835 = vor.u32 %v3833, %v3834
  %vm3836 = vcmp.lt.s32.totalorder %v3817, 1
  %vm3837 = vcmp.lt.s32.totalorder %v3817, 2
  %vm3838 = vcmp.lt.s32.totalorder %v3817, 3
  %vm3839 = vcmp.lt.s32.totalorder %v3817, 4
  %v3840 = vsel %vm3836, %v3820, %v3823
  %v3841 = vsel %vm3839, %v3829, 2102212464
  %v3842 = vsel %vm3838, %v3826, %v3841
  %v3843 = vsel %vm3837, %v3840, %v3842
  %v3844 = vsel %vm3836, %v3823, %v3826
  %v3845 = vsel %vm3839, %v3832, 920167782
  %v3846 = vsel %vm3838, %v3829, %v3845
  %v3847 = vsel %vm3837, %v3844, %v3846
  %v3848 = vsel %vm3836, %v3826, %v3829
  %v3849 = vsel %vm3839, %v3835, 1326507024
  %v3850 = vsel %vm3838, %v3832, %v3849
  %v3851 = vsel %vm3837, %v3848, %v3850
  %v3852 = vshll.u32 %v3812, 8
  %v3853 = vmul.u32.u64.compose %v3852, %v3851
  %v3854 = vextract.low.u32 %v3853
  %v3855 = vextract.high.u32 %v3853
  %v3856 = vmul.u32.u64.compose %v3852, %v3847
  %v3857 = vextract.low.u32 %v3856
  %v3858 = vextract.high.u32 %v3856
  %v3859 = vmul.u32 %v3852, %v3843
  %v3860 = vadd.s32 %v3855, %v3857
  %vm3861 = vc.u32 %v3855, %v3857
  %v3862 = vadd.s32 %v3858, 1
  %v3863 = vsel %vm3861, %v3862, %v3858
  %v3864 = vadd.s32 %v3859, %v3863
  %v3865 = vadd.s32 %v3864, 536870912
  %v3866 = vshrl.u32 %v3865, 30
  %v3867 = vshll.u32 %v3866, 30
  %v3868 = vsub.s32 %v3864, %v3867
  %vm3869 = vcmp.lt.s32.totalorder %v3868, 0
  %v3870 = vsub.s32 0, %v3868
  %v3871 = vsel %vm3869, %v3870, %v3868
  %v3872 = vclz %v3871
  %v3873 = vsub.s32 %v3872, 2
  %vm3874 = vcmp.gt.s32.totalorder 0, %v3873
  %v3875 = vsel %vm3874, 0, %v3873
  %v3876 = vsub.s32 32, %v3875
  %v3877 = vshll.u32 %v3868, %v3875
  %v3878 = vshrl.u32 %v3860, %v3876
  %v3879 = vor.u32 %v3877, %v3878
  %v3880 = vsub.s32 4294967266, %v3875
  %v3881 = vadd.s32 %v3880, 127
  %v3882 = vshll.u32 %v3881, 23
  %v3883 = vor.u32 4788187, %v3882
  %v3884 = vand.u32 2147483647, %v3883
  %v3886 = vcvt.s32.f32 %v3879
  %v3887 = vmul.f32 %v3886, %v3884
  %v3888 = vxor.u32 %v3887, 2147483648
  %v3889 = vsel %vm3806, %v3888, %v3887
  %v3890 = vsub.s32 4, %v3866
  %v3891 = vsel %vm3806, %v3890, %v3866
  %v3892 = vsel %vm3805, %v779, %v3889
  %v3893 = vsel %vm3805, 0, %v3891
  %v3894 = vcosq.f32.pop %v3892
  %v3895 = vsinq.f32.pop %v3892
  %vm3896 = vweird.f32 %v779
  %v3897 = vadd.s32 %v3893, 3
  %v3898 = vand.u32 %v3897, 3
  %vm3899 = vcmp.lt.s32.totalorder %v3898, 2
  %vm3900 = vcmp.eq.s32.totalorder %v3898, 0
  %v3901 = vxor.u32 %v3895, 2147483648
  %v3902 = vsel %vm3900, %v3894, %v3901
  %vm3903 = vcmp.eq.s32.totalorder %v3898, 2
  %v3904 = vxor.u32 %v3894, 2147483648
  %v3905 = vsel %vm3903, %v3904, %v3895
  %v3906 = vsel %vm3899, %v3902, %v3905
  %v3907 = vsel %vm3896, nan, %v3906
  %v3908 = vand.u32 2147483647, %v780
  %vm3909 = vcmp.le.f32.partialorder %v3908, 0.7853982
  %vm3910 = vcmp.lt.s32.totalorder %v780, 0
  %v3911 = vand.u32 %v780, 2139095040
  %v3912 = vshrl.u32 %v3911, 23
  %v3913 = vsub.s32 %v3912, 127
  %v3914 = vand.u32 2147483647, %v780
  %v3915 = vand.u32 %v3914, 8388607
  %v3916 = vor.u32 %v3915, 8388608
  %v3917 = vsub.s32 0, %v3916
  %v3918 = vadd.s32 %v3913, 1
  %vm3919 = vcmp.gt.s32.totalorder %v3918, 0
  %v3920 = vsel %vm3919, %v3918, 0
  %v3921 = vshrl.u32 %v3920, 5
  %v3922 = vand.u32 %v3920, 31
  %v3923 = vsub.s32 32, %v3922
  %v3924 = vshrl.u32 683565275, %v3923
  %v3925 = vshll.u32 683565275, %v3922
  %v3926 = vshrl.u32 2475754826, %v3923
  %v3927 = vor.u32 %v3925, %v3926
  %v3928 = vshll.u32 2475754826, %v3922
  %v3929 = vshrl.u32 2131351028, %v3923
  %v3930 = vor.u32 %v3928, %v3929
  %v3931 = vshll.u32 2131351028, %v3922
  %v3932 = vshrl.u32 2102212464, %v3923
  %v3933 = vor.u32 %v3931, %v3932
  %v3934 = vshll.u32 2102212464, %v3922
  %v3935 = vshrl.u32 920167782, %v3923
  %v3936 = vor.u32 %v3934, %v3935
  %v3937 = vshll.u32 920167782, %v3922
  %v3938 = vshrl.u32 1326507024, %v3923
  %v3939 = vor.u32 %v3937, %v3938
  %vm3940 = vcmp.lt.s32.totalorder %v3921, 1
  %vm3941 = vcmp.lt.s32.totalorder %v3921, 2
  %vm3942 = vcmp.lt.s32.totalorder %v3921, 3
  %vm3943 = vcmp.lt.s32.totalorder %v3921, 4
  %v3944 = vsel %vm3940, %v3924, %v3927
  %v3945 = vsel %vm3943, %v3933, 2102212464
  %v3946 = vsel %vm3942, %v3930, %v3945
  %v3947 = vsel %vm3941, %v3944, %v3946
  %v3948 = vsel %vm3940, %v3927, %v3930
  %v3949 = vsel %vm3943, %v3936, 920167782
  %v3950 = vsel %vm3942, %v3933, %v3949
  %v3951 = vsel %vm3941, %v3948, %v3950
  %v3952 = vsel %vm3940, %v3930, %v3933
  %v3953 = vsel %vm3943, %v3939, 1326507024
  %v3954 = vsel %vm3942, %v3936, %v3953
  %v3955 = vsel %vm3941, %v3952, %v3954
  %v3956 = vshll.u32 %v3916, 8
  %v3957 = vmul.u32.u64.compose %v3956, %v3955
  %v3958 = vextract.low.u32 %v3957
  %v3959 = vextract.high.u32 %v3957
  %v3960 = vmul.u32.u64.compose %v3956, %v3951
  %v3961 = vextract.low.u32 %v3960
  %v3962 = vextract.high.u32 %v3960
  %v3963 = vmul.u32 %v3956, %v3947
  %v3964 = vadd.s32 %v3959, %v3961
  %vm3965 = vc.u32 %v3959, %v3961
  %v3966 = vadd.s32 %v3962, 1
  %v3967 = vsel %vm3965, %v3966, %v3962
  %v3968 = vadd.s32 %v3963, %v3967
  %v3969 = vadd.s32 %v3968, 536870912
  %v3970 = vshrl.u32 %v3969, 30
  %v3971 = vshll.u32 %v3970, 30
  %v3972 = vsub.s32 %v3968, %v3971
  %vm3973 = vcmp.lt.s32.totalorder %v3972, 0
  %v3974 = vsub.s32 0, %v3972
  %v3975 = vsel %vm3973, %v3974, %v3972
  %v3976 = vclz %v3975
  %v3977 = vsub.s32 %v3976, 2
  %vm3978 = vcmp.gt.s32.totalorder 0, %v3977
  %v3979 = vsel %vm3978, 0, %v3977
  %v3980 = vsub.s32 32, %v3979
  %v3981 = vshll.u32 %v3972, %v3979
  %v3982 = vshrl.u32 %v3964, %v3980
  %v3983 = vor.u32 %v3981, %v3982
  %v3984 = vsub.s32 4294967266, %v3979
  %v3985 = vadd.s32 %v3984, 127
  %v3986 = vshll.u32 %v3985, 23
  %v3987 = vor.u32 4788187, %v3986
  %v3988 = vand.u32 2147483647, %v3987
  %v3990 = vcvt.s32.f32 %v3983
  %v3991 = vmul.f32 %v3990, %v3988
  %v3992 = vxor.u32 %v3991, 2147483648
  %v3993 = vsel %vm3910, %v3992, %v3991
  %v3994 = vsub.s32 4, %v3970
  %v3995 = vsel %vm3910, %v3994, %v3970
  %v3996 = vsel %vm3909, %v780, %v3993
  %v3997 = vsel %vm3909, 0, %v3995
  %v3998 = vcosq.f32.pop %v3996
  %v3999 = vsinq.f32.pop %v3996
  %vm4000 = vweird.f32 %v780
  %v4001 = vadd.s32 %v3997, 3
  %v4002 = vand.u32 %v4001, 3
  %vm4003 = vcmp.lt.s32.totalorder %v4002, 2
  %vm4004 = vcmp.eq.s32.totalorder %v4002, 0
  %v4005 = vxor.u32 %v3999, 2147483648
  %v4006 = vsel %vm4004, %v3998, %v4005
  %vm4007 = vcmp.eq.s32.totalorder %v4002, 2
  %v4008 = vxor.u32 %v3998, 2147483648
  %v4009 = vsel %vm4007, %v4008, %v3999
  %v4010 = vsel %vm4003, %v4006, %v4009
  %v4011 = vsel %vm4000, nan, %v4010
  %v4012 = vand.u32 2147483647, %v781
  %vm4013 = vcmp.le.f32.partialorder %v4012, 0.7853982
  %vm4014 = vcmp.lt.s32.totalorder %v781, 0
  %v4015 = vand.u32 %v781, 2139095040
  %v4016 = vshrl.u32 %v4015, 23
  %v4017 = vsub.s32 %v4016, 127
  %v4018 = vand.u32 2147483647, %v781
  %v4019 = vand.u32 %v4018, 8388607
  %v4020 = vor.u32 %v4019, 8388608
  %v4021 = vsub.s32 0, %v4020
  %v4022 = vadd.s32 %v4017, 1
  %vm4023 = vcmp.gt.s32.totalorder %v4022, 0
  %v4024 = vsel %vm4023, %v4022, 0
  %v4025 = vshrl.u32 %v4024, 5
  %v4026 = vand.u32 %v4024, 31
  %v4027 = vsub.s32 32, %v4026
  %v4028 = vshrl.u32 683565275, %v4027
  %v4029 = vshll.u32 683565275, %v4026
  %v4030 = vshrl.u32 2475754826, %v4027
  %v4031 = vor.u32 %v4029, %v4030
  %v4032 = vshll.u32 2475754826, %v4026
  %v4033 = vshrl.u32 2131351028, %v4027
  %v4034 = vor.u32 %v4032, %v4033
  %v4035 = vshll.u32 2131351028, %v4026
  %v4036 = vshrl.u32 2102212464, %v4027
  %v4037 = vor.u32 %v4035, %v4036
  %v4038 = vshll.u32 2102212464, %v4026
  %v4039 = vshrl.u32 920167782, %v4027
  %v4040 = vor.u32 %v4038, %v4039
  %v4041 = vshll.u32 920167782, %v4026
  %v4042 = vshrl.u32 1326507024, %v4027
  %v4043 = vor.u32 %v4041, %v4042
  %vm4044 = vcmp.lt.s32.totalorder %v4025, 1
  %vm4045 = vcmp.lt.s32.totalorder %v4025, 2
  %vm4046 = vcmp.lt.s32.totalorder %v4025, 3
  %vm4047 = vcmp.lt.s32.totalorder %v4025, 4
  %v4048 = vsel %vm4044, %v4028, %v4031
  %v4049 = vsel %vm4047, %v4037, 2102212464
  %v4050 = vsel %vm4046, %v4034, %v4049
  %v4051 = vsel %vm4045, %v4048, %v4050
  %v4052 = vsel %vm4044, %v4031, %v4034
  %v4053 = vsel %vm4047, %v4040, 920167782
  %v4054 = vsel %vm4046, %v4037, %v4053
  %v4055 = vsel %vm4045, %v4052, %v4054
  %v4056 = vsel %vm4044, %v4034, %v4037
  %v4057 = vsel %vm4047, %v4043, 1326507024
  %v4058 = vsel %vm4046, %v4040, %v4057
  %v4059 = vsel %vm4045, %v4056, %v4058
  %v4060 = vshll.u32 %v4020, 8
  %v4061 = vmul.u32.u64.compose %v4060, %v4059
  %v4062 = vextract.low.u32 %v4061
  %v4063 = vextract.high.u32 %v4061
  %v4064 = vmul.u32.u64.compose %v4060, %v4055
  %v4065 = vextract.low.u32 %v4064
  %v4066 = vextract.high.u32 %v4064
  %v4067 = vmul.u32 %v4060, %v4051
  %v4068 = vadd.s32 %v4063, %v4065
  %vm4069 = vc.u32 %v4063, %v4065
  %v4070 = vadd.s32 %v4066, 1
  %v4071 = vsel %vm4069, %v4070, %v4066
  %v4072 = vadd.s32 %v4067, %v4071
  %v4073 = vadd.s32 %v4072, 536870912
  %v4074 = vshrl.u32 %v4073, 30
  %v4075 = vshll.u32 %v4074, 30
  %v4076 = vsub.s32 %v4072, %v4075
  %vm4077 = vcmp.lt.s32.totalorder %v4076, 0
  %v4078 = vsub.s32 0, %v4076
  %v4079 = vsel %vm4077, %v4078, %v4076
  %v4080 = vclz %v4079
  %v4081 = vsub.s32 %v4080, 2
  %vm4082 = vcmp.gt.s32.totalorder 0, %v4081
  %v4083 = vsel %vm4082, 0, %v4081
  %v4084 = vsub.s32 32, %v4083
  %v4085 = vshll.u32 %v4076, %v4083
  %v4086 = vshrl.u32 %v4068, %v4084
  %v4087 = vor.u32 %v4085, %v4086
  %v4088 = vsub.s32 4294967266, %v4083
  %v4089 = vadd.s32 %v4088, 127
  %v4090 = vshll.u32 %v4089, 23
  %v4091 = vor.u32 4788187, %v4090
  %v4092 = vand.u32 2147483647, %v4091
  %v4094 = vcvt.s32.f32 %v4087
  %v4095 = vmul.f32 %v4094, %v4092
  %v4096 = vxor.u32 %v4095, 2147483648
  %v4097 = vsel %vm4014, %v4096, %v4095
  %v4098 = vsub.s32 4, %v4074
  %v4099 = vsel %vm4014, %v4098, %v4074
  %v4100 = vsel %vm4013, %v781, %v4097
  %v4101 = vsel %vm4013, 0, %v4099
  %v4102 = vcosq.f32.pop %v4100
  %v4103 = vsinq.f32.pop %v4100
  %vm4104 = vweird.f32 %v781
  %v4105 = vadd.s32 %v4101, 3
  %v4106 = vand.u32 %v4105, 3
  %vm4107 = vcmp.lt.s32.totalorder %v4106, 2
  %vm4108 = vcmp.eq.s32.totalorder %v4106, 0
  %v4109 = vxor.u32 %v4103, 2147483648
  %v4110 = vsel %vm4108, %v4102, %v4109
  %vm4111 = vcmp.eq.s32.totalorder %v4106, 2
  %v4112 = vxor.u32 %v4102, 2147483648
  %v4113 = vsel %vm4111, %v4112, %v4103
  %v4114 = vsel %vm4107, %v4110, %v4113
  %v4115 = vsel %vm4104, nan, %v4114
  %v4116 = vand.u32 2147483647, %v782
  %vm4117 = vcmp.le.f32.partialorder %v4116, 0.7853982
  %vm4118 = vcmp.lt.s32.totalorder %v782, 0
  %v4119 = vand.u32 %v782, 2139095040
  %v4120 = vshrl.u32 %v4119, 23
  %v4121 = vsub.s32 %v4120, 127
  %v4122 = vand.u32 2147483647, %v782
  %v4123 = vand.u32 %v4122, 8388607
  %v4124 = vor.u32 %v4123, 8388608
  %v4125 = vsub.s32 0, %v4124
  %v4126 = vadd.s32 %v4121, 1
  %vm4127 = vcmp.gt.s32.totalorder %v4126, 0
  %v4128 = vsel %vm4127, %v4126, 0
  %v4129 = vshrl.u32 %v4128, 5
  %v4130 = vand.u32 %v4128, 31
  %v4131 = vsub.s32 32, %v4130
  %v4132 = vshrl.u32 683565275, %v4131
  %v4133 = vshll.u32 683565275, %v4130
  %v4134 = vshrl.u32 2475754826, %v4131
  %v4135 = vor.u32 %v4133, %v4134
  %v4136 = vshll.u32 2475754826, %v4130
  %v4137 = vshrl.u32 2131351028, %v4131
  %v4138 = vor.u32 %v4136, %v4137
  %v4139 = vshll.u32 2131351028, %v4130
  %v4140 = vshrl.u32 2102212464, %v4131
  %v4141 = vor.u32 %v4139, %v4140
  %v4142 = vshll.u32 2102212464, %v4130
  %v4143 = vshrl.u32 920167782, %v4131
  %v4144 = vor.u32 %v4142, %v4143
  %v4145 = vshll.u32 920167782, %v4130
  %v4146 = vshrl.u32 1326507024, %v4131
  %v4147 = vor.u32 %v4145, %v4146
  %vm4148 = vcmp.lt.s32.totalorder %v4129, 1
  %vm4149 = vcmp.lt.s32.totalorder %v4129, 2
  %vm4150 = vcmp.lt.s32.totalorder %v4129, 3
  %vm4151 = vcmp.lt.s32.totalorder %v4129, 4
  %v4152 = vsel %vm4148, %v4132, %v4135
  %v4153 = vsel %vm4151, %v4141, 2102212464
  %v4154 = vsel %vm4150, %v4138, %v4153
  %v4155 = vsel %vm4149, %v4152, %v4154
  %v4156 = vsel %vm4148, %v4135, %v4138
  %v4157 = vsel %vm4151, %v4144, 920167782
  %v4158 = vsel %vm4150, %v4141, %v4157
  %v4159 = vsel %vm4149, %v4156, %v4158
  %v4160 = vsel %vm4148, %v4138, %v4141
  %v4161 = vsel %vm4151, %v4147, 1326507024
  %v4162 = vsel %vm4150, %v4144, %v4161
  %v4163 = vsel %vm4149, %v4160, %v4162
  %v4164 = vshll.u32 %v4124, 8
  %v4165 = vmul.u32.u64.compose %v4164, %v4163
  %v4166 = vextract.low.u32 %v4165
  %v4167 = vextract.high.u32 %v4165
  %v4168 = vmul.u32.u64.compose %v4164, %v4159
  %v4169 = vextract.low.u32 %v4168
  %v4170 = vextract.high.u32 %v4168
  %v4171 = vmul.u32 %v4164, %v4155
  %v4172 = vadd.s32 %v4167, %v4169
  %vm4173 = vc.u32 %v4167, %v4169
  %v4174 = vadd.s32 %v4170, 1
  %v4175 = vsel %vm4173, %v4174, %v4170
  %v4176 = vadd.s32 %v4171, %v4175
  %v4177 = vadd.s32 %v4176, 536870912
  %v4178 = vshrl.u32 %v4177, 30
  %v4179 = vshll.u32 %v4178, 30
  %v4180 = vsub.s32 %v4176, %v4179
  %vm4181 = vcmp.lt.s32.totalorder %v4180, 0
  %v4182 = vsub.s32 0, %v4180
  %v4183 = vsel %vm4181, %v4182, %v4180
  %v4184 = vclz %v4183
  %v4185 = vsub.s32 %v4184, 2
  %vm4186 = vcmp.gt.s32.totalorder 0, %v4185
  %v4187 = vsel %vm4186, 0, %v4185
  %v4188 = vsub.s32 32, %v4187
  %v4189 = vshll.u32 %v4180, %v4187
  %v4190 = vshrl.u32 %v4172, %v4188
  %v4191 = vor.u32 %v4189, %v4190
  %v4192 = vsub.s32 4294967266, %v4187
  %v4193 = vadd.s32 %v4192, 127
  %v4194 = vshll.u32 %v4193, 23
  %v4195 = vor.u32 4788187, %v4194
  %v4196 = vand.u32 2147483647, %v4195
  %v4198 = vcvt.s32.f32 %v4191
  %v4199 = vmul.f32 %v4198, %v4196
  %v4200 = vxor.u32 %v4199, 2147483648
  %v4201 = vsel %vm4118, %v4200, %v4199
  %v4202 = vsub.s32 4, %v4178
  %v4203 = vsel %vm4118, %v4202, %v4178
  %v4204 = vsel %vm4117, %v782, %v4201
  %v4205 = vsel %vm4117, 0, %v4203
  %v4206 = vcosq.f32.pop %v4204
  %v4207 = vsinq.f32.pop %v4204
  %vm4208 = vweird.f32 %v782
  %v4209 = vadd.s32 %v4205, 3
  %v4210 = vand.u32 %v4209, 3
  %vm4211 = vcmp.lt.s32.totalorder %v4210, 2
  %vm4212 = vcmp.eq.s32.totalorder %v4210, 0
  %v4213 = vxor.u32 %v4207, 2147483648
  %v4214 = vsel %vm4212, %v4206, %v4213
  %vm4215 = vcmp.eq.s32.totalorder %v4210, 2
  %v4216 = vxor.u32 %v4206, 2147483648
  %v4217 = vsel %vm4215, %v4216, %v4207
  %v4218 = vsel %vm4211, %v4214, %v4217
  %v4219 = vsel %vm4208, nan, %v4218
  %v4220 = vand.u32 2147483647, %v783
  %vm4221 = vcmp.le.f32.partialorder %v4220, 0.7853982
  %vm4222 = vcmp.lt.s32.totalorder %v783, 0
  %v4223 = vand.u32 %v783, 2139095040
  %v4224 = vshrl.u32 %v4223, 23
  %v4225 = vsub.s32 %v4224, 127
  %v4226 = vand.u32 2147483647, %v783
  %v4227 = vand.u32 %v4226, 8388607
  %v4228 = vor.u32 %v4227, 8388608
  %v4229 = vsub.s32 0, %v4228
  %v4230 = vadd.s32 %v4225, 1
  %vm4231 = vcmp.gt.s32.totalorder %v4230, 0
  %v4232 = vsel %vm4231, %v4230, 0
  %v4233 = vshrl.u32 %v4232, 5
  %v4234 = vand.u32 %v4232, 31
  %v4235 = vsub.s32 32, %v4234
  %v4236 = vshrl.u32 683565275, %v4235
  %v4237 = vshll.u32 683565275, %v4234
  %v4238 = vshrl.u32 2475754826, %v4235
  %v4239 = vor.u32 %v4237, %v4238
  %v4240 = vshll.u32 2475754826, %v4234
  %v4241 = vshrl.u32 2131351028, %v4235
  %v4242 = vor.u32 %v4240, %v4241
  %v4243 = vshll.u32 2131351028, %v4234
  %v4244 = vshrl.u32 2102212464, %v4235
  %v4245 = vor.u32 %v4243, %v4244
  %v4246 = vshll.u32 2102212464, %v4234
  %v4247 = vshrl.u32 920167782, %v4235
  %v4248 = vor.u32 %v4246, %v4247
  %v4249 = vshll.u32 920167782, %v4234
  %v4250 = vshrl.u32 1326507024, %v4235
  %v4251 = vor.u32 %v4249, %v4250
  %vm4252 = vcmp.lt.s32.totalorder %v4233, 1
  %vm4253 = vcmp.lt.s32.totalorder %v4233, 2
  %vm4254 = vcmp.lt.s32.totalorder %v4233, 3
  %vm4255 = vcmp.lt.s32.totalorder %v4233, 4
  %v4256 = vsel %vm4252, %v4236, %v4239
  %v4257 = vsel %vm4255, %v4245, 2102212464
  %v4258 = vsel %vm4254, %v4242, %v4257
  %v4259 = vsel %vm4253, %v4256, %v4258
  %v4260 = vsel %vm4252, %v4239, %v4242
  %v4261 = vsel %vm4255, %v4248, 920167782
  %v4262 = vsel %vm4254, %v4245, %v4261
  %v4263 = vsel %vm4253, %v4260, %v4262
  %v4264 = vsel %vm4252, %v4242, %v4245
  %v4265 = vsel %vm4255, %v4251, 1326507024
  %v4266 = vsel %vm4254, %v4248, %v4265
  %v4267 = vsel %vm4253, %v4264, %v4266
  %v4268 = vshll.u32 %v4228, 8
  %v4269 = vmul.u32.u64.compose %v4268, %v4267
  %v4270 = vextract.low.u32 %v4269
  %v4271 = vextract.high.u32 %v4269
  %v4272 = vmul.u32.u64.compose %v4268, %v4263
  %v4273 = vextract.low.u32 %v4272
  %v4274 = vextract.high.u32 %v4272
  %v4275 = vmul.u32 %v4268, %v4259
  %v4276 = vadd.s32 %v4271, %v4273
  %vm4277 = vc.u32 %v4271, %v4273
  %v4278 = vadd.s32 %v4274, 1
  %v4279 = vsel %vm4277, %v4278, %v4274
  %v4280 = vadd.s32 %v4275, %v4279
  %v4281 = vadd.s32 %v4280, 536870912
  %v4282 = vshrl.u32 %v4281, 30
  %v4283 = vshll.u32 %v4282, 30
  %v4284 = vsub.s32 %v4280, %v4283
  %vm4285 = vcmp.lt.s32.totalorder %v4284, 0
  %v4286 = vsub.s32 0, %v4284
  %v4287 = vsel %vm4285, %v4286, %v4284
  %v4288 = vclz %v4287
  %v4289 = vsub.s32 %v4288, 2
  %vm4290 = vcmp.gt.s32.totalorder 0, %v4289
  %v4291 = vsel %vm4290, 0, %v4289
  %v4292 = vsub.s32 32, %v4291
  %v4293 = vshll.u32 %v4284, %v4291
  %v4294 = vshrl.u32 %v4276, %v4292
  %v4295 = vor.u32 %v4293, %v4294
  %v4296 = vsub.s32 4294967266, %v4291
  %v4297 = vadd.s32 %v4296, 127
  %v4298 = vshll.u32 %v4297, 23
  %v4299 = vor.u32 4788187, %v4298
  %v4300 = vand.u32 2147483647, %v4299
  %v4302 = vcvt.s32.f32 %v4295
  %v4303 = vmul.f32 %v4302, %v4300
  %v4304 = vxor.u32 %v4303, 2147483648
  %v4305 = vsel %vm4222, %v4304, %v4303
  %v4306 = vsub.s32 4, %v4282
  %v4307 = vsel %vm4222, %v4306, %v4282
  %v4308 = vsel %vm4221, %v783, %v4305
  %v4309 = vsel %vm4221, 0, %v4307
  %v4310 = vcosq.f32.pop %v4308
  %v4311 = vsinq.f32.pop %v4308
  %vm4312 = vweird.f32 %v783
  %v4313 = vadd.s32 %v4309, 3
  %v4314 = vand.u32 %v4313, 3
  %vm4315 = vcmp.lt.s32.totalorder %v4314, 2
  %vm4316 = vcmp.eq.s32.totalorder %v4314, 0
  %v4317 = vxor.u32 %v4311, 2147483648
  %v4318 = vsel %vm4316, %v4310, %v4317
  %vm4319 = vcmp.eq.s32.totalorder %v4314, 2
  %v4320 = vxor.u32 %v4310, 2147483648
  %v4321 = vsel %vm4319, %v4320, %v4311
  %v4322 = vsel %vm4315, %v4318, %v4321
  %v4323 = vsel %vm4312, nan, %v4322
  %v4324 = vand.u32 2147483647, %v784
  %vm4325 = vcmp.le.f32.partialorder %v4324, 0.7853982
  %vm4326 = vcmp.lt.s32.totalorder %v784, 0
  %v4327 = vand.u32 %v784, 2139095040
  %v4328 = vshrl.u32 %v4327, 23
  %v4329 = vsub.s32 %v4328, 127
  %v4330 = vand.u32 2147483647, %v784
  %v4331 = vand.u32 %v4330, 8388607
  %v4332 = vor.u32 %v4331, 8388608
  %v4333 = vsub.s32 0, %v4332
  %v4334 = vadd.s32 %v4329, 1
  %vm4335 = vcmp.gt.s32.totalorder %v4334, 0
  %v4336 = vsel %vm4335, %v4334, 0
  %v4337 = vshrl.u32 %v4336, 5
  %v4338 = vand.u32 %v4336, 31
  %v4339 = vsub.s32 32, %v4338
  %v4340 = vshrl.u32 683565275, %v4339
  %v4341 = vshll.u32 683565275, %v4338
  %v4342 = vshrl.u32 2475754826, %v4339
  %v4343 = vor.u32 %v4341, %v4342
  %v4344 = vshll.u32 2475754826, %v4338
  %v4345 = vshrl.u32 2131351028, %v4339
  %v4346 = vor.u32 %v4344, %v4345
  %v4347 = vshll.u32 2131351028, %v4338
  %v4348 = vshrl.u32 2102212464, %v4339
  %v4349 = vor.u32 %v4347, %v4348
  %v4350 = vshll.u32 2102212464, %v4338
  %v4351 = vshrl.u32 920167782, %v4339
  %v4352 = vor.u32 %v4350, %v4351
  %v4353 = vshll.u32 920167782, %v4338
  %v4354 = vshrl.u32 1326507024, %v4339
  %v4355 = vor.u32 %v4353, %v4354
  %vm4356 = vcmp.lt.s32.totalorder %v4337, 1
  %vm4357 = vcmp.lt.s32.totalorder %v4337, 2
  %vm4358 = vcmp.lt.s32.totalorder %v4337, 3
  %vm4359 = vcmp.lt.s32.totalorder %v4337, 4
  %v4360 = vsel %vm4356, %v4340, %v4343
  %v4361 = vsel %vm4359, %v4349, 2102212464
  %v4362 = vsel %vm4358, %v4346, %v4361
  %v4363 = vsel %vm4357, %v4360, %v4362
  %v4364 = vsel %vm4356, %v4343, %v4346
  %v4365 = vsel %vm4359, %v4352, 920167782
  %v4366 = vsel %vm4358, %v4349, %v4365
  %v4367 = vsel %vm4357, %v4364, %v4366
  %v4368 = vsel %vm4356, %v4346, %v4349
  %v4369 = vsel %vm4359, %v4355, 1326507024
  %v4370 = vsel %vm4358, %v4352, %v4369
  %v4371 = vsel %vm4357, %v4368, %v4370
  %v4372 = vshll.u32 %v4332, 8
  %v4373 = vmul.u32.u64.compose %v4372, %v4371
  %v4374 = vextract.low.u32 %v4373
  %v4375 = vextract.high.u32 %v4373
  %v4376 = vmul.u32.u64.compose %v4372, %v4367
  %v4377 = vextract.low.u32 %v4376
  %v4378 = vextract.high.u32 %v4376
  %v4379 = vmul.u32 %v4372, %v4363
  %v4380 = vadd.s32 %v4375, %v4377
  %vm4381 = vc.u32 %v4375, %v4377
  %v4382 = vadd.s32 %v4378, 1
  %v4383 = vsel %vm4381, %v4382, %v4378
  %v4384 = vadd.s32 %v4379, %v4383
  %v4385 = vadd.s32 %v4384, 536870912
  %v4386 = vshrl.u32 %v4385, 30
  %v4387 = vshll.u32 %v4386, 30
  %v4388 = vsub.s32 %v4384, %v4387
  %vm4389 = vcmp.lt.s32.totalorder %v4388, 0
  %v4390 = vsub.s32 0, %v4388
  %v4391 = vsel %vm4389, %v4390, %v4388
  %v4392 = vclz %v4391
  %v4393 = vsub.s32 %v4392, 2
  %vm4394 = vcmp.gt.s32.totalorder 0, %v4393
  %v4395 = vsel %vm4394, 0, %v4393
  %v4396 = vsub.s32 32, %v4395
  %v4397 = vshll.u32 %v4388, %v4395
  %v4398 = vshrl.u32 %v4380, %v4396
  %v4399 = vor.u32 %v4397, %v4398
  %v4400 = vsub.s32 4294967266, %v4395
  %v4401 = vadd.s32 %v4400, 127
  %v4402 = vshll.u32 %v4401, 23
  %v4403 = vor.u32 4788187, %v4402
  %v4404 = vand.u32 2147483647, %v4403
  %v4406 = vcvt.s32.f32 %v4399
  %v4407 = vmul.f32 %v4406, %v4404
  %v4408 = vxor.u32 %v4407, 2147483648
  %v4409 = vsel %vm4326, %v4408, %v4407
  %v4410 = vsub.s32 4, %v4386
  %v4411 = vsel %vm4326, %v4410, %v4386
  %v4412 = vsel %vm4325, %v784, %v4409
  %v4413 = vsel %vm4325, 0, %v4411
  %v4414 = vcosq.f32.pop %v4412
  %v4415 = vsinq.f32.pop %v4412
  %vm4416 = vweird.f32 %v784
  %v4417 = vadd.s32 %v4413, 3
  %v4418 = vand.u32 %v4417, 3
  %vm4419 = vcmp.lt.s32.totalorder %v4418, 2
  %vm4420 = vcmp.eq.s32.totalorder %v4418, 0
  %v4421 = vxor.u32 %v4415, 2147483648
  %v4422 = vsel %vm4420, %v4414, %v4421
  %vm4423 = vcmp.eq.s32.totalorder %v4418, 2
  %v4424 = vxor.u32 %v4414, 2147483648
  %v4425 = vsel %vm4423, %v4424, %v4415
  %v4426 = vsel %vm4419, %v4422, %v4425
  %v4427 = vsel %vm4416, nan, %v4426
  %v4428 = vand.u32 2147483647, %v785
  %vm4429 = vcmp.le.f32.partialorder %v4428, 0.7853982
  %vm4430 = vcmp.lt.s32.totalorder %v785, 0
  %v4431 = vand.u32 %v785, 2139095040
  %v4432 = vshrl.u32 %v4431, 23
  %v4433 = vsub.s32 %v4432, 127
  %v4434 = vand.u32 2147483647, %v785
  %v4435 = vand.u32 %v4434, 8388607
  %v4436 = vor.u32 %v4435, 8388608
  %v4437 = vsub.s32 0, %v4436
  %v4438 = vadd.s32 %v4433, 1
  %vm4439 = vcmp.gt.s32.totalorder %v4438, 0
  %v4440 = vsel %vm4439, %v4438, 0
  %v4441 = vshrl.u32 %v4440, 5
  %v4442 = vand.u32 %v4440, 31
  %v4443 = vsub.s32 32, %v4442
  %v4444 = vshrl.u32 683565275, %v4443
  %v4445 = vshll.u32 683565275, %v4442
  %v4446 = vshrl.u32 2475754826, %v4443
  %v4447 = vor.u32 %v4445, %v4446
  %v4448 = vshll.u32 2475754826, %v4442
  %v4449 = vshrl.u32 2131351028, %v4443
  %v4450 = vor.u32 %v4448, %v4449
  %v4451 = vshll.u32 2131351028, %v4442
  %v4452 = vshrl.u32 2102212464, %v4443
  %v4453 = vor.u32 %v4451, %v4452
  %v4454 = vshll.u32 2102212464, %v4442
  %v4455 = vshrl.u32 920167782, %v4443
  %v4456 = vor.u32 %v4454, %v4455
  %v4457 = vshll.u32 920167782, %v4442
  %v4458 = vshrl.u32 1326507024, %v4443
  %v4459 = vor.u32 %v4457, %v4458
  %vm4460 = vcmp.lt.s32.totalorder %v4441, 1
  %vm4461 = vcmp.lt.s32.totalorder %v4441, 2
  %vm4462 = vcmp.lt.s32.totalorder %v4441, 3
  %vm4463 = vcmp.lt.s32.totalorder %v4441, 4
  %v4464 = vsel %vm4460, %v4444, %v4447
  %v4465 = vsel %vm4463, %v4453, 2102212464
  %v4466 = vsel %vm4462, %v4450, %v4465
  %v4467 = vsel %vm4461, %v4464, %v4466
  %v4468 = vsel %vm4460, %v4447, %v4450
  %v4469 = vsel %vm4463, %v4456, 920167782
  %v4470 = vsel %vm4462, %v4453, %v4469
  %v4471 = vsel %vm4461, %v4468, %v4470
  %v4472 = vsel %vm4460, %v4450, %v4453
  %v4473 = vsel %vm4463, %v4459, 1326507024
  %v4474 = vsel %vm4462, %v4456, %v4473
  %v4475 = vsel %vm4461, %v4472, %v4474
  %v4476 = vshll.u32 %v4436, 8
  %v4477 = vmul.u32.u64.compose %v4476, %v4475
  %v4478 = vextract.low.u32 %v4477
  %v4479 = vextract.high.u32 %v4477
  %v4480 = vmul.u32.u64.compose %v4476, %v4471
  %v4481 = vextract.low.u32 %v4480
  %v4482 = vextract.high.u32 %v4480
  %v4483 = vmul.u32 %v4476, %v4467
  %v4484 = vadd.s32 %v4479, %v4481
  %vm4485 = vc.u32 %v4479, %v4481
  %v4486 = vadd.s32 %v4482, 1
  %v4487 = vsel %vm4485, %v4486, %v4482
  %v4488 = vadd.s32 %v4483, %v4487
  %v4489 = vadd.s32 %v4488, 536870912
  %v4490 = vshrl.u32 %v4489, 30
  %v4491 = vshll.u32 %v4490, 30
  %v4492 = vsub.s32 %v4488, %v4491
  %vm4493 = vcmp.lt.s32.totalorder %v4492, 0
  %v4494 = vsub.s32 0, %v4492
  %v4495 = vsel %vm4493, %v4494, %v4492
  %v4496 = vclz %v4495
  %v4497 = vsub.s32 %v4496, 2
  %vm4498 = vcmp.gt.s32.totalorder 0, %v4497
  %v4499 = vsel %vm4498, 0, %v4497
  %v4500 = vsub.s32 32, %v4499
  %v4501 = vshll.u32 %v4492, %v4499
  %v4502 = vshrl.u32 %v4484, %v4500
  %v4503 = vor.u32 %v4501, %v4502
  %v4504 = vsub.s32 4294967266, %v4499
  %v4505 = vadd.s32 %v4504, 127
  %v4506 = vshll.u32 %v4505, 23
  %v4507 = vor.u32 4788187, %v4506
  %v4508 = vand.u32 2147483647, %v4507
  %v4510 = vcvt.s32.f32 %v4503
  %v4511 = vmul.f32 %v4510, %v4508
  %v4512 = vxor.u32 %v4511, 2147483648
  %v4513 = vsel %vm4430, %v4512, %v4511
  %v4514 = vsub.s32 4, %v4490
  %v4515 = vsel %vm4430, %v4514, %v4490
  %v4516 = vsel %vm4429, %v785, %v4513
  %v4517 = vsel %vm4429, 0, %v4515
  %v4518 = vcosq.f32.pop %v4516
  %v4519 = vsinq.f32.pop %v4516
  %vm4520 = vweird.f32 %v785
  %v4521 = vadd.s32 %v4517, 3
  %v4522 = vand.u32 %v4521, 3
  %vm4523 = vcmp.lt.s32.totalorder %v4522, 2
  %vm4524 = vcmp.eq.s32.totalorder %v4522, 0
  %v4525 = vxor.u32 %v4519, 2147483648
  %v4526 = vsel %vm4524, %v4518, %v4525
  %vm4527 = vcmp.eq.s32.totalorder %v4522, 2
  %v4528 = vxor.u32 %v4518, 2147483648
  %v4529 = vsel %vm4527, %v4528, %v4519
  %v4530 = vsel %vm4523, %v4526, %v4529
  %v4531 = vsel %vm4520, nan, %v4530
  %v4532 = vand.u32 2147483647, %v786
  %vm4533 = vcmp.le.f32.partialorder %v4532, 0.7853982
  %vm4534 = vcmp.lt.s32.totalorder %v786, 0
  %v4535 = vand.u32 %v786, 2139095040
  %v4536 = vshrl.u32 %v4535, 23
  %v4537 = vsub.s32 %v4536, 127
  %v4538 = vand.u32 2147483647, %v786
  %v4539 = vand.u32 %v4538, 8388607
  %v4540 = vor.u32 %v4539, 8388608
  %v4541 = vsub.s32 0, %v4540
  %v4542 = vadd.s32 %v4537, 1
  %vm4543 = vcmp.gt.s32.totalorder %v4542, 0
  %v4544 = vsel %vm4543, %v4542, 0
  %v4545 = vshrl.u32 %v4544, 5
  %v4546 = vand.u32 %v4544, 31
  %v4547 = vsub.s32 32, %v4546
  %v4548 = vshrl.u32 683565275, %v4547
  %v4549 = vshll.u32 683565275, %v4546
  %v4550 = vshrl.u32 2475754826, %v4547
  %v4551 = vor.u32 %v4549, %v4550
  %v4552 = vshll.u32 2475754826, %v4546
  %v4553 = vshrl.u32 2131351028, %v4547
  %v4554 = vor.u32 %v4552, %v4553
  %v4555 = vshll.u32 2131351028, %v4546
  %v4556 = vshrl.u32 2102212464, %v4547
  %v4557 = vor.u32 %v4555, %v4556
  %v4558 = vshll.u32 2102212464, %v4546
  %v4559 = vshrl.u32 920167782, %v4547
  %v4560 = vor.u32 %v4558, %v4559
  %v4561 = vshll.u32 920167782, %v4546
  %v4562 = vshrl.u32 1326507024, %v4547
  %v4563 = vor.u32 %v4561, %v4562
  %vm4564 = vcmp.lt.s32.totalorder %v4545, 1
  %vm4565 = vcmp.lt.s32.totalorder %v4545, 2
  %vm4566 = vcmp.lt.s32.totalorder %v4545, 3
  %vm4567 = vcmp.lt.s32.totalorder %v4545, 4
  %v4568 = vsel %vm4564, %v4548, %v4551
  %v4569 = vsel %vm4567, %v4557, 2102212464
  %v4570 = vsel %vm4566, %v4554, %v4569
  %v4571 = vsel %vm4565, %v4568, %v4570
  %v4572 = vsel %vm4564, %v4551, %v4554
  %v4573 = vsel %vm4567, %v4560, 920167782
  %v4574 = vsel %vm4566, %v4557, %v4573
  %v4575 = vsel %vm4565, %v4572, %v4574
  %v4576 = vsel %vm4564, %v4554, %v4557
  %v4577 = vsel %vm4567, %v4563, 1326507024
  %v4578 = vsel %vm4566, %v4560, %v4577
  %v4579 = vsel %vm4565, %v4576, %v4578
  %v4580 = vshll.u32 %v4540, 8
  %v4581 = vmul.u32.u64.compose %v4580, %v4579
  %v4582 = vextract.low.u32 %v4581
  %v4583 = vextract.high.u32 %v4581
  %v4584 = vmul.u32.u64.compose %v4580, %v4575
  %v4585 = vextract.low.u32 %v4584
  %v4586 = vextract.high.u32 %v4584
  %v4587 = vmul.u32 %v4580, %v4571
  %v4588 = vadd.s32 %v4583, %v4585
  %vm4589 = vc.u32 %v4583, %v4585
  %v4590 = vadd.s32 %v4586, 1
  %v4591 = vsel %vm4589, %v4590, %v4586
  %v4592 = vadd.s32 %v4587, %v4591
  %v4593 = vadd.s32 %v4592, 536870912
  %v4594 = vshrl.u32 %v4593, 30
  %v4595 = vshll.u32 %v4594, 30
  %v4596 = vsub.s32 %v4592, %v4595
  %vm4597 = vcmp.lt.s32.totalorder %v4596, 0
  %v4598 = vsub.s32 0, %v4596
  %v4599 = vsel %vm4597, %v4598, %v4596
  %v4600 = vclz %v4599
  %v4601 = vsub.s32 %v4600, 2
  %vm4602 = vcmp.gt.s32.totalorder 0, %v4601
  %v4603 = vsel %vm4602, 0, %v4601
  %v4604 = vsub.s32 32, %v4603
  %v4605 = vshll.u32 %v4596, %v4603
  %v4606 = vshrl.u32 %v4588, %v4604
  %v4607 = vor.u32 %v4605, %v4606
  %v4608 = vsub.s32 4294967266, %v4603
  %v4609 = vadd.s32 %v4608, 127
  %v4610 = vshll.u32 %v4609, 23
  %v4611 = vor.u32 4788187, %v4610
  %v4612 = vand.u32 2147483647, %v4611
  %v4614 = vcvt.s32.f32 %v4607
  %v4615 = vmul.f32 %v4614, %v4612
  %v4616 = vxor.u32 %v4615, 2147483648
  %v4617 = vsel %vm4534, %v4616, %v4615
  %v4618 = vsub.s32 4, %v4594
  %v4619 = vsel %vm4534, %v4618, %v4594
  %v4620 = vsel %vm4533, %v786, %v4617
  %v4621 = vsel %vm4533, 0, %v4619
  %v4622 = vcosq.f32.pop %v4620
  %v4623 = vsinq.f32.pop %v4620
  %vm4624 = vweird.f32 %v786
  %v4625 = vadd.s32 %v4621, 3
  %v4626 = vand.u32 %v4625, 3
  %vm4627 = vcmp.lt.s32.totalorder %v4626, 2
  %vm4628 = vcmp.eq.s32.totalorder %v4626, 0
  %v4629 = vxor.u32 %v4623, 2147483648
  %v4630 = vsel %vm4628, %v4622, %v4629
  %vm4631 = vcmp.eq.s32.totalorder %v4626, 2
  %v4632 = vxor.u32 %v4622, 2147483648
  %v4633 = vsel %vm4631, %v4632, %v4623
  %v4634 = vsel %vm4627, %v4630, %v4633
  %v4635 = vsel %vm4624, nan, %v4634
  %v4636 = vand.u32 2147483647, %v787
  %vm4637 = vcmp.le.f32.partialorder %v4636, 0.7853982
  %vm4638 = vcmp.lt.s32.totalorder %v787, 0
  %v4639 = vand.u32 %v787, 2139095040
  %v4640 = vshrl.u32 %v4639, 23
  %v4641 = vsub.s32 %v4640, 127
  %v4642 = vand.u32 2147483647, %v787
  %v4643 = vand.u32 %v4642, 8388607
  %v4644 = vor.u32 %v4643, 8388608
  %v4645 = vsub.s32 0, %v4644
  %v4646 = vadd.s32 %v4641, 1
  %vm4647 = vcmp.gt.s32.totalorder %v4646, 0
  %v4648 = vsel %vm4647, %v4646, 0
  %v4649 = vshrl.u32 %v4648, 5
  %v4650 = vand.u32 %v4648, 31
  %v4651 = vsub.s32 32, %v4650
  %v4652 = vshrl.u32 683565275, %v4651
  %v4653 = vshll.u32 683565275, %v4650
  %v4654 = vshrl.u32 2475754826, %v4651
  %v4655 = vor.u32 %v4653, %v4654
  %v4656 = vshll.u32 2475754826, %v4650
  %v4657 = vshrl.u32 2131351028, %v4651
  %v4658 = vor.u32 %v4656, %v4657
  %v4659 = vshll.u32 2131351028, %v4650
  %v4660 = vshrl.u32 2102212464, %v4651
  %v4661 = vor.u32 %v4659, %v4660
  %v4662 = vshll.u32 2102212464, %v4650
  %v4663 = vshrl.u32 920167782, %v4651
  %v4664 = vor.u32 %v4662, %v4663
  %v4665 = vshll.u32 920167782, %v4650
  %v4666 = vshrl.u32 1326507024, %v4651
  %v4667 = vor.u32 %v4665, %v4666
  %vm4668 = vcmp.lt.s32.totalorder %v4649, 1
  %vm4669 = vcmp.lt.s32.totalorder %v4649, 2
  %vm4670 = vcmp.lt.s32.totalorder %v4649, 3
  %vm4671 = vcmp.lt.s32.totalorder %v4649, 4
  %v4672 = vsel %vm4668, %v4652, %v4655
  %v4673 = vsel %vm4671, %v4661, 2102212464
  %v4674 = vsel %vm4670, %v4658, %v4673
  %v4675 = vsel %vm4669, %v4672, %v4674
  %v4676 = vsel %vm4668, %v4655, %v4658
  %v4677 = vsel %vm4671, %v4664, 920167782
  %v4678 = vsel %vm4670, %v4661, %v4677
  %v4679 = vsel %vm4669, %v4676, %v4678
  %v4680 = vsel %vm4668, %v4658, %v4661
  %v4681 = vsel %vm4671, %v4667, 1326507024
  %v4682 = vsel %vm4670, %v4664, %v4681
  %v4683 = vsel %vm4669, %v4680, %v4682
  %v4684 = vshll.u32 %v4644, 8
  %v4685 = vmul.u32.u64.compose %v4684, %v4683
  %v4686 = vextract.low.u32 %v4685
  %v4687 = vextract.high.u32 %v4685
  %v4688 = vmul.u32.u64.compose %v4684, %v4679
  %v4689 = vextract.low.u32 %v4688
  %v4690 = vextract.high.u32 %v4688
  %v4691 = vmul.u32 %v4684, %v4675
  %v4692 = vadd.s32 %v4687, %v4689
  %vm4693 = vc.u32 %v4687, %v4689
  %v4694 = vadd.s32 %v4690, 1
  %v4695 = vsel %vm4693, %v4694, %v4690
  %v4696 = vadd.s32 %v4691, %v4695
  %v4697 = vadd.s32 %v4696, 536870912
  %v4698 = vshrl.u32 %v4697, 30
  %v4699 = vshll.u32 %v4698, 30
  %v4700 = vsub.s32 %v4696, %v4699
  %vm4701 = vcmp.lt.s32.totalorder %v4700, 0
  %v4702 = vsub.s32 0, %v4700
  %v4703 = vsel %vm4701, %v4702, %v4700
  %v4704 = vclz %v4703
  %v4705 = vsub.s32 %v4704, 2
  %vm4706 = vcmp.gt.s32.totalorder 0, %v4705
  %v4707 = vsel %vm4706, 0, %v4705
  %v4708 = vsub.s32 32, %v4707
  %v4709 = vshll.u32 %v4700, %v4707
  %v4710 = vshrl.u32 %v4692, %v4708
  %v4711 = vor.u32 %v4709, %v4710
  %v4712 = vsub.s32 4294967266, %v4707
  %v4713 = vadd.s32 %v4712, 127
  %v4714 = vshll.u32 %v4713, 23
  %v4715 = vor.u32 4788187, %v4714
  %v4716 = vand.u32 2147483647, %v4715
  %v4718 = vcvt.s32.f32 %v4711
  %v4719 = vmul.f32 %v4718, %v4716
  %v4720 = vxor.u32 %v4719, 2147483648
  %v4721 = vsel %vm4638, %v4720, %v4719
  %v4722 = vsub.s32 4, %v4698
  %v4723 = vsel %vm4638, %v4722, %v4698
  %v4724 = vsel %vm4637, %v787, %v4721
  %v4725 = vsel %vm4637, 0, %v4723
  %v4726 = vcosq.f32.pop %v4724
  %v4727 = vsinq.f32.pop %v4724
  %vm4728 = vweird.f32 %v787
  %v4729 = vadd.s32 %v4725, 3
  %v4730 = vand.u32 %v4729, 3
  %vm4731 = vcmp.lt.s32.totalorder %v4730, 2
  %vm4732 = vcmp.eq.s32.totalorder %v4730, 0
  %v4733 = vxor.u32 %v4727, 2147483648
  %v4734 = vsel %vm4732, %v4726, %v4733
  %vm4735 = vcmp.eq.s32.totalorder %v4730, 2
  %v4736 = vxor.u32 %v4726, 2147483648
  %v4737 = vsel %vm4735, %v4736, %v4727
  %v4738 = vsel %vm4731, %v4734, %v4737
  %v4739 = vsel %vm4728, nan, %v4738
  %vm4740 = vcmask 474112
  %4741 = vst.msk [vmem:[%s2] sm:$0xff] %vm4740, %v891
  %4742 = vst.msk [vmem:[%s2 + $0x8] sm:$0xff] %vm4740, %v995
  %4743 = vst.msk [vmem:[%s2 + $0x10] sm:$0xff] %vm4740, %v1099
  %4744 = vst.msk [vmem:[%s2 + $0x18] sm:$0xff] %vm4740, %v1203
  %4745 = vst.msk [vmem:[%s2 + $0x20] sm:$0xff] %vm4740, %v1307
  %4746 = vst.msk [vmem:[%s2 + $0x28] sm:$0xff] %vm4740, %v1411
  %4747 = vst.msk [vmem:[%s2 + $0x30] sm:$0xff] %vm4740, %v1515
  %4748 = vst.msk [vmem:[%s2 + $0x38] sm:$0xff] %vm4740, %v1619
  %4749 = vst.msk [vmem:[%s2 + $0x40] sm:$0xff] %vm4740, %v1723
  %4750 = vst.msk [vmem:[%s2 + $0x48] sm:$0xff] %vm4740, %v1827
  %4751 = vst.msk [vmem:[%s2 + $0x50] sm:$0xff] %vm4740, %v1931
  %4752 = vst.msk [vmem:[%s2 + $0x58] sm:$0xff] %vm4740, %v2035
  %4753 = vst.msk [vmem:[%s2 + $0x60] sm:$0xff] %vm4740, %v2139
  %4754 = vst.msk [vmem:[%s2 + $0x68] sm:$0xff] %vm4740, %v2243
  %4755 = vst.msk [vmem:[%s2 + $0x70] sm:$0xff] %vm4740, %v2347
  %4756 = vst.msk [vmem:[%s2 + $0x78] sm:$0xff] %vm4740, %v2451
  %4757 = vst.msk [vmem:[%s2 + $0x80] sm:$0xff] %vm4740, %v2555
  %4758 = vst.msk [vmem:[%s2 + $0x88] sm:$0xff] %vm4740, %v2659
  %4759 = vst.msk [vmem:[%s2 + $0x90] sm:$0xff] %vm4740, %v2763
  %4760 = vst.msk [vmem:[%s2 + $0x98] sm:$0xff] %vm4740, %v2867
  %4761 = vst.msk [vmem:[%s2 + $0xa0] sm:$0xff] %vm4740, %v2971
  %4762 = vst.msk [vmem:[%s2 + $0xa8] sm:$0xff] %vm4740, %v3075
  %4763 = vst.msk [vmem:[%s2 + $0xb0] sm:$0xff] %vm4740, %v3179
  %4764 = vst.msk [vmem:[%s2 + $0xb8] sm:$0xff] %vm4740, %v3283
  %4765 = vst.msk [vmem:[%s2 + $0xc0] sm:$0xff] %vm4740, %v3387
  %4766 = vst.msk [vmem:[%s2 + $0xc8] sm:$0xff] %vm4740, %v3491
  %4767 = vst.msk [vmem:[%s2 + $0xd0] sm:$0xff] %vm4740, %v3595
  %4768 = vst.msk [vmem:[%s2 + $0xd8] sm:$0xff] %vm4740, %v3699
  %4769 = vst.msk [vmem:[%s2 + $0xe0] sm:$0xff] %vm4740, %v3803
  %4770 = vst.msk [vmem:[%s2 + $0xe8] sm:$0xff] %vm4740, %v3907
  %4771 = vst.msk [vmem:[%s2 + $0xf0] sm:$0xff] %vm4740, %v4011
  %4772 = vst.msk [vmem:[%s2 + $0xf8] sm:$0xff] %vm4740, %v4115
  %4773 = vst.msk [vmem:[%s2 + $0x100] sm:$0xff] %vm4740, %v4219
  %4774 = vst.msk [vmem:[%s2 + $0x108] sm:$0xff] %vm4740, %v4323
  %4775 = vst.msk [vmem:[%s2 + $0x110] sm:$0xff] %vm4740, %v4427
  %4776 = vst.msk [vmem:[%s2 + $0x118] sm:$0xff] %vm4740, %v4531
  %4777 = vst.msk [vmem:[%s2 + $0x120] sm:$0xff] %vm4740, %v4635
  %4778 = vst.msk [vmem:[%s2 + $0x128] sm:$0xff] %vm4740, %v4739
  // Predicated region
  $region10: #{tpu_custom_call.1} parent=0 // pred_check
    _
  $region11: #{tpu_custom_call.1} parent=0 // pred_check_branch
    %4780 = sbr.rel (0) target = $region13
  $region12: #{tpu_custom_call.1} parent=0 // pred_region
    _
  $region13: #{tpu_custom_call.1} parent=0 // pred_fallthru
    _
  // Predicated region
  $region14: #{tpu_custom_call.1} parent=0 // pred_check
    _
  $region15: #{tpu_custom_call.1} parent=0 // pred_check_branch
    %4782 = sbr.rel (0) target = $region17
  $region16: #{tpu_custom_call.1} parent=0 // pred_region
    _
  $region17: #{tpu_custom_call.1} parent=0 // pred_fallthru
    _

</llo_original>
